<compile_context>
chip_gen: v7x
topology: tpu7x:2x2x1
jax: 0.10.0
libtpu: 0.0.40
codegen_flags: <defaults>
</compile_context>

<pallas_src>
import functools

import jax
import jax.numpy as jnp
from jax import lax
from jax.experimental import pallas as pl
from jax.experimental.pallas import tpu as pltpu


LANE = 128


# ----------------------------- small helpers --------------------------------

def _round_up(x, m):
    return ((x + m - 1) // m) * m


def _pad2(a, rows, cols, dtype=jnp.float32):
    a = a.astype(jnp.float32)
    a = jnp.pad(a, ((0, rows - a.shape[0]), (0, cols - a.shape[1])))
    return a.astype(dtype)


def _fold_bn(W, b, gamma, beta, mean, var, eps=1e-5):
    """Fold inference-mode BatchNorm1d (after conv) into conv W, b."""
    scale = gamma / jnp.sqrt(var + eps)
    return W * scale[:, None, None], (b - mean) * scale + beta


def _pad_taps_cat(W, cp, dtype):
    """Conv1d weight (Cout, Cin, 3) -> ONE fused matmul weight (3*cp, cp).

    Row block [tap*cp : tap*cp + Cin] holds W[:, :, tap].T, so that
      dot(concat([x[l-1], x[l], x[l+1]], lanes), W_cat) == conv_k3_pad1(x)[l].
    """
    t = jnp.transpose(W.astype(jnp.float32), (2, 1, 0))          # (3, Cin, Cout)
    t = jnp.pad(t, ((0, 0), (0, cp - t.shape[1]), (0, cp - t.shape[2])))
    return t.reshape(3 * cp, cp).astype(dtype)


def _first_layer_patches(sig):
    """k=4, stride=2, pad=1 im2col via pad/reshape/slice only (no gather HLO).

    sig: (B, L) single channel -> (B, L//2, 4) with
    patches[b, l, j] = padded_sig[b, 2*l + j].
    """
    B, L = sig.shape
    assert L % 2 == 0
    xp = jnp.pad(sig, ((0, 0), (1, 1)))                          # (B, L+2)
    pairs = xp.reshape(B, (L + 2) // 2, 2)                       # pairs[:,l]=xp[2l:2l+2]
    return jnp.concatenate([pairs[:, :-1, :], pairs[:, 1:, :]], axis=-1)


def _choose_bblk(B, L_enc):
    """Batch elements per grid step.

    Whole batch in one step for small B (Bblk == full batch dim keeps the
    (Bblk, Np) out-block legal); otherwise a multiple of 8 targeting >=512
    matmul rows per step.  For v7x, B > Bblk gives >= 2 grid steps so both
    TensorCores get work under dimension_semantics=("parallel",).
    """
    if B <= 8:
        return B
    bblk = 8
    while bblk * 2 <= B and bblk * L_enc < 512:
        bblk *= 2
    return bblk


def _const_index_map(ndim):
    return lambda i: (0,) * ndim


# ----------------------------- Pallas kernel ---------------------------------

def _fused_fwd_kernel(*refs, num_blocks, l_enc, bblk):
    """Whole fmri_cat forward for Bblk batch elements, activations VMEM-resident.

    refs = [patches, enc0_w, enc0_b,
            (w1_cat, b1, w2_cat, b2, w3, b3) * num_blocks,
            enc_out_w, enc_out_b, fc1_w, fc1_b, fc2_w, fc2_b, out]
    """
    f32, bf16 = jnp.float32, jnp.bfloat16
    x_ref, out_ref = refs[0], refs[-1]
    it = iter(refs[1:-1])

    m = bblk * l_enc

    # --- first encoder layer: stride-2 k=4 conv already im2col'd -> matmul ---
    enc0_w = next(it)[...]                                       # (8, Hp) f32
    enc0_b = next(it)[...]                                       # (1, Hp) f32
    h = jnp.dot(x_ref[...], enc0_w, preferred_element_type=f32) + enc0_b
    h = jnp.maximum(h, 0.0)                                      # (m, Hp) f32

    # --- loop-invariant shift masks (hoisted; JAX does not CSE iota) ---------
    pos = lax.broadcasted_iota(jnp.int32, h.shape, 0) % l_enc
    keep_l = pos > 0               # row has a left neighbour inside its element
    keep_r = pos < (l_enc - 1)     # row has a right neighbour inside its element
    zero = jnp.zeros_like(h)

    def conv3(a, w_cat):
        """k=3, pad=1, stride=1 conv as ONE (m, 3*Hp) x (3*Hp, Hp) MXU matmul."""
        left = jnp.where(keep_l, pltpu.roll(a, 1, 0), zero)      # a[l-1]
        right = jnp.where(keep_r, pltpu.roll(a, m - 1, 0), zero)  # a[l+1]
        cat = jnp.concatenate([left, a, right], axis=1).astype(bf16)
        return jnp.dot(cat, w_cat, preferred_element_type=f32)

    # --- resnet blocks (inference BN folded into the conv weights) -----------
    for _ in range(num_blocks):
        w1 = next(it)[...]; b1 = next(it)[...]
        w2 = next(it)[...]; b2 = next(it)[...]
        w3 = next(it)[...]; b3 = next(it)[...]
        y = jnp.maximum(conv3(h, w1) + b1, 0.0)
        y = jnp.maximum(conv3(y, w2) + b2, 0.0)
        y = jnp.dot(y.astype(bf16), w3, preferred_element_type=f32) + b3
        h = h + y

    # --- encoder 1x1 head (to num_class) + the fc head's leading ReLU --------
    wo = next(it)[...]; bo = next(it)[...]
    z = jnp.maximum(jnp.dot(h.astype(bf16), wo, preferred_element_type=f32) + bo,
                    0.0)                       # (m, Np): rows=positions, lanes=classes
    # (the transpose(1, 2) in the module is absorbed by doing the fc matmuls
    #  from the left, so no in-kernel transpose is needed)

    # --- fc head: two 1x1 convs over the position axis, per batch element ----
    fw1 = next(it)[...]; fb1 = next(it)[...]
    fw2 = next(it)[...]; fb2 = next(it)[...]
    rows = []
    for b in range(bblk):                      # static, small; sublane-aligned slices
        z_b = z[b * l_enc:(b + 1) * l_enc, :].astype(bf16)           # (L_enc, Np)
        f1 = jnp.maximum(jnp.dot(fw1, z_b, preferred_element_type=f32) + fb1, 0.0)
        rows.append(jnp.dot(fw2, f1.astype(bf16), preferred_element_type=f32) + fb2)
    out_ref[...] = jnp.concatenate(rows, axis=0)                     # (bblk, Np)


# --------------------- weight preparation (hoisted, once) --------------------

def prepare_fused_params(params, *, lane=LANE, wdtype=jnp.bfloat16):
    """Fold BN, stack conv taps into single matmul weights, pad to lane-dense
    shapes, cast matmul weights to bf16 (biases stay f32).  Done once."""
    assert len(params['enc_convs']) == 1, "fused kernel supports num_layers == 1"
    W0 = params['enc_convs'][0]['W']                     # (H, 1, 4)
    b0 = params['enc_convs'][0]['b']
    assert W0.shape[1] == 1, "module forward uses signal.view(-1, 1, L)"
    H, _, k = W0.shape
    Hp = _round_up(H, lane)
    C0p = _round_up(k, 8)        # only 8 lanes: block == full array dim, exempt

    weights = [
        _pad2(jnp.transpose(W0[:, 0, :]), C0p, Hp),      # enc0_w (8, Hp) f32 (tiny)
        _pad2(b0.reshape(1, -1), 1, Hp),                 # enc0_b
    ]
    for blk in params['resblocks']:
        W1f, b1f = _fold_bn(blk['conv1']['W'], blk['conv1']['b'], *blk['bn1'])
        W2f, b2f = _fold_bn(blk['conv2']['W'], blk['conv2']['b'], *blk['bn2'])
        weights += [
            _pad_taps_cat(W1f, Hp, wdtype), _pad2(b1f.reshape(1, -1), 1, Hp),
            _pad_taps_cat(W2f, Hp, wdtype), _pad2(b2f.reshape(1, -1), 1, Hp),
            _pad2(jnp.transpose(blk['conv3']['W'][:, :, 0]), Hp, Hp, wdtype),
            _pad2(blk['conv3']['b'].reshape(1, -1), 1, Hp),
        ]

    Wo = params['enc_out']['W']                          # (NC, H, 1)
    Np = _round_up(Wo.shape[0], lane)
    weights += [
        _pad2(jnp.transpose(Wo[:, :, 0]), Hp, Np, wdtype),
        _pad2(params['enc_out']['b'].reshape(1, -1), 1, Np),
    ]

    W1 = params['fc1']['W']                              # (F, L_enc, 1)
    F, L_enc = W1.shape[0], W1.shape[1]
    Fp = _round_up(F, 8)
    weights += [
        _pad2(W1[:, :, 0], Fp, L_enc, wdtype),           # (Fp, L_enc)
        _pad2(params['fc1']['b'].reshape(-1, 1), Fp, 1),
        _pad2(params['fc2']['W'][:, :, 0], 1, Fp, wdtype),  # (1, Fp)
        params['fc2']['b'].reshape(1, 1).astype(jnp.float32),
    ]
    return weights


# ------------------------------- forward -------------------------------------

def fmri_cat_forward(signal, weights, *, signal_len, num_class):
    """Pallas implementation of fmri_cat.forward (return_loss=False)."""
    sig = signal.reshape(-1, signal_len).astype(jnp.float32)
    B = sig.shape[0]

    patches = _first_layer_patches(sig)                  # (B, L_enc, 4)
    L_enc = patches.shape[1]
    assert L_enc % 8 == 0, "signal_len // 2**num_layers must be a multiple of 8"

    C0p = weights[0].shape[0]
    Hp = weights[0].shape[1]
    Np = weights[-6].shape[1]
    Fp = weights[-4].shape[0]
    num_blocks = (len(weights) - 8) // 6
    assert weights[-4].shape[1] == L_enc

    bblk = _choose_bblk(B, L_enc)
    n_steps = pl.cdiv(B, bblk)
    Bpad = n_steps * bblk

    patches = jnp.pad(patches, ((0, Bpad - B), (0, 0), (0, C0p - patches.shape[2])))
    patches = patches.reshape(Bpad * L_enc, C0p)         # flattened batch block rows

    in_specs = [pl.BlockSpec((bblk * L_enc, C0p), lambda i: (i, 0))]
    # Weight BlockSpecs have constant index maps -> DMA'd once and kept
    # VMEM-resident across grid steps (no per-step re-fetch).
    for w in weights:
        in_specs.append(pl.BlockSpec(w.shape, _const_index_map(w.ndim)))
    out_spec = pl.BlockSpec((bblk, Np), lambda i: (i, 0))

    m = bblk * L_enc
    flops_per_step = (2 * m * C0p * Hp
                      + num_blocks * 7 * 2 * m * Hp * Hp
                      + 2 * m * Hp * Np
                      + bblk * (2 * Fp * L_enc * Np + 2 * Fp * Np))
    weight_bytes = sum(int(w.size) * w.dtype.itemsize for w in weights)  # once, not xB
    bytes_accessed = int(patches.size) * 4 + weight_bytes + Bpad * Np * 4

    out = pl.pallas_call(
        functools.partial(_fused_fwd_kernel, num_blocks=num_blocks,
                          l_enc=L_enc, bblk=bblk),
        grid=(n_steps,),
        in_specs=in_specs,
        out_specs=out_spec,
        out_shape=jax.ShapeDtypeStruct((Bpad, Np), jnp.float32),
        compiler_params=pltpu.CompilerParams(
            dimension_semantics=("parallel",)),
        cost_estimate=pl.CostEstimate(flops=int(n_steps * flops_per_step),
                                      transcendentals=0,
                                      bytes_accessed=int(bytes_accessed)),
    )(patches, *weights)

    return out[:B, :num_class]


# ---------------------------- parameter init ---------------------------------

def init_params(key, signal_len, num_class, num_layers, num_resnet_blocks,
                hidden_dim, fc_hdim, channels):
    def conv_init(k, out_c, in_c, ksize):
        kw, kb = jax.random.split(k)
        W = jax.random.normal(kw, (out_c, in_c, ksize), jnp.float32)
        W = W / jnp.sqrt(jnp.float32(in_c * ksize))
        b = 0.01 * jax.random.normal(kb, (out_c,), jnp.float32)
        return {'W': W, 'b': b}

    def bn_init(k, c):
        kg, kb = jax.random.split(k)
        gamma = 1.0 + 0.1 * jax.random.normal(kg, (c,), jnp.float32)
        beta = 0.05 * jax.random.normal(kb, (c,), jnp.float32)
        mean = jnp.zeros((c,), jnp.float32)   # untrained running stats
        var = jnp.ones((c,), jnp.float32)
        return (gamma, beta, mean, var)

    keys = iter(jax.random.split(key, 8 + 3 * num_layers + 8 * num_resnet_blocks))
    enc_chans = [channels] + [hidden_dim] * num_layers
    enc_convs = [conv_init(next(keys), o, i, 4)
                 for i, o in zip(enc_chans[:-1], enc_chans[1:])]
    d = enc_chans[-1]
    resblocks = []
    for _ in range(num_resnet_blocks):
        resblocks.append({
            'conv1': conv_init(next(keys), d, d, 3),
            'bn1': bn_init(next(keys), d),
            'conv2': conv_init(next(keys), d, d, 3),
            'bn2': bn_init(next(keys), d),
            'conv3': conv_init(next(keys), d, d, 1),
        })
    enc_out = conv_init(next(keys), num_class, d, 1)
    l_enc = signal_len // (2 ** num_layers)
    fc1 = conv_init(next(keys), fc_hdim, l_enc, 1)
    fc2 = conv_init(next(keys), 1, fc_hdim, 1)
    return {'enc_convs': enc_convs, 'resblocks': resblocks,
            'enc_out': enc_out, 'fc1': fc1, 'fc2': fc2}


# -------------------------- pure-JAX reference ------------------------------

def ref_forward(signal, params, *, signal_len, num_class):
    sig = signal.reshape(-1, 1, signal_len).astype(jnp.float32)
    dn = ('NCH', 'OIH', 'NCH')

    def conv(x, W, b, stride=1, pad=0):
        y = lax.conv_general_dilated(x, W, (stride,), ((pad, pad),),
                                     dimension_numbers=dn)
        return y + b[None, :, None]

    def bn(x, gamma, beta, mean, var, eps=1e-5):
        return ((x - mean[None, :, None]) / jnp.sqrt(var[None, :, None] + eps)
                * gamma[None, :, None] + beta[None, :, None])

    h = jax.nn.relu(conv(sig, params['enc_convs'][0]['W'],
                         params['enc_convs'][0]['b'], stride=2, pad=1))
    for c in params['enc_convs'][1:]:
        h = jax.nn.relu(conv(h, c['W'], c['b'], stride=2, pad=1))
    for blk in params['resblocks']:
        y = jax.nn.relu(bn(conv(h, blk['conv1']['W'], blk['conv1']['b'], pad=1),
                           *blk['bn1']))
        y = jax.nn.relu(bn(conv(y, blk['conv2']['W'], blk['conv2']['b'], pad=1),
                           *blk['bn2']))
        y = conv(y, blk['conv3']['W'], blk['conv3']['b'])
        h = y + h
    z = conv(h, params['enc_out']['W'], params['enc_out']['b'])
    z = jnp.transpose(z, (0, 2, 1))                 # (B, L, num_class)
    z = jax.nn.relu(z)
    z = jax.nn.relu(conv(z, params['fc1']['W'], params['fc1']['b']))
    z = conv(z, params['fc2']['W'], params['fc2']['b'])
    return z[:, 0, :]


# --------------------------------- main -------------------------------------

if __name__ == "__main__":
    cfg = dict(signal_len=64, num_class=16, num_layers=1,
               num_resnet_blocks=2, hidden_dim=32, fc_hdim=32, channels=1)
    B = 2

    key = jax.random.PRNGKey(0)
    pkey, xkey = jax.random.split(key)
    params = init_params(pkey, **cfg)

    # x['fmri'] equivalent
    signal = jax.random.normal(xkey, (B, cfg['signal_len']), dtype=jnp.float32)

    # Hoisted, one-time weight preparation (BN fold + fused-tap matmul layout +
    # lane padding + bf16 cast).
    weights = prepare_fused_params(params)
    weights = jax.tree_util.tree_map(jax.block_until_ready, weights)

    fwd = jax.jit(functools.partial(fmri_cat_forward,
                                    signal_len=cfg['signal_len'],
                                    num_class=cfg['num_class']))
    y_pred = jax.block_until_ready(fwd(signal, weights))
    assert y_pred.shape == (B, cfg['num_class']), y_pred.shape

    y_ref = ref_forward(signal, params,
                        signal_len=cfg['signal_len'],
                        num_class=cfg['num_class'])
    max_err = float(jnp.max(jnp.abs(y_pred - y_ref)))
    # bf16 MXU inputs (f32 accumulation) vs. pure-f32 reference: widened
    # tolerance; still far below the O(1) errors a structural bug would give.
    assert max_err < 1e-1, f"mismatch vs reference: {max_err}"

    print("KERNEL_OK")
</pallas_src>

<mosaic_0001>
module attributes {stable_mosaic.version = 11 : i64} {
  func.func @_fused_fwd_kernel(%arg0: i32, %arg1: memref<64x8xf32, #tpu.memory_space<vmem>>, %arg2: memref<8x128xf32, #tpu.memory_space<vmem>>, %arg3: memref<1x128xf32, #tpu.memory_space<vmem>>, %arg4: memref<384x128xbf16, #tpu.memory_space<vmem>>, %arg5: memref<1x128xf32, #tpu.memory_space<vmem>>, %arg6: memref<384x128xbf16, #tpu.memory_space<vmem>>, %arg7: memref<1x128xf32, #tpu.memory_space<vmem>>, %arg8: memref<128x128xbf16, #tpu.memory_space<vmem>>, %arg9: memref<1x128xf32, #tpu.memory_space<vmem>>, %arg10: memref<384x128xbf16, #tpu.memory_space<vmem>>, %arg11: memref<1x128xf32, #tpu.memory_space<vmem>>, %arg12: memref<384x128xbf16, #tpu.memory_space<vmem>>, %arg13: memref<1x128xf32, #tpu.memory_space<vmem>>, %arg14: memref<128x128xbf16, #tpu.memory_space<vmem>>, %arg15: memref<1x128xf32, #tpu.memory_space<vmem>>, %arg16: memref<128x128xbf16, #tpu.memory_space<vmem>>, %arg17: memref<1x128xf32, #tpu.memory_space<vmem>>, %arg18: memref<32x32xbf16, #tpu.memory_space<vmem>>, %arg19: memref<32x1xf32, #tpu.memory_space<vmem>>, %arg20: memref<1x32xbf16, #tpu.memory_space<vmem>>, %arg21: memref<1x1xf32, #tpu.memory_space<vmem>>, %arg22: memref<2x128xf32, #tpu.memory_space<vmem>>) attributes {dimension_semantics = [#tpu.dimension_semantics<parallel>], iteration_bounds = array<i64: 1>, scalar_prefetch = 0 : i64, scratch_operands = 0 : i64, tpu.core_type = #tpu.core_type<tc>, window_params = [{transform_indices = @transform_0, window_bounds = array<i64: 64, 8>}, {pipeline_mode = #tpu.pipeline_mode<synchronous>, transform_indices = @transform_1, window_bounds = array<i64: 8, 128>}, {pipeline_mode = #tpu.pipeline_mode<synchronous>, transform_indices = @transform_2, window_bounds = array<i64: 1, 128>}, {pipeline_mode = #tpu.pipeline_mode<synchronous>, transform_indices = @transform_3, window_bounds = array<i64: 384, 128>}, {pipeline_mode = #tpu.pipeline_mode<synchronous>, transform_indices = @transform_4, window_bounds = array<i64: 1, 128>}, {pipeline_mode = #tpu.pipeline_mode<synchronous>, transform_indices = @transform_5, window_bounds = array<i64: 384, 128>}, {pipeline_mode = #tpu.pipeline_mode<synchronous>, transform_indices = @transform_6, window_bounds = array<i64: 1, 128>}, {pipeline_mode = #tpu.pipeline_mode<synchronous>, transform_indices = @transform_7, window_bounds = array<i64: 128, 128>}, {pipeline_mode = #tpu.pipeline_mode<synchronous>, transform_indices = @transform_8, window_bounds = array<i64: 1, 128>}, {pipeline_mode = #tpu.pipeline_mode<synchronous>, transform_indices = @transform_9, window_bounds = array<i64: 384, 128>}, {pipeline_mode = #tpu.pipeline_mode<synchronous>, transform_indices = @transform_10, window_bounds = array<i64: 1, 128>}, {pipeline_mode = #tpu.pipeline_mode<synchronous>, transform_indices = @transform_11, window_bounds = array<i64: 384, 128>}, {pipeline_mode = #tpu.pipeline_mode<synchronous>, transform_indices = @transform_12, window_bounds = array<i64: 1, 128>}, {pipeline_mode = #tpu.pipeline_mode<synchronous>, transform_indices = @transform_13, window_bounds = array<i64: 128, 128>}, {pipeline_mode = #tpu.pipeline_mode<synchronous>, transform_indices = @transform_14, window_bounds = array<i64: 1, 128>}, {pipeline_mode = #tpu.pipeline_mode<synchronous>, transform_indices = @transform_15, window_bounds = array<i64: 128, 128>}, {pipeline_mode = #tpu.pipeline_mode<synchronous>, transform_indices = @transform_16, window_bounds = array<i64: 1, 128>}, {pipeline_mode = #tpu.pipeline_mode<synchronous>, transform_indices = @transform_17, window_bounds = array<i64: 32, 32>}, {pipeline_mode = #tpu.pipeline_mode<synchronous>, transform_indices = @transform_18, window_bounds = array<i64: 32, 1>}, {pipeline_mode = #tpu.pipeline_mode<synchronous>, transform_indices = @transform_19, window_bounds = array<i64: 1, 32>}, {pipeline_mode = #tpu.pipeline_mode<synchronous>, transform_indices = @transform_20, window_bounds = array<i64: 1, 1>}, {transform_indices = @transform_21, window_bounds = array<i64: 2, 128>}]} {
    %c0 = arith.constant 0 : index
    %c0_0 = arith.constant 0 : index
    %0 = vector.load %arg2[%c0, %c0_0] : memref<8x128xf32, #tpu.memory_space<vmem>>, vector<8x128xf32>
    %c0_1 = arith.constant 0 : index
    %c0_2 = arith.constant 0 : index
    %1 = vector.load %arg3[%c0_1, %c0_2] : memref<1x128xf32, #tpu.memory_space<vmem>>, vector<1x128xf32>
    %c0_3 = arith.constant 0 : index
    %c0_4 = arith.constant 0 : index
    %2 = vector.load %arg1[%c0_3, %c0_4] : memref<64x8xf32, #tpu.memory_space<vmem>>, vector<64x8xf32>
    %cst = arith.constant dense<0.000000e+00> : vector<64x128xf32>
    %3 = tpu.matmul %2, %0, %cst {dimension_numbers = #tpu.dot_dimension_numbers<[1], [0], [0], [1], [0, 0, 1, 1], [], []>} : vector<64x8xf32>, vector<8x128xf32>, vector<64x128xf32> -> vector<64x128xf32>
    %4 = vector.broadcast %1 : vector<1x128xf32> to vector<64x128xf32>
    %5 = arith.addf %3, %4 : vector<64x128xf32>
    %cst_5 = arith.constant 0.000000e+00 : f32
    %6 = vector.broadcast %cst_5 : f32 to vector<64x128xf32>
    %7 = arith.maximumf %5, %6 : vector<64x128xf32>
    %8 = tpu.iota {dimensions = array<i32: 0>} : vector<64x128xi32>
    %c32_i32 = arith.constant 32 : i32
    %c0_i32 = arith.constant 0 : i32
    %9 = arith.cmpi eq, %c32_i32, %c0_i32 : i32
    %c1_i32 = arith.constant 1 : i32
    %10 = arith.select %9, %c1_i32, %c32_i32 : i32
    %11 = vector.broadcast %10 : i32 to vector<64x128xi32>
    %12 = arith.remsi %8, %11 : vector<64x128xi32>
    %c0_i32_6 = arith.constant 0 : i32
    %13 = vector.broadcast %c0_i32_6 : i32 to vector<64x128xi32>
    %14 = arith.cmpi ne, %12, %13 : vector<64x128xi32>
    %c0_i32_7 = arith.constant 0 : i32
    %15 = vector.broadcast %c0_i32_7 : i32 to vector<64x128xi32>
    %16 = arith.cmpi slt, %12, %15 : vector<64x128xi32>
    %c0_i32_8 = arith.constant 0 : i32
    %17 = arith.cmpi slt, %10, %c0_i32_8 : i32
    %18 = vector.broadcast %17 : i1 to vector<64x128xi1>
    %19 = vector.broadcast %18 : vector<64x128xi1> to vector<64x128xi1>
    %20 = arith.xori %16, %19 : vector<64x128xi1>
    %21 = arith.andi %20, %14 : vector<64x128xi1>
    %22 = vector.broadcast %10 : i32 to vector<64x128xi32>
    %23 = arith.addi %12, %22 : vector<64x128xi32>
    %24 = arith.select %21, %23, %12 : vector<64x128xi1>, vector<64x128xi32>
    %c0_i32_9 = arith.constant 0 : i32
    %25 = vector.broadcast %c0_i32_9 : i32 to vector<64x128xi32>
    %26 = arith.cmpi sgt, %24, %25 : vector<64x128xi32>
    %c31_i32 = arith.constant 31 : i32
    %27 = vector.broadcast %c31_i32 : i32 to vector<64x128xi32>
    %28 = arith.cmpi slt, %24, %27 : vector<64x128xi32>
    %cst_10 = arith.constant 0.000000e+00 : f32
    %29 = vector.broadcast %cst_10 : f32 to vector<64x128xf32>
    %c0_11 = arith.constant 0 : index
    %c0_12 = arith.constant 0 : index
    %30 = vector.load %arg4[%c0_11, %c0_12] : memref<384x128xbf16, #tpu.memory_space<vmem>>, vector<384x128xbf16>
    %c0_13 = arith.constant 0 : index
    %c0_14 = arith.constant 0 : index
    %31 = vector.load %arg5[%c0_13, %c0_14] : memref<1x128xf32, #tpu.memory_space<vmem>>, vector<1x128xf32>
    %c0_15 = arith.constant 0 : index
    %c0_16 = arith.constant 0 : index
    %32 = vector.load %arg6[%c0_15, %c0_16] : memref<384x128xbf16, #tpu.memory_space<vmem>>, vector<384x128xbf16>
    %c0_17 = arith.constant 0 : index
    %c0_18 = arith.constant 0 : index
    %33 = vector.load %arg7[%c0_17, %c0_18] : memref<1x128xf32, #tpu.memory_space<vmem>>, vector<1x128xf32>
    %c0_19 = arith.constant 0 : index
    %c0_20 = arith.constant 0 : index
    %34 = vector.load %arg8[%c0_19, %c0_20] : memref<128x128xbf16, #tpu.memory_space<vmem>>, vector<128x128xbf16>
    %c0_21 = arith.constant 0 : index
    %c0_22 = arith.constant 0 : index
    %35 = vector.load %arg9[%c0_21, %c0_22] : memref<1x128xf32, #tpu.memory_space<vmem>>, vector<1x128xf32>
    %c1_i32_23 = arith.constant 1 : i32
    %36 = tpu.dynamic_rotate %7 by %c1_i32_23 dim 0 : vector<64x128xf32>, i32 -> vector<64x128xf32>
    %37 = arith.select %26, %36, %29 : vector<64x128xi1>, vector<64x128xf32>
    %c63_i32 = arith.constant 63 : i32
    %38 = tpu.dynamic_rotate %7 by %c63_i32 dim 0 : vector<64x128xf32>, i32 -> vector<64x128xf32>
    %39 = arith.select %28, %38, %29 : vector<64x128xi1>, vector<64x128xf32>
    %40 = tpu.concatenate %37, %7, %39 in 1 : vector<64x128xf32>, vector<64x128xf32>, vector<64x128xf32> -> vector<64x384xf32>
    %41 = arith.truncf %40 : vector<64x384xf32> to vector<64x384xbf16>
    %cst_24 = arith.constant dense<0.000000e+00> : vector<64x128xf32>
    %42 = tpu.matmul %41, %30, %cst_24 {dimension_numbers = #tpu.dot_dimension_numbers<[1], [0], [0], [1], [0, 0, 1, 1], [], []>} : vector<64x384xbf16>, vector<384x128xbf16>, vector<64x128xf32> -> vector<64x128xf32>
    %43 = vector.broadcast %31 : vector<1x128xf32> to vector<64x128xf32>
    %44 = arith.addf %42, %43 : vector<64x128xf32>
    %cst_25 = arith.constant 0.000000e+00 : f32
    %45 = vector.broadcast %cst_25 : f32 to vector<64x128xf32>
    %46 = arith.maximumf %44, %45 : vector<64x128xf32>
    %c1_i32_26 = arith.constant 1 : i32
    %47 = tpu.dynamic_rotate %46 by %c1_i32_26 dim 0 : vector<64x128xf32>, i32 -> vector<64x128xf32>
    %48 = arith.select %26, %47, %29 : vector<64x128xi1>, vector<64x128xf32>
    %c63_i32_27 = arith.constant 63 : i32
    %49 = tpu.dynamic_rotate %46 by %c63_i32_27 dim 0 : vector<64x128xf32>, i32 -> vector<64x128xf32>
    %50 = arith.select %28, %49, %29 : vector<64x128xi1>, vector<64x128xf32>
    %51 = tpu.concatenate %48, %46, %50 in 1 : vector<64x128xf32>, vector<64x128xf32>, vector<64x128xf32> -> vector<64x384xf32>
    %52 = arith.truncf %51 : vector<64x384xf32> to vector<64x384xbf16>
    %cst_28 = arith.constant dense<0.000000e+00> : vector<64x128xf32>
    %53 = tpu.matmul %52, %32, %cst_28 {dimension_numbers = #tpu.dot_dimension_numbers<[1], [0], [0], [1], [0, 0, 1, 1], [], []>} : vector<64x384xbf16>, vector<384x128xbf16>, vector<64x128xf32> -> vector<64x128xf32>
    %54 = vector.broadcast %33 : vector<1x128xf32> to vector<64x128xf32>
    %55 = arith.addf %53, %54 : vector<64x128xf32>
    %cst_29 = arith.constant 0.000000e+00 : f32
    %56 = vector.broadcast %cst_29 : f32 to vector<64x128xf32>
    %57 = arith.maximumf %55, %56 : vector<64x128xf32>
    %58 = arith.truncf %57 : vector<64x128xf32> to vector<64x128xbf16>
    %cst_30 = arith.constant dense<0.000000e+00> : vector<64x128xf32>
    %59 = tpu.matmul %58, %34, %cst_30 {dimension_numbers = #tpu.dot_dimension_numbers<[1], [0], [0], [1], [0, 0, 1, 1], [], []>} : vector<64x128xbf16>, vector<128x128xbf16>, vector<64x128xf32> -> vector<64x128xf32>
    %60 = vector.broadcast %35 : vector<1x128xf32> to vector<64x128xf32>
    %61 = arith.addf %59, %60 : vector<64x128xf32>
    %62 = arith.addf %7, %61 : vector<64x128xf32>
    %c0_31 = arith.constant 0 : index
    %c0_32 = arith.constant 0 : index
    %63 = vector.load %arg10[%c0_31, %c0_32] : memref<384x128xbf16, #tpu.memory_space<vmem>>, vector<384x128xbf16>
    %c0_33 = arith.constant 0 : index
    %c0_34 = arith.constant 0 : index
    %64 = vector.load %arg11[%c0_33, %c0_34] : memref<1x128xf32, #tpu.memory_space<vmem>>, vector<1x128xf32>
    %c0_35 = arith.constant 0 : index
    %c0_36 = arith.constant 0 : index
    %65 = vector.load %arg12[%c0_35, %c0_36] : memref<384x128xbf16, #tpu.memory_space<vmem>>, vector<384x128xbf16>
    %c0_37 = arith.constant 0 : index
    %c0_38 = arith.constant 0 : index
    %66 = vector.load %arg13[%c0_37, %c0_38] : memref<1x128xf32, #tpu.memory_space<vmem>>, vector<1x128xf32>
    %c0_39 = arith.constant 0 : index
    %c0_40 = arith.constant 0 : index
    %67 = vector.load %arg14[%c0_39, %c0_40] : memref<128x128xbf16, #tpu.memory_space<vmem>>, vector<128x128xbf16>
    %c0_41 = arith.constant 0 : index
    %c0_42 = arith.constant 0 : index
    %68 = vector.load %arg15[%c0_41, %c0_42] : memref<1x128xf32, #tpu.memory_space<vmem>>, vector<1x128xf32>
    %c1_i32_43 = arith.constant 1 : i32
    %69 = tpu.dynamic_rotate %62 by %c1_i32_43 dim 0 : vector<64x128xf32>, i32 -> vector<64x128xf32>
    %70 = arith.select %26, %69, %29 : vector<64x128xi1>, vector<64x128xf32>
    %c63_i32_44 = arith.constant 63 : i32
    %71 = tpu.dynamic_rotate %62 by %c63_i32_44 dim 0 : vector<64x128xf32>, i32 -> vector<64x128xf32>
    %72 = arith.select %28, %71, %29 : vector<64x128xi1>, vector<64x128xf32>
    %73 = tpu.concatenate %70, %62, %72 in 1 : vector<64x128xf32>, vector<64x128xf32>, vector<64x128xf32> -> vector<64x384xf32>
    %74 = arith.truncf %73 : vector<64x384xf32> to vector<64x384xbf16>
    %cst_45 = arith.constant dense<0.000000e+00> : vector<64x128xf32>
    %75 = tpu.matmul %74, %63, %cst_45 {dimension_numbers = #tpu.dot_dimension_numbers<[1], [0], [0], [1], [0, 0, 1, 1], [], []>} : vector<64x384xbf16>, vector<384x128xbf16>, vector<64x128xf32> -> vector<64x128xf32>
    %76 = vector.broadcast %64 : vector<1x128xf32> to vector<64x128xf32>
    %77 = arith.addf %75, %76 : vector<64x128xf32>
    %cst_46 = arith.constant 0.000000e+00 : f32
    %78 = vector.broadcast %cst_46 : f32 to vector<64x128xf32>
    %79 = arith.maximumf %77, %78 : vector<64x128xf32>
    %c1_i32_47 = arith.constant 1 : i32
    %80 = tpu.dynamic_rotate %79 by %c1_i32_47 dim 0 : vector<64x128xf32>, i32 -> vector<64x128xf32>
    %81 = arith.select %26, %80, %29 : vector<64x128xi1>, vector<64x128xf32>
    %c63_i32_48 = arith.constant 63 : i32
    %82 = tpu.dynamic_rotate %79 by %c63_i32_48 dim 0 : vector<64x128xf32>, i32 -> vector<64x128xf32>
    %83 = arith.select %28, %82, %29 : vector<64x128xi1>, vector<64x128xf32>
    %84 = tpu.concatenate %81, %79, %83 in 1 : vector<64x128xf32>, vector<64x128xf32>, vector<64x128xf32> -> vector<64x384xf32>
    %85 = arith.truncf %84 : vector<64x384xf32> to vector<64x384xbf16>
    %cst_49 = arith.constant dense<0.000000e+00> : vector<64x128xf32>
    %86 = tpu.matmul %85, %65, %cst_49 {dimension_numbers = #tpu.dot_dimension_numbers<[1], [0], [0], [1], [0, 0, 1, 1], [], []>} : vector<64x384xbf16>, vector<384x128xbf16>, vector<64x128xf32> -> vector<64x128xf32>
    %87 = vector.broadcast %66 : vector<1x128xf32> to vector<64x128xf32>
    %88 = arith.addf %86, %87 : vector<64x128xf32>
    %cst_50 = arith.constant 0.000000e+00 : f32
    %89 = vector.broadcast %cst_50 : f32 to vector<64x128xf32>
    %90 = arith.maximumf %88, %89 : vector<64x128xf32>
    %91 = arith.truncf %90 : vector<64x128xf32> to vector<64x128xbf16>
    %cst_51 = arith.constant dense<0.000000e+00> : vector<64x128xf32>
    %92 = tpu.matmul %91, %67, %cst_51 {dimension_numbers = #tpu.dot_dimension_numbers<[1], [0], [0], [1], [0, 0, 1, 1], [], []>} : vector<64x128xbf16>, vector<128x128xbf16>, vector<64x128xf32> -> vector<64x128xf32>
    %93 = vector.broadcast %68 : vector<1x128xf32> to vector<64x128xf32>
    %94 = arith.addf %92, %93 : vector<64x128xf32>
    %95 = arith.addf %62, %94 : vector<64x128xf32>
    %c0_52 = arith.constant 0 : index
    %c0_53 = arith.constant 0 : index
    %96 = vector.load %arg16[%c0_52, %c0_53] : memref<128x128xbf16, #tpu.memory_space<vmem>>, vector<128x128xbf16>
    %c0_54 = arith.constant 0 : index
    %c0_55 = arith.constant 0 : index
    %97 = vector.load %arg17[%c0_54, %c0_55] : memref<1x128xf32, #tpu.memory_space<vmem>>, vector<1x128xf32>
    %98 = arith.truncf %95 : vector<64x128xf32> to vector<64x128xbf16>
    %cst_56 = arith.constant dense<0.000000e+00> : vector<64x128xf32>
    %99 = tpu.matmul %98, %96, %cst_56 {dimension_numbers = #tpu.dot_dimension_numbers<[1], [0], [0], [1], [0, 0, 1, 1], [], []>} : vector<64x128xbf16>, vector<128x128xbf16>, vector<64x128xf32> -> vector<64x128xf32>
    %100 = vector.broadcast %97 : vector<1x128xf32> to vector<64x128xf32>
    %101 = arith.addf %99, %100 : vector<64x128xf32>
    %cst_57 = arith.constant 0.000000e+00 : f32
    %102 = vector.broadcast %cst_57 : f32 to vector<64x128xf32>
    %103 = arith.maximumf %101, %102 : vector<64x128xf32>
    %c0_58 = arith.constant 0 : index
    %c0_59 = arith.constant 0 : index
    %104 = vector.load %arg18[%c0_58, %c0_59] : memref<32x32xbf16, #tpu.memory_space<vmem>>, vector<32x32xbf16>
    %c0_60 = arith.constant 0 : index
    %c0_61 = arith.constant 0 : index
    %105 = vector.load %arg19[%c0_60, %c0_61] : memref<32x1xf32, #tpu.memory_space<vmem>>, vector<32x1xf32>
    %c0_62 = arith.constant 0 : index
    %c0_63 = arith.constant 0 : index
    %106 = vector.load %arg20[%c0_62, %c0_63] : memref<1x32xbf16, #tpu.memory_space<vmem>>, vector<1x32xbf16>
    %c0_64 = arith.constant 0 : index
    %c0_65 = arith.constant 0 : index
    %107 = vector.load %arg21[%c0_64, %c0_65] : memref<1x1xf32, #tpu.memory_space<vmem>>, vector<1x1xf32>
    %108 = vector.extract_strided_slice %103 {offsets = [0, 0], sizes = [32, 128], strides = [1, 1]} : vector<64x128xf32> to vector<32x128xf32>
    %109 = arith.truncf %108 : vector<32x128xf32> to vector<32x128xbf16>
    %cst_66 = arith.constant dense<0.000000e+00> : vector<32x128xf32>
    %110 = tpu.matmul %104, %109, %cst_66 {dimension_numbers = #tpu.dot_dimension_numbers<[1], [0], [0], [1], [0, 0, 1, 1], [], []>} : vector<32x32xbf16>, vector<32x128xbf16>, vector<32x128xf32> -> vector<32x128xf32>
    %111 = vector.broadcast %105 : vector<32x1xf32> to vector<32x128xf32>
    %112 = arith.addf %110, %111 : vector<32x128xf32>
    %cst_67 = arith.constant 0.000000e+00 : f32
    %113 = vector.broadcast %cst_67 : f32 to vector<32x128xf32>
    %114 = arith.maximumf %112, %113 : vector<32x128xf32>
    %115 = arith.truncf %114 : vector<32x128xf32> to vector<32x128xbf16>
    %cst_68 = arith.constant dense<0.000000e+00> : vector<1x128xf32>
    %116 = tpu.matmul %106, %115, %cst_68 {dimension_numbers = #tpu.dot_dimension_numbers<[1], [0], [0], [1], [0, 0, 1, 1], [], []>} : vector<1x32xbf16>, vector<32x128xbf16>, vector<1x128xf32> -> vector<1x128xf32>
    %117 = vector.broadcast %107 : vector<1x1xf32> to vector<1x128xf32>
    %118 = arith.addf %116, %117 : vector<1x128xf32>
    %119 = vector.extract_strided_slice %103 {offsets = [32, 0], sizes = [32, 128], strides = [1, 1]} : vector<64x128xf32> to vector<32x128xf32>
    %120 = arith.truncf %119 : vector<32x128xf32> to vector<32x128xbf16>
    %cst_69 = arith.constant dense<0.000000e+00> : vector<32x128xf32>
    %121 = tpu.matmul %104, %120, %cst_69 {dimension_numbers = #tpu.dot_dimension_numbers<[1], [0], [0], [1], [0, 0, 1, 1], [], []>} : vector<32x32xbf16>, vector<32x128xbf16>, vector<32x128xf32> -> vector<32x128xf32>
    %122 = vector.broadcast %105 : vector<32x1xf32> to vector<32x128xf32>
    %123 = arith.addf %121, %122 : vector<32x128xf32>
    %cst_70 = arith.constant 0.000000e+00 : f32
    %124 = vector.broadcast %cst_70 : f32 to vector<32x128xf32>
    %125 = arith.maximumf %123, %124 : vector<32x128xf32>
    %126 = arith.truncf %125 : vector<32x128xf32> to vector<32x128xbf16>
    %cst_71 = arith.constant dense<0.000000e+00> : vector<1x128xf32>
    %127 = tpu.matmul %106, %126, %cst_71 {dimension_numbers = #tpu.dot_dimension_numbers<[1], [0], [0], [1], [0, 0, 1, 1], [], []>} : vector<1x32xbf16>, vector<32x128xbf16>, vector<1x128xf32> -> vector<1x128xf32>
    %128 = vector.broadcast %107 : vector<1x1xf32> to vector<1x128xf32>
    %129 = arith.addf %127, %128 : vector<1x128xf32>
    %130 = tpu.concatenate %118, %129 in 0 : vector<1x128xf32>, vector<1x128xf32> -> vector<2x128xf32>
    %c0_72 = arith.constant 0 : index
    %c0_73 = arith.constant 0 : index
    %131 = vector.load %arg22[%c0_72, %c0_73] : memref<2x128xf32, #tpu.memory_space<vmem>>, vector<2x128xf32>
    tpu.vector_store %arg22[%c0_72, %c0_73], %130 {strides = array<i32>} : memref<2x128xf32, #tpu.memory_space<vmem>>, vector<2x128xf32>,
    return
  }
  func.func @transform_0(%arg0: i32) -> (i32, i32) {
    %c0_i32 = arith.constant 0 : i32
    %c0_i32_0 = arith.constant 0 : i32
    return %arg0, %c0_i32 : i32, i32
  }
  func.func @transform_1(%arg0: i32) -> (i32, i32) {
    %c0_i32 = arith.constant 0 : i32
    %c0_i32_0 = arith.constant 0 : i32
    %c0_i32_1 = arith.constant 0 : i32
    return %c0_i32, %c0_i32_0 : i32, i32
  }
  func.func @transform_2(%arg0: i32) -> (i32, i32) {
    %c0_i32 = arith.constant 0 : i32
    %c0_i32_0 = arith.constant 0 : i32
    %c0_i32_1 = arith.constant 0 : i32
    return %c0_i32, %c0_i32_0 : i32, i32
  }
  func.func @transform_3(%arg0: i32) -> (i32, i32) {
    %c0_i32 = arith.constant 0 : i32
    %c0_i32_0 = arith.constant 0 : i32
    %c0_i32_1 = arith.constant 0 : i32
    return %c0_i32, %c0_i32_0 : i32, i32
  }
  func.func @transform_4(%arg0: i32) -> (i32, i32) {
    %c0_i32 = arith.constant 0 : i32
    %c0_i32_0 = arith.constant 0 : i32
    %c0_i32_1 = arith.constant 0 : i32
    return %c0_i32, %c0_i32_0 : i32, i32
  }
  func.func @transform_5(%arg0: i32) -> (i32, i32) {
    %c0_i32 = arith.constant 0 : i32
    %c0_i32_0 = arith.constant 0 : i32
    %c0_i32_1 = arith.constant 0 : i32
    return %c0_i32, %c0_i32_0 : i32, i32
  }
  func.func @transform_6(%arg0: i32) -> (i32, i32) {
    %c0_i32 = arith.constant 0 : i32
    %c0_i32_0 = arith.constant 0 : i32
    %c0_i32_1 = arith.constant 0 : i32
    return %c0_i32, %c0_i32_0 : i32, i32
  }
  func.func @transform_7(%arg0: i32) -> (i32, i32) {
    %c0_i32 = arith.constant 0 : i32
    %c0_i32_0 = arith.constant 0 : i32
    %c0_i32_1 = arith.constant 0 : i32
    return %c0_i32, %c0_i32_0 : i32, i32
  }
  func.func @transform_8(%arg0: i32) -> (i32, i32) {
    %c0_i32 = arith.constant 0 : i32
    %c0_i32_0 = arith.constant 0 : i32
    %c0_i32_1 = arith.constant 0 : i32
    return %c0_i32, %c0_i32_0 : i32, i32
  }
  func.func @transform_9(%arg0: i32) -> (i32, i32) {
    %c0_i32 = arith.constant 0 : i32
    %c0_i32_0 = arith.constant 0 : i32
    %c0_i32_1 = arith.constant 0 : i32
    return %c0_i32, %c0_i32_0 : i32, i32
  }
  func.func @transform_10(%arg0: i32) -> (i32, i32) {
    %c0_i32 = arith.constant 0 : i32
    %c0_i32_0 = arith.constant 0 : i32
    %c0_i32_1 = arith.constant 0 : i32
    return %c0_i32, %c0_i32_0 : i32, i32
  }
  func.func @transform_11(%arg0: i32) -> (i32, i32) {
    %c0_i32 = arith.constant 0 : i32
    %c0_i32_0 = arith.constant 0 : i32
    %c0_i32_1 = arith.constant 0 : i32
    return %c0_i32, %c0_i32_0 : i32, i32
  }
  func.func @transform_12(%arg0: i32) -> (i32, i32) {
    %c0_i32 = arith.constant 0 : i32
    %c0_i32_0 = arith.constant 0 : i32
    %c0_i32_1 = arith.constant 0 : i32
    return %c0_i32, %c0_i32_0 : i32, i32
  }
  func.func @transform_13(%arg0: i32) -> (i32, i32) {
    %c0_i32 = arith.constant 0 : i32
    %c0_i32_0 = arith.constant 0 : i32
    %c0_i32_1 = arith.constant 0 : i32
    return %c0_i32, %c0_i32_0 : i32, i32
  }
  func.func @transform_14(%arg0: i32) -> (i32, i32) {
    %c0_i32 = arith.constant 0 : i32
    %c0_i32_0 = arith.constant 0 : i32
    %c0_i32_1 = arith.constant 0 : i32
    return %c0_i32, %c0_i32_0 : i32, i32
  }
  func.func @transform_15(%arg0: i32) -> (i32, i32) {
    %c0_i32 = arith.constant 0 : i32
    %c0_i32_0 = arith.constant 0 : i32
    %c0_i32_1 = arith.constant 0 : i32
    return %c0_i32, %c0_i32_0 : i32, i32
  }
  func.func @transform_16(%arg0: i32) -> (i32, i32) {
    %c0_i32 = arith.constant 0 : i32
    %c0_i32_0 = arith.constant 0 : i32
    %c0_i32_1 = arith.constant 0 : i32
    return %c0_i32, %c0_i32_0 : i32, i32
  }
  func.func @transform_17(%arg0: i32) -> (i32, i32) {
    %c0_i32 = arith.constant 0 : i32
    %c0_i32_0 = arith.constant 0 : i32
    %c0_i32_1 = arith.constant 0 : i32
    return %c0_i32, %c0_i32_0 : i32, i32
  }
  func.func @transform_18(%arg0: i32) -> (i32, i32) {
    %c0_i32 = arith.constant 0 : i32
    %c0_i32_0 = arith.constant 0 : i32
    %c0_i32_1 = arith.constant 0 : i32
    return %c0_i32, %c0_i32_0 : i32, i32
  }
  func.func @transform_19(%arg0: i32) -> (i32, i32) {
    %c0_i32 = arith.constant 0 : i32
    %c0_i32_0 = arith.constant 0 : i32
    %c0_i32_1 = arith.constant 0 : i32
    return %c0_i32, %c0_i32_0 : i32, i32
  }
  func.func @transform_20(%arg0: i32) -> (i32, i32) {
    %c0_i32 = arith.constant 0 : i32
    %c0_i32_0 = arith.constant 0 : i32
    %c0_i32_1 = arith.constant 0 : i32
    return %c0_i32, %c0_i32_0 : i32, i32
  }
  func.func @transform_21(%arg0: i32) -> (i32, i32) {
    %c0_i32 = arith.constant 0 : i32
    %c0_i32_0 = arith.constant 0 : i32
    return %arg0, %c0_i32 : i32, i32
  }
}

</mosaic_0001>

<llo_original>
// kernel: fmri_cat_forward.1
$region0: #{fmri_cat_forward.1}
  #allocation0 [shape = 'u32[]', space=smem, size = 0x4, offset = 0x4, fixed_abs, tag = 'smem constant byte address 0x4 - core index']
  #allocation1 [shape = 'u32[144,128]{1,0:T(1,128)}', space=vmem, size = 0x12000, scoped, tag = 'internal scratch']
  #allocation2 [shape = 'f32[1,1]{1,0:T(1,128)S(1)}', space=vmem, size = 0x200, scoped, tag = 'scoped memory for fmri_cat_forward.1']
  %s0 = inlined_call_operand.vmem [shape: f32[64,8], index: 0, kind: input, shape index: {}]
  %s1 = inlined_call_operand.vmem [shape: f32[8,128], index: 1, kind: input, shape index: {}]
  %s2 = inlined_call_operand.vmem [shape: f32[1,128], index: 2, kind: input, shape index: {}]
  %s3 = inlined_call_operand.vmem [shape: bf16[384,128], index: 3, kind: input, shape index: {}]
  %s4 = inlined_call_operand.hbm [shape: f32[1,128], index: 4, kind: input, shape index: {}]
  %s5 = inlined_call_operand.vmem [shape: bf16[384,128], index: 5, kind: input, shape index: {}]
  %s6 = inlined_call_operand.hbm [shape: f32[1,128], index: 6, kind: input, shape index: {}]
  %s7 = inlined_call_operand.hbm [shape: bf16[128,128], index: 7, kind: input, shape index: {}]
  %s8 = inlined_call_operand.hbm [shape: f32[1,128], index: 8, kind: input, shape index: {}]
  %s9 = inlined_call_operand.vmem [shape: bf16[384,128], index: 9, kind: input, shape index: {}]
  %s10 = inlined_call_operand.hbm [shape: f32[1,128], index: 10, kind: input, shape index: {}]
  %s11 = inlined_call_operand.vmem [shape: bf16[384,128], index: 11, kind: input, shape index: {}]
  %s12 = inlined_call_operand.vmem [shape: f32[1,128], index: 12, kind: input, shape index: {}]
  %s13 = inlined_call_operand.hbm [shape: bf16[128,128], index: 13, kind: input, shape index: {}]
  %s14 = inlined_call_operand.vmem [shape: f32[1,128], index: 14, kind: input, shape index: {}]
  %s15 = inlined_call_operand.hbm [shape: bf16[128,128], index: 15, kind: input, shape index: {}]
  %s16 = inlined_call_operand.hbm [shape: f32[1,128], index: 16, kind: input, shape index: {}]
  %s17 = inlined_call_operand.hbm [shape: bf16[32,32], index: 17, kind: input, shape index: {}]
  %s18 = inlined_call_operand.vmem [shape: f32[32,1], index: 18, kind: input, shape index: {}]
  %s19 = inlined_call_operand.hbm [shape: bf16[1,32], index: 19, kind: input, shape index: {}]
  %s20 = inlined_call_operand.<no memory space> [shape: f32[1,1], index: 20, kind: input, shape index: {}]
  %s21 = inlined_call_operand.hbm [shape: f32[2,128], index: 21, kind: output, shape index: {}]
  %s22 = sld [smem:[#allocation0]]
  $region134: #{fmri_cat_forward.1} parent=0
    _
  %s24 = ssub.s32 1, %s22
  %s25 = scalar_select 0, %s24, %s22
  %v26 = vstv %s20
  %27 = vst [vmem:[#allocation2] sm:$0x1] %v26
  $region1: #{fmri_cat_forward.1} parent=0
    #allocation3 [shape = 'u8[512]{0}', space=vmem, size = 0x400, scoped, tag = 'input window, operand 4, single buffered']
    #allocation4 [shape = 's32[1]{0}', space=sflag, size = 0x4, scoped, tag = 'scoped memory for fmri_cat_forward.1']
    #allocation5 [shape = 's32[1]{0}', space=sflag, size = 0x4, scoped, tag = 'scoped memory for fmri_cat_forward.1']
    #allocation6 [shape = 'u8[512]{0}', space=vmem, size = 0x400, scoped, tag = 'input window, operand 6, single buffered']
    #allocation7 [shape = 's32[1]{0}', space=sflag, size = 0x4, scoped, tag = 'scoped memory for fmri_cat_forward.1']
    #allocation8 [shape = 'u8[32768]{0}', space=vmem, size = 0x8000, scoped, tag = 'input window, operand 7, single buffered']
    #allocation9 [shape = 'u8[512]{0}', space=vmem, size = 0x400, scoped, tag = 'input window, operand 8, single buffered']
    #allocation10 [shape = 's32[1]{0}', space=sflag, size = 0x4, scoped, tag = 'scoped memory for fmri_cat_forward.1']
    #allocation11 [shape = 'u8[512]{0}', space=vmem, size = 0x400, scoped, tag = 'input window, operand 10, single buffered']
    #allocation12 [shape = 'u8[32768]{0}', space=vmem, size = 0x8000, scoped, tag = 'input window, operand 13, single buffered']
    #allocation13 [shape = 's32[1]{0}', space=sflag, size = 0x4, scoped, tag = 'scoped memory for fmri_cat_forward.1']
    #allocation14 [shape = 'u8[32768]{0}', space=vmem, size = 0x8000, scoped, tag = 'input window, operand 15, single buffered']
    #allocation15 [shape = 'u8[512]{0}', space=vmem, size = 0x400, scoped, tag = 'input window, operand 16, single buffered']
    #allocation16 [shape = 's32[1]{0}', space=sflag, size = 0x4, scoped, tag = 'scoped memory for fmri_cat_forward.1']
    #allocation17 [shape = 'u8[8192]{0}', space=vmem, size = 0x2000, scoped, tag = 'input window, operand 17, single buffered']
    #allocation18 [shape = 'u8[512]{0}', space=vmem, size = 0x400, scoped, tag = 'input window, operand 19, single buffered']
    #allocation19 [shape = 's32[1]{0}', space=sflag, size = 0x4, scoped, tag = 'scoped memory for fmri_cat_forward.1']
    #allocation20 [shape = 'u8[1024]{0}', space=vmem, size = 0x400, scoped, tag = 'output window, operand 0, single buffered']
    %28 = vsyncpa [#allocation4], 0
    %29 = vsyncpa [#allocation7], 0
    %30 = vsyncpa [#allocation10], 0
    %31 = vsyncpa [#allocation13], 0
    %32 = vsyncpa [#allocation16], 0
    %33 = vsyncpa [#allocation19], 0
    %34 = vsyncpa [#allocation5], 0
    // Predicated region
    $region2: #{fmri_cat_forward.1} parent=1 // pred_check
      _
    $region3: #{fmri_cat_forward.1} parent=1 // pred_check_branch
      %36 = sbr.rel (0) target = $region5
    $region4: #{fmri_cat_forward.1} parent=1 // pred_region
      _
    $region5: #{fmri_cat_forward.1} parent=1 // pred_fallthru
      _
    // Predicated region
    $region6: #{fmri_cat_forward.1} parent=1 // pred_check
      _
    $region7: #{fmri_cat_forward.1} parent=1 // pred_check_branch
      %38 = sbr.rel (0) target = $region9
    $region8: #{fmri_cat_forward.1} parent=1 // pred_region
      _
    $region9: #{fmri_cat_forward.1} parent=1 // pred_fallthru
      _
    // Predicated region
    $region10: #{fmri_cat_forward.1} parent=1 // pred_check
      _
    $region11: #{fmri_cat_forward.1} parent=1 // pred_check_branch
      %40 = sbr.rel (0) target = $region13
    $region12: #{fmri_cat_forward.1} parent=1 // pred_region
      _
    $region13: #{fmri_cat_forward.1} parent=1 // pred_fallthru
      _
    // Predicated region
    $region14: #{fmri_cat_forward.1} parent=1 // pred_check
      _
    $region15: #{fmri_cat_forward.1} parent=1 // pred_check_branch
      %42 = sbr.rel (0) target = $region17
    $region16: #{fmri_cat_forward.1} parent=1 // pred_region
      _
    $region17: #{fmri_cat_forward.1} parent=1 // pred_fallthru
      _
    // Predicated region
    $region18: #{fmri_cat_forward.1} parent=1 // pred_check
      _
    $region19: #{fmri_cat_forward.1} parent=1 // pred_check_branch
      %44 = sbr.rel (0) target = $region21
    $region20: #{fmri_cat_forward.1} parent=1 // pred_region
      %s46 = ssub.s32 16, 16
      %47 = vsyncadd [#allocation4], %s46
      %s49 = sshll.u32 [#allocation3], 4
      %s50 = int_to_ptr.vmem [resolvable:$true] %s49
      %52 = dma.hbm_to_vmem [thread:$0]  %s4, 16, %s50, [#allocation4]
    $region21: #{fmri_cat_forward.1} parent=1 // pred_fallthru
      _
    // Predicated region
    $region22: #{fmri_cat_forward.1} parent=1 // pred_check
      _
    $region23: #{fmri_cat_forward.1} parent=1 // pred_check_branch
      %54 = sbr.rel (0) target = $region25
    $region24: #{fmri_cat_forward.1} parent=1 // pred_region
      _
    $region25: #{fmri_cat_forward.1} parent=1 // pred_fallthru
      _
    // Predicated region
    $region26: #{fmri_cat_forward.1} parent=1 // pred_check
      _
    $region27: #{fmri_cat_forward.1} parent=1 // pred_check_branch
      %56 = sbr.rel (0) target = $region29
    $region28: #{fmri_cat_forward.1} parent=1 // pred_region
      %s58 = ssub.s32 16, 16
      %59 = vsyncadd [#allocation7], %s58
      %s61 = sshll.u32 [#allocation6], 4
      %s62 = int_to_ptr.vmem [resolvable:$true] %s61
      %64 = dma.hbm_to_vmem [thread:$0]  %s6, 16, %s62, [#allocation7]
    $region29: #{fmri_cat_forward.1} parent=1 // pred_fallthru
      _
    // Predicated region
    $region30: #{fmri_cat_forward.1} parent=1 // pred_check
      _
    $region31: #{fmri_cat_forward.1} parent=1 // pred_check_branch
      %66 = sbr.rel (0) target = $region33
    $region32: #{fmri_cat_forward.1} parent=1 // pred_region
      %s68 = ssub.s32 1024, 1024
      %69 = vsyncadd [#allocation7], %s68
      %s70 = sshll.u32 [#allocation8], 4
      %s71 = int_to_ptr.vmem [resolvable:$true] %s70
      %76 = dma.hbm_to_vmem [thread:$0]  %s7, 1024, %s71, [#allocation7], 64, 64, 4
    $region33: #{fmri_cat_forward.1} parent=1 // pred_fallthru
      _
    // Predicated region
    $region34: #{fmri_cat_forward.1} parent=1 // pred_check
      _
    $region35: #{fmri_cat_forward.1} parent=1 // pred_check_branch
      %78 = sbr.rel (0) target = $region37
    $region36: #{fmri_cat_forward.1} parent=1 // pred_region
      %s80 = ssub.s32 16, 16
      %81 = vsyncadd [#allocation10], %s80
      %s83 = sshll.u32 [#allocation9], 4
      %s84 = int_to_ptr.vmem [resolvable:$true] %s83
      %86 = dma.hbm_to_vmem [thread:$0]  %s8, 16, %s84, [#allocation10]
    $region37: #{fmri_cat_forward.1} parent=1 // pred_fallthru
      _
    // Predicated region
    $region38: #{fmri_cat_forward.1} parent=1 // pred_check
      _
    $region39: #{fmri_cat_forward.1} parent=1 // pred_check_branch
      %88 = sbr.rel (0) target = $region41
    $region40: #{fmri_cat_forward.1} parent=1 // pred_region
      _
    $region41: #{fmri_cat_forward.1} parent=1 // pred_fallthru
      _
    // Predicated region
    $region42: #{fmri_cat_forward.1} parent=1 // pred_check
      _
    $region43: #{fmri_cat_forward.1} parent=1 // pred_check_branch
      %90 = sbr.rel (0) target = $region45
    $region44: #{fmri_cat_forward.1} parent=1 // pred_region
      %s92 = ssub.s32 16, 16
      %93 = vsyncadd [#allocation10], %s92
      %s95 = sshll.u32 [#allocation11], 4
      %s96 = int_to_ptr.vmem [resolvable:$true] %s95
      %98 = dma.hbm_to_vmem [thread:$0]  %s10, 16, %s96, [#allocation10]
    $region45: #{fmri_cat_forward.1} parent=1 // pred_fallthru
      _
    // Predicated region
    $region46: #{fmri_cat_forward.1} parent=1 // pred_check
      _
    $region47: #{fmri_cat_forward.1} parent=1 // pred_check_branch
      %100 = sbr.rel (0) target = $region49
    $region48: #{fmri_cat_forward.1} parent=1 // pred_region
      _
    $region49: #{fmri_cat_forward.1} parent=1 // pred_fallthru
      _
    // Predicated region
    $region50: #{fmri_cat_forward.1} parent=1 // pred_check
      _
    $region51: #{fmri_cat_forward.1} parent=1 // pred_check_branch
      %102 = sbr.rel (0) target = $region53
    $region52: #{fmri_cat_forward.1} parent=1 // pred_region
      _
    $region53: #{fmri_cat_forward.1} parent=1 // pred_fallthru
      _
    // Predicated region
    $region54: #{fmri_cat_forward.1} parent=1 // pred_check
      _
    $region55: #{fmri_cat_forward.1} parent=1 // pred_check_branch
      %104 = sbr.rel (0) target = $region57
    $region56: #{fmri_cat_forward.1} parent=1 // pred_region
      %s106 = ssub.s32 1024, 1024
      %107 = vsyncadd [#allocation13], %s106
      %s108 = sshll.u32 [#allocation12], 4
      %s109 = int_to_ptr.vmem [resolvable:$true] %s108
      %114 = dma.hbm_to_vmem [thread:$0]  %s13, 1024, %s109, [#allocation13], 64, 64, 4
    $region57: #{fmri_cat_forward.1} parent=1 // pred_fallthru
      _
    // Predicated region
    $region58: #{fmri_cat_forward.1} parent=1 // pred_check
      _
    $region59: #{fmri_cat_forward.1} parent=1 // pred_check_branch
      %116 = sbr.rel (0) target = $region61
    $region60: #{fmri_cat_forward.1} parent=1 // pred_region
      _
    $region61: #{fmri_cat_forward.1} parent=1 // pred_fallthru
      _
    // Predicated region
    $region62: #{fmri_cat_forward.1} parent=1 // pred_check
      _
    $region63: #{fmri_cat_forward.1} parent=1 // pred_check_branch
      %118 = sbr.rel (0) target = $region65
    $region64: #{fmri_cat_forward.1} parent=1 // pred_region
      %s120 = ssub.s32 1024, 1024
      %121 = vsyncadd [#allocation13], %s120
      %s122 = sshll.u32 [#allocation14], 4
      %s123 = int_to_ptr.vmem [resolvable:$true] %s122
      %128 = dma.hbm_to_vmem [thread:$0]  %s15, 1024, %s123, [#allocation13], 64, 64, 4
    $region65: #{fmri_cat_forward.1} parent=1 // pred_fallthru
      _
    // Predicated region
    $region66: #{fmri_cat_forward.1} parent=1 // pred_check
      _
    $region67: #{fmri_cat_forward.1} parent=1 // pred_check_branch
      %130 = sbr.rel (0) target = $region69
    $region68: #{fmri_cat_forward.1} parent=1 // pred_region
      %s132 = ssub.s32 16, 16
      %133 = vsyncadd [#allocation16], %s132
      %s135 = sshll.u32 [#allocation15], 4
      %s136 = int_to_ptr.vmem [resolvable:$true] %s135
      %138 = dma.hbm_to_vmem [thread:$0]  %s16, 16, %s136, [#allocation16]
    $region69: #{fmri_cat_forward.1} parent=1 // pred_fallthru
      _
    // Predicated region
    $region70: #{fmri_cat_forward.1} parent=1 // pred_check
      _
    $region71: #{fmri_cat_forward.1} parent=1 // pred_check_branch
      %140 = sbr.rel (0) target = $region73
    $region72: #{fmri_cat_forward.1} parent=1 // pred_region
      %s142 = ssub.s32 256, 256
      %143 = vsyncadd [#allocation16], %s142
      %s144 = sshll.u32 [#allocation17], 4
      %s145 = int_to_ptr.vmem [resolvable:$true] %s144
      %150 = dma.hbm_to_vmem [thread:$0]  %s17, 256, %s145, [#allocation16], 64, 64, 4
    $region73: #{fmri_cat_forward.1} parent=1 // pred_fallthru
      _
    // Predicated region
    $region74: #{fmri_cat_forward.1} parent=1 // pred_check
      _
    $region75: #{fmri_cat_forward.1} parent=1 // pred_check_branch
      %152 = sbr.rel (0) target = $region77
    $region76: #{fmri_cat_forward.1} parent=1 // pred_region
      _
    $region77: #{fmri_cat_forward.1} parent=1 // pred_fallthru
      _
    // Predicated region
    $region78: #{fmri_cat_forward.1} parent=1 // pred_check
      _
    $region79: #{fmri_cat_forward.1} parent=1 // pred_check_branch
      %154 = sbr.rel (0) target = $region81
    $region80: #{fmri_cat_forward.1} parent=1 // pred_region
      %s156 = ssub.s32 16, 16
      %157 = vsyncadd [#allocation19], %s156
      %s159 = sshll.u32 [#allocation18], 4
      %s160 = int_to_ptr.vmem [resolvable:$true] %s159
      %162 = dma.hbm_to_vmem [thread:$0]  %s19, 16, %s160, [#allocation19]
    $region81: #{fmri_cat_forward.1} parent=1 // pred_fallthru
      _
    // Predicated region
    $region82: #{fmri_cat_forward.1} parent=1 // pred_check
      _
    $region83: #{fmri_cat_forward.1} parent=1 // pred_check_branch
      %164 = sbr.rel (0) target = $region85
    $region84: #{fmri_cat_forward.1} parent=1 // pred_region
      _
    $region85: #{fmri_cat_forward.1} parent=1 // pred_fallthru
      _
    // Predicated region
    $region86: #{fmri_cat_forward.1} parent=1 // pred_check
      _
    $region87: #{fmri_cat_forward.1} parent=1 // pred_check_branch
      %166 = sbr.rel (0) target = $region89
    $region88: #{fmri_cat_forward.1} parent=1 // pred_region
      %167 = dma.done [#allocation4], 16
    $region89: #{fmri_cat_forward.1} parent=1 // pred_fallthru
      _
    // Predicated region
    $region90: #{fmri_cat_forward.1} parent=1 // pred_check
      _
    $region91: #{fmri_cat_forward.1} parent=1 // pred_check_branch
      %169 = sbr.rel (0) target = $region93
    $region92: #{fmri_cat_forward.1} parent=1 // pred_region
      %170 = dma.done [#allocation7], 16
    $region93: #{fmri_cat_forward.1} parent=1 // pred_fallthru
      _
    // Predicated region
    $region94: #{fmri_cat_forward.1} parent=1 // pred_check
      _
    $region95: #{fmri_cat_forward.1} parent=1 // pred_check_branch
      %172 = sbr.rel (0) target = $region97
    $region96: #{fmri_cat_forward.1} parent=1 // pred_region
      %173 = dma.done [#allocation7], 1024
    $region97: #{fmri_cat_forward.1} parent=1 // pred_fallthru
      _
    // Predicated region
    $region98: #{fmri_cat_forward.1} parent=1 // pred_check
      _
    $region99: #{fmri_cat_forward.1} parent=1 // pred_check_branch
      %175 = sbr.rel (0) target = $region101
    $region100: #{fmri_cat_forward.1} parent=1 // pred_region
      %176 = dma.done [#allocation10], 16
    $region101: #{fmri_cat_forward.1} parent=1 // pred_fallthru
      _
    // Predicated region
    $region102: #{fmri_cat_forward.1} parent=1 // pred_check
      _
    $region103: #{fmri_cat_forward.1} parent=1 // pred_check_branch
      %178 = sbr.rel (0) target = $region105
    $region104: #{fmri_cat_forward.1} parent=1 // pred_region
      %179 = dma.done [#allocation10], 16
    $region105: #{fmri_cat_forward.1} parent=1 // pred_fallthru
      _
    // Predicated region
    $region106: #{fmri_cat_forward.1} parent=1 // pred_check
      _
    $region107: #{fmri_cat_forward.1} parent=1 // pred_check_branch
      %181 = sbr.rel (0) target = $region109
    $region108: #{fmri_cat_forward.1} parent=1 // pred_region
      %182 = dma.done [#allocation13], 1024
    $region109: #{fmri_cat_forward.1} parent=1 // pred_fallthru
      _
    // Predicated region
    $region110: #{fmri_cat_forward.1} parent=1 // pred_check
      _
    $region111: #{fmri_cat_forward.1} parent=1 // pred_check_branch
      %184 = sbr.rel (0) target = $region113
    $region112: #{fmri_cat_forward.1} parent=1 // pred_region
      %185 = dma.done [#allocation13], 1024
    $region113: #{fmri_cat_forward.1} parent=1 // pred_fallthru
      _
    // Predicated region
    $region114: #{fmri_cat_forward.1} parent=1 // pred_check
      _
    $region115: #{fmri_cat_forward.1} parent=1 // pred_check_branch
      %187 = sbr.rel (0) target = $region117
    $region116: #{fmri_cat_forward.1} parent=1 // pred_region
      %188 = dma.done [#allocation16], 16
    $region117: #{fmri_cat_forward.1} parent=1 // pred_fallthru
      _
    // Predicated region
    $region118: #{fmri_cat_forward.1} parent=1 // pred_check
      _
    $region119: #{fmri_cat_forward.1} parent=1 // pred_check_branch
      %190 = sbr.rel (0) target = $region121
    $region120: #{fmri_cat_forward.1} parent=1 // pred_region
      %191 = dma.done [#allocation16], 256
    $region121: #{fmri_cat_forward.1} parent=1 // pred_fallthru
      _
    // Predicated region
    $region122: #{fmri_cat_forward.1} parent=1 // pred_check
      _
    $region123: #{fmri_cat_forward.1} parent=1 // pred_check_branch
      %193 = sbr.rel (0) target = $region125
    $region124: #{fmri_cat_forward.1} parent=1 // pred_region
      %194 = dma.done [#allocation19], 16
    $region125: #{fmri_cat_forward.1} parent=1 // pred_fallthru
      _
    %v196 = vld [vmem:[%s1] sm:$0xff]
    %v197 = vld [vmem:[%s2] sm:$0x1]
    %v198 = vld [vmem:[%s0] sm:$0xff]
    %v199 = vld [vmem:[%s0 + $0x8] sm:$0xff]
    %v200 = vld [vmem:[%s0 + $0x10] sm:$0xff]
    %v201 = vld [vmem:[%s0 + $0x18] sm:$0xff]
    %v202 = vld [vmem:[%s0 + $0x20] sm:$0xff]
    %v203 = vld [vmem:[%s0 + $0x28] sm:$0xff]
    %v204 = vld [vmem:[%s0 + $0x30] sm:$0xff]
    %v205 = vld [vmem:[%s0 + $0x38] sm:$0xff]
    %v207 = vlaneseq
    %v208 = vshrl.u32 %v207, 7
    %v209 = vsub.s32 0, %v208
    %v210 = vrot.slane %v197, %v209
    %vm212 = vcmask 64512
    %v214 = vsel %vm212, %v198, 0
    %v217 = vsel %vm212, %v199, 0
    %v220 = vsel %vm212, %v200, 0
    %v223 = vsel %vm212, %v201, 0
    %v226 = vsel %vm212, %v202, 0
    %v229 = vsel %vm212, %v203, 0
    %v232 = vsel %vm212, %v204, 0
    %v235 = vsel %vm212, %v205, 0
    %237 = vmatprep.subr.mxu0 0.0
    %238 = vmatpush1.msra.mxu0 %v196
    %239 = vmatprep.subr.mxu0 0.0
    %240 = vmatpush1.msra.mxu0 0.0
    %241 = vmatprep.subr.mxu0 0.0
    %242 = vmatpush1.msra.mxu0 0.0
    %243 = vmatprep.subr.mxu0 0.0
    %244 = vmatpush1.msra.mxu0 0.0
    %245 = vmatprep.subr.mxu0 0.0
    %246 = vmatpush1.msra.mxu0 0.0
    %247 = vmatprep.subr.mxu0 0.0
    %248 = vmatpush1.msra.mxu0 0.0
    %249 = vmatprep.subr.mxu0 0.0
    %250 = vmatpush1.msra.mxu0 0.0
    %251 = vmatprep.subr.mxu0 0.0
    %252 = vmatpush1.msra.mxu0 0.0
    %253 = vmatprep.subr.mxu0 0.0
    %254 = vmatpush1.msra.mxu0 0.0
    %255 = vmatprep.subr.mxu0 0.0
    %256 = vmatpush1.msra.mxu0 0.0
    %257 = vmatprep.subr.mxu0 0.0
    %258 = vmatpush1.msra.mxu0 0.0
    %259 = vmatprep.subr.mxu0 0.0
    %260 = vmatpush1.msra.mxu0 0.0
    %261 = vmatprep.subr.mxu0 0.0
    %262 = vmatpush1.msra.mxu0 0.0
    %263 = vmatprep.subr.mxu0 0.0
    %264 = vmatpush1.msra.mxu0 0.0
    %265 = vmatprep.subr.mxu0 0.0
    %266 = vmatpush1.msra.mxu0 0.0
    %267 = vmatprep.subr.mxu0 0.0
    %268 = vmatpush1.msra.mxu0 0.0
    %269 = vmatprep.subr.mxu0 0.0
    %270 = vmatpush1.msra.mxu0 0.0
    %271 = vmatprep.subr.mxu0 0.0
    %272 = vmatpush1.msra.mxu0 0.0
    %273 = vmatprep.subr.mxu0 0.0
    %274 = vmatpush1.msra.mxu0 0.0
    %275 = vmatprep.subr.mxu0 0.0
    %276 = vmatpush1.msra.mxu0 0.0
    %277 = vmatprep.subr.mxu0 0.0
    %278 = vmatpush1.msra.mxu0 0.0
    %279 = vmatprep.subr.mxu0 0.0
    %280 = vmatpush1.msra.mxu0 0.0
    %281 = vmatprep.subr.mxu0 0.0
    %282 = vmatpush1.msra.mxu0 0.0
    %283 = vmatprep.subr.mxu0 0.0
    %284 = vmatpush1.msra.mxu0 0.0
    %285 = vmatprep.subr.mxu0 0.0
    %286 = vmatpush1.msra.mxu0 0.0
    %287 = vmatprep.subr.mxu0 0.0
    %288 = vmatpush1.msra.mxu0 0.0
    %289 = vmatprep.subr.mxu0 0.0
    %290 = vmatpush1.msra.mxu0 0.0
    %291 = vmatprep.subr.mxu0 0.0
    %292 = vmatpush1.msra.mxu0 0.0
    %293 = vmatprep.subr.mxu0 0.0
    %294 = vmatpush1.msra.mxu0 0.0
    %295 = vmatprep.subr.mxu0 0.0
    %296 = vmatpush1.msra.mxu0 0.0
    %297 = vmatprep.subr.mxu0 0.0
    %298 = vmatpush1.msra.mxu0 0.0
    %299 = vmatprep.subr.mxu0 0.0
    %300 = vmatpush1.msra.mxu0 0.0
    %301 = vmatprep.mubr.f32.mxu0 0.0
    %302 = vmatmul.mubr.f32.gmra.mrb[0].mxu0 %v214
    %v303 = vpop.f32.mrb[0].mxu0
    %v304 = vadd.f32 %v210, %v303
    %v305 = vpop.f32.mrb[0].mxu0
    %306 = vmatprep.mubr.f32.mxu0 0.0
    %307 = vmatmul.mubr.f32.gmra.mrb[0].mxu0 %v217
    %v308 = vpop.f32.mrb[0].mxu0
    %v309 = vadd.f32 %v210, %v308
    %v310 = vpop.f32.mrb[0].mxu0
    %311 = vmatprep.mubr.f32.mxu0 0.0
    %312 = vmatmul.mubr.f32.gmra.mrb[0].mxu0 %v220
    %v313 = vpop.f32.mrb[0].mxu0
    %v314 = vadd.f32 %v210, %v313
    %v315 = vpop.f32.mrb[0].mxu0
    %316 = vmatprep.mubr.f32.mxu0 0.0
    %317 = vmatmul.mubr.f32.gmra.mrb[0].mxu0 %v223
    %v318 = vpop.f32.mrb[0].mxu0
    %v319 = vadd.f32 %v210, %v318
    %v320 = vpop.f32.mrb[0].mxu0
    %321 = vmatprep.mubr.f32.mxu0 0.0
    %322 = vmatmul.mubr.f32.gmra.mrb[0].mxu0 %v226
    %v323 = vpop.f32.mrb[0].mxu0
    %v324 = vadd.f32 %v210, %v323
    %v325 = vpop.f32.mrb[0].mxu0
    %326 = vmatprep.mubr.f32.mxu0 0.0
    %327 = vmatmul.mubr.f32.gmra.mrb[0].mxu0 %v229
    %v328 = vpop.f32.mrb[0].mxu0
    %v329 = vadd.f32 %v210, %v328
    %v330 = vpop.f32.mrb[0].mxu0
    %331 = vmatprep.mubr.f32.mxu0 0.0
    %332 = vmatmul.mubr.f32.gmra.mrb[0].mxu0 %v232
    %v333 = vpop.f32.mrb[0].mxu0
    %v334 = vadd.f32 %v210, %v333
    %v335 = vpop.f32.mrb[0].mxu0
    %336 = vmatprep.mubr.f32.mxu0 0.0
    %337 = vmatmul.mubr.f32.gmra.mrb[0].mxu0 %v235
    %v338 = vpop.f32.mrb[0].mxu0
    %v339 = vadd.f32 %v210, %v338
    %v340 = vpop.f32.mrb[0].mxu0
    %341 = vdwg.mxu0
    %v342 = vmax.f32 %v304, 0.0
    %v343 = vmax.f32 %v309, 0.0
    %v344 = vmax.f32 %v314, 0.0
    %v345 = vmax.f32 %v319, 0.0
    %v346 = vmax.f32 %v324, 0.0
    %v347 = vmax.f32 %v329, 0.0
    %v348 = vmax.f32 %v334, 0.0
    %v349 = vmax.f32 %v339, 0.0
    %v350 = vlaneseq
    %v351 = vshrl.u32 %v350, 7
    %v352 = vadd.s32 %v351, 8
    %v353 = vadd.s32 %v351, 16
    %v354 = vadd.s32 %v351, 24
    %v355 = vadd.s32 %v351, 32
    %v356 = vadd.s32 %v351, 40
    %v357 = vadd.s32 %v351, 48
    %v358 = vadd.s32 %v351, 56
    %vm359 = vcmp.lt.s32.totalorder %v351, 0
    %v360 = vsub.s32 0, %v351
    %v361 = vsel %vm359, %v360, %v351
    %v362 = vshrl.u32 %v361, 5
    %v363 = vand.u32 %v361, 31
    %v364 = vsub.s32 0, %v363
    %v365 = vsel %vm359, %v364, %v363
    %vm366 = vcmp.lt.s32.totalorder %v352, 0
    %v367 = vsub.s32 0, %v352
    %v368 = vsel %vm366, %v367, %v352
    %v369 = vshrl.u32 %v368, 5
    %v370 = vand.u32 %v368, 31
    %v371 = vsub.s32 0, %v370
    %v372 = vsel %vm366, %v371, %v370
    %vm373 = vcmp.lt.s32.totalorder %v353, 0
    %v374 = vsub.s32 0, %v353
    %v375 = vsel %vm373, %v374, %v353
    %v376 = vshrl.u32 %v375, 5
    %v377 = vand.u32 %v375, 31
    %v378 = vsub.s32 0, %v377
    %v379 = vsel %vm373, %v378, %v377
    %vm380 = vcmp.lt.s32.totalorder %v354, 0
    %v381 = vsub.s32 0, %v354
    %v382 = vsel %vm380, %v381, %v354
    %v383 = vshrl.u32 %v382, 5
    %v384 = vand.u32 %v382, 31
    %v385 = vsub.s32 0, %v384
    %v386 = vsel %vm380, %v385, %v384
    %vm387 = vcmp.lt.s32.totalorder %v355, 0
    %v388 = vsub.s32 0, %v355
    %v389 = vsel %vm387, %v388, %v355
    %v390 = vshrl.u32 %v389, 5
    %v391 = vand.u32 %v389, 31
    %v392 = vsub.s32 0, %v391
    %v393 = vsel %vm387, %v392, %v391
    %vm394 = vcmp.lt.s32.totalorder %v356, 0
    %v395 = vsub.s32 0, %v356
    %v396 = vsel %vm394, %v395, %v356
    %v397 = vshrl.u32 %v396, 5
    %v398 = vand.u32 %v396, 31
    %v399 = vsub.s32 0, %v398
    %v400 = vsel %vm394, %v399, %v398
    %vm401 = vcmp.lt.s32.totalorder %v357, 0
    %v402 = vsub.s32 0, %v357
    %v403 = vsel %vm401, %v402, %v357
    %v404 = vshrl.u32 %v403, 5
    %v405 = vand.u32 %v403, 31
    %v406 = vsub.s32 0, %v405
    %v407 = vsel %vm401, %v406, %v405
    %vm408 = vcmp.lt.s32.totalorder %v358, 0
    %v409 = vsub.s32 0, %v358
    %v410 = vsel %vm408, %v409, %v358
    %v411 = vshrl.u32 %v410, 5
    %v412 = vand.u32 %v410, 31
    %v413 = vsub.s32 0, %v412
    %v414 = vsel %vm408, %v413, %v412
    %vm415 = vcmp.ne.s32.totalorder %v365, 0
    %vm416 = vcmp.ne.s32.totalorder %v372, 0
    %vm417 = vcmp.ne.s32.totalorder %v379, 0
    %vm418 = vcmp.ne.s32.totalorder %v386, 0
    %vm419 = vcmp.ne.s32.totalorder %v393, 0
    %vm420 = vcmp.ne.s32.totalorder %v400, 0
    %vm421 = vcmp.ne.s32.totalorder %v407, 0
    %vm422 = vcmp.ne.s32.totalorder %v414, 0
    %vm423 = vcmp.lt.s32.totalorder %v365, 0
    %vm424 = vcmp.lt.s32.totalorder %v372, 0
    %vm425 = vcmp.lt.s32.totalorder %v379, 0
    %vm426 = vcmp.lt.s32.totalorder %v386, 0
    %vm427 = vcmp.lt.s32.totalorder %v393, 0
    %vm428 = vcmp.lt.s32.totalorder %v400, 0
    %vm429 = vcmp.lt.s32.totalorder %v407, 0
    %vm430 = vcmp.lt.s32.totalorder %v414, 0
    %vm431 = vmand %vm423, %vm415
    %vm432 = vmand %vm424, %vm416
    %vm433 = vmand %vm425, %vm417
    %vm434 = vmand %vm426, %vm418
    %vm435 = vmand %vm427, %vm419
    %vm436 = vmand %vm428, %vm420
    %vm437 = vmand %vm429, %vm421
    %vm438 = vmand %vm430, %vm422
    %v439 = vadd.s32 %v365, 32
    %v440 = vadd.s32 %v372, 32
    %v441 = vadd.s32 %v379, 32
    %v442 = vadd.s32 %v386, 32
    %v443 = vadd.s32 %v393, 32
    %v444 = vadd.s32 %v400, 32
    %v445 = vadd.s32 %v407, 32
    %v446 = vadd.s32 %v414, 32
    %v447 = vsel %vm431, %v439, %v365
    %v448 = vsel %vm432, %v440, %v372
    %v449 = vsel %vm433, %v441, %v379
    %v450 = vsel %vm434, %v442, %v386
    %v451 = vsel %vm435, %v443, %v393
    %v452 = vsel %vm436, %v444, %v400
    %v453 = vsel %vm437, %v445, %v407
    %v454 = vsel %vm438, %v446, %v414
    %vm455 = vcmp.gt.s32.totalorder %v447, 0
    %vm456 = vcmp.gt.s32.totalorder %v448, 0
    %vm457 = vcmp.gt.s32.totalorder %v449, 0
    %vm458 = vcmp.gt.s32.totalorder %v450, 0
    %vm459 = vcmp.gt.s32.totalorder %v451, 0
    %vm460 = vcmp.gt.s32.totalorder %v452, 0
    %vm461 = vcmp.gt.s32.totalorder %v453, 0
    %vm462 = vcmp.gt.s32.totalorder %v454, 0
    %vm463 = vcmp.lt.s32.totalorder %v447, 31
    %vm464 = vcmp.lt.s32.totalorder %v448, 31
    %vm465 = vcmp.lt.s32.totalorder %v449, 31
    %vm466 = vcmp.lt.s32.totalorder %v450, 31
    %vm467 = vcmp.lt.s32.totalorder %v451, 31
    %vm468 = vcmp.lt.s32.totalorder %v452, 31
    %vm469 = vcmp.lt.s32.totalorder %v453, 31
    %vm470 = vcmp.lt.s32.totalorder %v454, 31
    %v471 = vld [vmem:[%s3] sm:$0xf]
    %v472 = vld [vmem:[%s3 + $0x4] sm:$0xf]
    %v473 = vld [vmem:[%s3 + $0x8] sm:$0xf]
    %v474 = vld [vmem:[%s3 + $0xc] sm:$0xf]
    %v475 = vld [vmem:[%s3 + $0x10] sm:$0xf]
    %v476 = vld [vmem:[%s3 + $0x14] sm:$0xf]
    %v477 = vld [vmem:[%s3 + $0x18] sm:$0xf]
    %v478 = vld [vmem:[%s3 + $0x1c] sm:$0xf]
    %v479 = vld [vmem:[%s3 + $0x20] sm:$0xf]
    %v480 = vld [vmem:[%s3 + $0x24] sm:$0xf]
    %v481 = vld [vmem:[%s3 + $0x28] sm:$0xf]
    %v482 = vld [vmem:[%s3 + $0x2c] sm:$0xf]
    %v483 = vld [vmem:[%s3 + $0x30] sm:$0xf]
    %v484 = vld [vmem:[%s3 + $0x34] sm:$0xf]
    %v485 = vld [vmem:[%s3 + $0x38] sm:$0xf]
    %v486 = vld [vmem:[%s3 + $0x3c] sm:$0xf]
    %v487 = vld [vmem:[%s3 + $0x40] sm:$0xf]
    %v488 = vld [vmem:[%s3 + $0x44] sm:$0xf]
    %v489 = vld [vmem:[%s3 + $0x48] sm:$0xf]
    %v490 = vld [vmem:[%s3 + $0x4c] sm:$0xf]
    %v491 = vld [vmem:[%s3 + $0x50] sm:$0xf]
    %v492 = vld [vmem:[%s3 + $0x54] sm:$0xf]
    %v493 = vld [vmem:[%s3 + $0x58] sm:$0xf]
    %v494 = vld [vmem:[%s3 + $0x5c] sm:$0xf]
    %v495 = vld [vmem:[%s3 + $0x60] sm:$0xf]
    %v496 = vld [vmem:[%s3 + $0x64] sm:$0xf]
    %v497 = vld [vmem:[%s3 + $0x68] sm:$0xf]
    %v498 = vld [vmem:[%s3 + $0x6c] sm:$0xf]
    %v499 = vld [vmem:[%s3 + $0x70] sm:$0xf]
    %v500 = vld [vmem:[%s3 + $0x74] sm:$0xf]
    %v501 = vld [vmem:[%s3 + $0x78] sm:$0xf]
    %v502 = vld [vmem:[%s3 + $0x7c] sm:$0xf]
    %v503 = vld [vmem:[%s3 + $0x80] sm:$0xf]
    %v504 = vld [vmem:[%s3 + $0x84] sm:$0xf]
    %v505 = vld [vmem:[%s3 + $0x88] sm:$0xf]
    %v506 = vld [vmem:[%s3 + $0x8c] sm:$0xf]
    %v507 = vld [vmem:[%s3 + $0x90] sm:$0xf]
    %v508 = vld [vmem:[%s3 + $0x94] sm:$0xf]
    %v509 = vld [vmem:[%s3 + $0x98] sm:$0xf]
    %v510 = vld [vmem:[%s3 + $0x9c] sm:$0xf]
    %v511 = vld [vmem:[%s3 + $0xa0] sm:$0xf]
    %v512 = vld [vmem:[%s3 + $0xa4] sm:$0xf]
    %v513 = vld [vmem:[%s3 + $0xa8] sm:$0xf]
    %v514 = vld [vmem:[%s3 + $0xac] sm:$0xf]
    %v515 = vld [vmem:[%s3 + $0xb0] sm:$0xf]
    %v516 = vld [vmem:[%s3 + $0xb4] sm:$0xf]
    %v517 = vld [vmem:[%s3 + $0xb8] sm:$0xf]
    %v518 = vld [vmem:[%s3 + $0xbc] sm:$0xf]
    %v519 = vld [vmem:[#allocation3] sm:$0x1]
    %v520 = vld [vmem:[%s5] sm:$0xf]
    %v521 = vld [vmem:[%s5 + $0x4] sm:$0xf]
    %v522 = vld [vmem:[%s5 + $0x8] sm:$0xf]
    %v523 = vld [vmem:[%s5 + $0xc] sm:$0xf]
    %v524 = vld [vmem:[%s5 + $0x10] sm:$0xf]
    %v525 = vld [vmem:[%s5 + $0x14] sm:$0xf]
    %v526 = vld [vmem:[%s5 + $0x18] sm:$0xf]
    %v527 = vld [vmem:[%s5 + $0x1c] sm:$0xf]
    %v528 = vld [vmem:[%s5 + $0x20] sm:$0xf]
    %v529 = vld [vmem:[%s5 + $0x24] sm:$0xf]
    %v530 = vld [vmem:[%s5 + $0x28] sm:$0xf]
    %v531 = vld [vmem:[%s5 + $0x2c] sm:$0xf]
    %v532 = vld [vmem:[%s5 + $0x30] sm:$0xf]
    %v533 = vld [vmem:[%s5 + $0x34] sm:$0xf]
    %v534 = vld [vmem:[%s5 + $0x38] sm:$0xf]
    %v535 = vld [vmem:[%s5 + $0x3c] sm:$0xf]
    %v536 = vld [vmem:[%s5 + $0x40] sm:$0xf]
    %v537 = vld [vmem:[%s5 + $0x44] sm:$0xf]
    %v538 = vld [vmem:[%s5 + $0x48] sm:$0xf]
    %v539 = vld [vmem:[%s5 + $0x4c] sm:$0xf]
    %v540 = vld [vmem:[%s5 + $0x50] sm:$0xf]
    %v541 = vld [vmem:[%s5 + $0x54] sm:$0xf]
    %v542 = vld [vmem:[%s5 + $0x58] sm:$0xf]
    %v543 = vld [vmem:[%s5 + $0x5c] sm:$0xf]
    %v544 = vld [vmem:[%s5 + $0x60] sm:$0xf]
    %v545 = vld [vmem:[%s5 + $0x64] sm:$0xf]
    %v546 = vld [vmem:[%s5 + $0x68] sm:$0xf]
    %v547 = vld [vmem:[%s5 + $0x6c] sm:$0xf]
    %v548 = vld [vmem:[%s5 + $0x70] sm:$0xf]
    %v549 = vld [vmem:[%s5 + $0x74] sm:$0xf]
    %v550 = vld [vmem:[%s5 + $0x78] sm:$0xf]
    %v551 = vld [vmem:[%s5 + $0x7c] sm:$0xf]
    %v552 = vld [vmem:[%s5 + $0x80] sm:$0xf]
    %v553 = vld [vmem:[%s5 + $0x84] sm:$0xf]
    %v554 = vld [vmem:[%s5 + $0x88] sm:$0xf]
    %v555 = vld [vmem:[%s5 + $0x8c] sm:$0xf]
    %v556 = vld [vmem:[%s5 + $0x90] sm:$0xf]
    %v557 = vld [vmem:[%s5 + $0x94] sm:$0xf]
    %v558 = vld [vmem:[%s5 + $0x98] sm:$0xf]
    %v559 = vld [vmem:[%s5 + $0x9c] sm:$0xf]
    %v560 = vld [vmem:[%s5 + $0xa0] sm:$0xf]
    %v561 = vld [vmem:[%s5 + $0xa4] sm:$0xf]
    %v562 = vld [vmem:[%s5 + $0xa8] sm:$0xf]
    %v563 = vld [vmem:[%s5 + $0xac] sm:$0xf]
    %v564 = vld [vmem:[%s5 + $0xb0] sm:$0xf]
    %v565 = vld [vmem:[%s5 + $0xb4] sm:$0xf]
    %v566 = vld [vmem:[%s5 + $0xb8] sm:$0xf]
    %v567 = vld [vmem:[%s5 + $0xbc] sm:$0xf]
    %v568 = vld [vmem:[#allocation6] sm:$0x1]
    %v569 = vld [vmem:[#allocation8] sm:$0xf]
    %v570 = vld [vmem:[#allocation8 + $0x4] sm:$0xf]
    %v571 = vld [vmem:[#allocation8 + $0x8] sm:$0xf]
    %v572 = vld [vmem:[#allocation8 + $0xc] sm:$0xf]
    %v573 = vld [vmem:[#allocation8 + $0x10] sm:$0xf]
    %v574 = vld [vmem:[#allocation8 + $0x14] sm:$0xf]
    %v575 = vld [vmem:[#allocation8 + $0x18] sm:$0xf]
    %v576 = vld [vmem:[#allocation8 + $0x1c] sm:$0xf]
    %v577 = vld [vmem:[#allocation8 + $0x20] sm:$0xf]
    %v578 = vld [vmem:[#allocation8 + $0x24] sm:$0xf]
    %v579 = vld [vmem:[#allocation8 + $0x28] sm:$0xf]
    %v580 = vld [vmem:[#allocation8 + $0x2c] sm:$0xf]
    %v581 = vld [vmem:[#allocation8 + $0x30] sm:$0xf]
    %v582 = vld [vmem:[#allocation8 + $0x34] sm:$0xf]
    %v583 = vld [vmem:[#allocation8 + $0x38] sm:$0xf]
    %v584 = vld [vmem:[#allocation8 + $0x3c] sm:$0xf]
    %v585 = vld [vmem:[#allocation9] sm:$0x1]
    %v586 = vrot.slane %v342, 7
    %v587 = vrot.slane %v343, 7
    %v588 = vrot.slane %v344, 7
    %v589 = vrot.slane %v345, 7
    %v590 = vrot.slane %v346, 7
    %v591 = vrot.slane %v347, 7
    %v592 = vrot.slane %v348, 7
    %v593 = vrot.slane %v349, 7
    %vm594 = vcmp.lt.s32.totalorder %v351, 1
    %v595 = vsel %vm594, %v592, %v593
    %v596 = vsel %vm594, %v591, %v592
    %v597 = vsel %vm594, %v590, %v591
    %v598 = vsel %vm594, %v589, %v590
    %v599 = vsel %vm594, %v588, %v589
    %v600 = vsel %vm594, %v587, %v588
    %v601 = vsel %vm594, %v586, %v587
    %v602 = vsel %vm594, %v593, %v586
    %v603 = vsel %vm455, %v602, 0.0
    %v604 = vsel %vm456, %v601, 0.0
    %v605 = vsel %vm457, %v600, 0.0
    %v606 = vsel %vm458, %v599, 0.0
    %v607 = vsel %vm459, %v598, 0.0
    %v608 = vsel %vm460, %v597, 0.0
    %v609 = vsel %vm461, %v596, 0.0
    %v610 = vsel %vm462, %v595, 0.0
    %v611 = vrot.slane %v342, 1
    %v612 = vrot.slane %v343, 1
    %v613 = vrot.slane %v344, 1
    %v614 = vrot.slane %v345, 1
    %v615 = vrot.slane %v346, 1
    %v616 = vrot.slane %v347, 1
    %v617 = vrot.slane %v348, 1
    %v618 = vrot.slane %v349, 1
    %vm619 = vcmp.lt.s32.totalorder %v351, 7
    %v620 = vsel %vm619, %v617, %v618
    %v621 = vsel %vm619, %v616, %v617
    %v622 = vsel %vm619, %v615, %v616
    %v623 = vsel %vm619, %v614, %v615
    %v624 = vsel %vm619, %v613, %v614
    %v625 = vsel %vm619, %v612, %v613
    %v626 = vsel %vm619, %v611, %v612
    %v627 = vsel %vm619, %v618, %v611
    %v628 = vsel %vm463, %v626, 0.0
    %v629 = vsel %vm464, %v625, 0.0
    %v630 = vsel %vm465, %v624, 0.0
    %v631 = vsel %vm466, %v623, 0.0
    %v632 = vsel %vm467, %v622, 0.0
    %v633 = vsel %vm468, %v621, 0.0
    %v634 = vsel %vm469, %v620, 0.0
    %v635 = vsel %vm470, %v627, 0.0
    %v636 = vpack.c.bf16 %v604, %v603
    %v637 = vpack.c.bf16 %v343, %v342
    %v638 = vpack.c.bf16 %v629, %v628
    %v639 = vpack.c.bf16 %v606, %v605
    %v640 = vpack.c.bf16 %v345, %v344
    %v641 = vpack.c.bf16 %v631, %v630
    %v642 = vpack.c.bf16 %v608, %v607
    %v643 = vpack.c.bf16 %v347, %v346
    %v644 = vpack.c.bf16 %v633, %v632
    %v645 = vpack.c.bf16 %v610, %v609
    %v646 = vpack.c.bf16 %v349, %v348
    %v647 = vpack.c.bf16 %v635, %v634
    %v649 = vlaneseq
    %v650 = vshrl.u32 %v649, 7
    %v651 = vsub.s32 0, %v650
    %v652 = vrot.slane %v519, %v651
    %v702 = vunpack.c.l.b16 %v471
    %v703 = vunpack.c.l.b16 %v472
    %v704 = vunpack.c.l.b16 %v473
    %v705 = vunpack.c.l.b16 %v474
    %v706 = vunpack.c.l.b16 %v475
    %v707 = vunpack.c.l.b16 %v476
    %v708 = vunpack.c.l.b16 %v477
    %v709 = vunpack.c.l.b16 %v478
    %v710 = vunpack.c.l.b16 %v479
    %v711 = vunpack.c.l.b16 %v480
    %v712 = vunpack.c.l.b16 %v481
    %v713 = vunpack.c.l.b16 %v482
    %v714 = vunpack.c.l.b16 %v483
    %v715 = vunpack.c.l.b16 %v484
    %v716 = vunpack.c.l.b16 %v485
    %v717 = vunpack.c.l.b16 %v486
    %v718 = vunpack.c.l.b16 %v487
    %v719 = vunpack.c.l.b16 %v488
    %v720 = vunpack.c.l.b16 %v489
    %v721 = vunpack.c.l.b16 %v490
    %v722 = vunpack.c.l.b16 %v491
    %v723 = vunpack.c.l.b16 %v492
    %v724 = vunpack.c.l.b16 %v493
    %v725 = vunpack.c.l.b16 %v494
    %v726 = vunpack.c.l.b16 %v495
    %v727 = vunpack.c.l.b16 %v496
    %v728 = vunpack.c.l.b16 %v497
    %v729 = vunpack.c.l.b16 %v498
    %v730 = vunpack.c.l.b16 %v499
    %v731 = vunpack.c.l.b16 %v500
    %v732 = vunpack.c.l.b16 %v501
    %v733 = vunpack.c.l.b16 %v502
    %v734 = vunpack.c.l.b16 %v503
    %v735 = vunpack.c.l.b16 %v504
    %v736 = vunpack.c.l.b16 %v505
    %v737 = vunpack.c.l.b16 %v506
    %v738 = vunpack.c.l.b16 %v507
    %v739 = vunpack.c.l.b16 %v508
    %v740 = vunpack.c.l.b16 %v509
    %v741 = vunpack.c.l.b16 %v510
    %v742 = vunpack.c.l.b16 %v511
    %v743 = vunpack.c.l.b16 %v512
    %v744 = vunpack.c.l.b16 %v513
    %v745 = vunpack.c.l.b16 %v514
    %v746 = vunpack.c.l.b16 %v515
    %v747 = vunpack.c.l.b16 %v516
    %v748 = vunpack.c.l.b16 %v517
    %v749 = vunpack.c.l.b16 %v518
    %v750 = vpack.c.b16 %v703, %v702
    %v751 = vpack.c.b16 %v705, %v704
    %v752 = vpack.c.b16 %v707, %v706
    %v753 = vpack.c.b16 %v709, %v708
    %v754 = vpack.c.b16 %v711, %v710
    %v755 = vpack.c.b16 %v713, %v712
    %v756 = vpack.c.b16 %v715, %v714
    %v757 = vpack.c.b16 %v717, %v716
    %v758 = vpack.c.b16 %v719, %v718
    %v759 = vpack.c.b16 %v721, %v720
    %v760 = vpack.c.b16 %v723, %v722
    %v761 = vpack.c.b16 %v725, %v724
    %v762 = vpack.c.b16 %v727, %v726
    %v763 = vpack.c.b16 %v729, %v728
    %v764 = vpack.c.b16 %v731, %v730
    %v765 = vpack.c.b16 %v733, %v732
    %v766 = vpack.c.b16 %v735, %v734
    %v767 = vpack.c.b16 %v737, %v736
    %v768 = vpack.c.b16 %v739, %v738
    %v769 = vpack.c.b16 %v741, %v740
    %v770 = vpack.c.b16 %v743, %v742
    %v771 = vpack.c.b16 %v745, %v744
    %v772 = vpack.c.b16 %v747, %v746
    %v773 = vpack.c.b16 %v749, %v748
    %798 = vmatprep.subr.bf16.mxu0 0
    %799 = vmatpush1.bf16.msra.mxu0 %v750
    %800 = vmatprep.subr.bf16.mxu0 0
    %801 = vmatpush1.bf16.msra.mxu0 %v751
    %802 = vmatprep.subr.bf16.mxu0 0
    %803 = vmatpush1.bf16.msra.mxu0 %v752
    %804 = vmatprep.subr.bf16.mxu0 0
    %805 = vmatpush1.bf16.msra.mxu0 %v753
    %806 = vmatprep.subr.bf16.mxu0 0
    %807 = vmatpush1.bf16.msra.mxu0 %v754
    %808 = vmatprep.subr.bf16.mxu0 0
    %809 = vmatpush1.bf16.msra.mxu0 %v755
    %810 = vmatprep.subr.bf16.mxu0 0
    %811 = vmatpush1.bf16.msra.mxu0 %v756
    %812 = vmatprep.subr.bf16.mxu0 0
    %813 = vmatpush1.bf16.msra.mxu0 %v757
    %814 = vmatprep.subr.bf16.mxu0 0
    %815 = vmatpush1.bf16.msra.mxu0 %v758
    %816 = vmatprep.subr.bf16.mxu0 0
    %817 = vmatpush1.bf16.msra.mxu0 %v759
    %818 = vmatprep.subr.bf16.mxu0 0
    %819 = vmatpush1.bf16.msra.mxu0 %v760
    %820 = vmatprep.subr.bf16.mxu0 0
    %821 = vmatpush1.bf16.msra.mxu0 %v761
    %822 = vmatprep.subr.bf16.mxu0 0
    %823 = vmatpush1.bf16.msra.mxu0 %v762
    %824 = vmatprep.subr.bf16.mxu0 0
    %825 = vmatpush1.bf16.msra.mxu0 %v763
    %826 = vmatprep.subr.bf16.mxu0 0
    %827 = vmatpush1.bf16.msra.mxu0 %v764
    %828 = vmatprep.subr.bf16.mxu0 0
    %829 = vmatpush1.bf16.msra.mxu0 %v765
    %830 = vmatprep.mubr.bf16.mxu0 %v637
    %831 = vmatmul.mubr.bf16.gmra.mrb[0].mxu0 %v636
    %v832 = vpop.f32.mrb[0].mxu0
    %v833 = vadd.f32 %v652, %v832
    %v834 = vpop.f32.mrb[0].mxu0
    %v835 = vpop.f32.mrb[0].mxu0
    %v836 = vadd.f32 %v652, %v835
    %v837 = vpop.f32.mrb[0].mxu0
    %838 = vmatprep.mubr.bf16.mxu0 %v640
    %839 = vmatmul.mubr.bf16.gmra.mrb[0].mxu0 %v639
    %v840 = vpop.f32.mrb[0].mxu0
    %v841 = vadd.f32 %v652, %v840
    %v842 = vpop.f32.mrb[0].mxu0
    %v843 = vpop.f32.mrb[0].mxu0
    %v844 = vadd.f32 %v652, %v843
    %v845 = vpop.f32.mrb[0].mxu0
    %846 = vmatprep.mubr.bf16.mxu0 %v643
    %847 = vmatmul.mubr.bf16.gmra.mrb[0].mxu0 %v642
    %v848 = vpop.f32.mrb[0].mxu0
    %v849 = vadd.f32 %v652, %v848
    %v850 = vpop.f32.mrb[0].mxu0
    %v851 = vpop.f32.mrb[0].mxu0
    %v852 = vadd.f32 %v652, %v851
    %v853 = vpop.f32.mrb[0].mxu0
    %854 = vmatprep.mubr.bf16.mxu0 %v646
    %855 = vmatmul.mubr.bf16.gmra.mrb[0].mxu0 %v645
    %v856 = vpop.f32.mrb[0].mxu0
    %v857 = vadd.f32 %v652, %v856
    %v858 = vpop.f32.mrb[0].mxu0
    %v859 = vpop.f32.mrb[0].mxu0
    %v860 = vadd.f32 %v652, %v859
    %v861 = vpop.f32.mrb[0].mxu0
    %862 = vdwg.mxu0
    %863 = vmatprep.subr.bf16.mxu0 0
    %864 = vmatpush1.bf16.msra.mxu0 %v766
    %865 = vmatprep.subr.bf16.mxu0 0
    %866 = vmatpush1.bf16.msra.mxu0 %v767
    %867 = vmatprep.subr.bf16.mxu0 0
    %868 = vmatpush1.bf16.msra.mxu0 %v768
    %869 = vmatprep.subr.bf16.mxu0 0
    %870 = vmatpush1.bf16.msra.mxu0 %v769
    %871 = vmatprep.subr.bf16.mxu0 0
    %872 = vmatpush1.bf16.msra.mxu0 %v770
    %873 = vmatprep.subr.bf16.mxu0 0
    %874 = vmatpush1.bf16.msra.mxu0 %v771
    %875 = vmatprep.subr.bf16.mxu0 0
    %876 = vmatpush1.bf16.msra.mxu0 %v772
    %877 = vmatprep.subr.bf16.mxu0 0
    %878 = vmatpush1.bf16.msra.mxu0 %v773
    %879 = vmatprep.subr.bf16.mxu0 0
    %880 = vmatpush1.bf16.msra.mxu0 0
    %881 = vmatprep.subr.bf16.mxu0 0
    %882 = vmatpush1.bf16.msra.mxu0 0
    %883 = vmatprep.subr.bf16.mxu0 0
    %884 = vmatpush1.bf16.msra.mxu0 0
    %885 = vmatprep.subr.bf16.mxu0 0
    %886 = vmatpush1.bf16.msra.mxu0 0
    %887 = vmatprep.subr.bf16.mxu0 0
    %888 = vmatpush1.bf16.msra.mxu0 0
    %889 = vmatprep.subr.bf16.mxu0 0
    %890 = vmatpush1.bf16.msra.mxu0 0
    %891 = vmatprep.subr.bf16.mxu0 0
    %892 = vmatpush1.bf16.msra.mxu0 0
    %893 = vmatprep.subr.bf16.mxu0 0
    %894 = vmatpush1.bf16.msra.mxu0 0
    %895 = vmatprep.mubr.bf16.mxu0 0
    %896 = vmatmul.mubr.bf16.gmra.mrb[0].mxu0 %v638
    %v897 = vpop.f32.mrb[0].mxu0
    %v898 = vadd.f32 %v833, %v897
    %v899 = vpop.f32.mrb[0].mxu0
    %v900 = vpop.f32.mrb[0].mxu0
    %v901 = vadd.f32 %v836, %v900
    %v902 = vpop.f32.mrb[0].mxu0
    %903 = vmatprep.mubr.bf16.mxu0 0
    %904 = vmatmul.mubr.bf16.gmra.mrb[0].mxu0 %v641
    %v905 = vpop.f32.mrb[0].mxu0
    %v906 = vadd.f32 %v841, %v905
    %v907 = vpop.f32.mrb[0].mxu0
    %v908 = vpop.f32.mrb[0].mxu0
    %v909 = vadd.f32 %v844, %v908
    %v910 = vpop.f32.mrb[0].mxu0
    %911 = vmatprep.mubr.bf16.mxu0 0
    %912 = vmatmul.mubr.bf16.gmra.mrb[0].mxu0 %v644
    %v913 = vpop.f32.mrb[0].mxu0
    %v914 = vadd.f32 %v849, %v913
    %v915 = vpop.f32.mrb[0].mxu0
    %v916 = vpop.f32.mrb[0].mxu0
    %v917 = vadd.f32 %v852, %v916
    %v918 = vpop.f32.mrb[0].mxu0
    %919 = vmatprep.mubr.bf16.mxu0 0
    %920 = vmatmul.mubr.bf16.gmra.mrb[0].mxu0 %v647
    %v921 = vpop.f32.mrb[0].mxu0
    %v922 = vadd.f32 %v857, %v921
    %v923 = vpop.f32.mrb[0].mxu0
    %v924 = vpop.f32.mrb[0].mxu0
    %v925 = vadd.f32 %v860, %v924
    %v926 = vpop.f32.mrb[0].mxu0
    %927 = vdwg.mxu0
    %v928 = vmax.f32 %v898, 0.0
    %v929 = vmax.f32 %v901, 0.0
    %v930 = vmax.f32 %v906, 0.0
    %v931 = vmax.f32 %v909, 0.0
    %v932 = vmax.f32 %v914, 0.0
    %v933 = vmax.f32 %v917, 0.0
    %v934 = vmax.f32 %v922, 0.0
    %v935 = vmax.f32 %v925, 0.0
    %v936 = vrot.slane %v928, 7
    %v937 = vrot.slane %v929, 7
    %v938 = vrot.slane %v930, 7
    %v939 = vrot.slane %v931, 7
    %v940 = vrot.slane %v932, 7
    %v941 = vrot.slane %v933, 7
    %v942 = vrot.slane %v934, 7
    %v943 = vrot.slane %v935, 7
    %v944 = vsel %vm594, %v942, %v943
    %v945 = vsel %vm594, %v941, %v942
    %v946 = vsel %vm594, %v940, %v941
    %v947 = vsel %vm594, %v939, %v940
    %v948 = vsel %vm594, %v938, %v939
    %v949 = vsel %vm594, %v937, %v938
    %v950 = vsel %vm594, %v936, %v937
    %v951 = vsel %vm594, %v943, %v936
    %v952 = vsel %vm455, %v951, 0.0
    %v953 = vsel %vm456, %v950, 0.0
    %v954 = vsel %vm457, %v949, 0.0
    %v955 = vsel %vm458, %v948, 0.0
    %v956 = vsel %vm459, %v947, 0.0
    %v957 = vsel %vm460, %v946, 0.0
    %v958 = vsel %vm461, %v945, 0.0
    %v959 = vsel %vm462, %v944, 0.0
    %v960 = vrot.slane %v928, 1
    %v961 = vrot.slane %v929, 1
    %v962 = vrot.slane %v930, 1
    %v963 = vrot.slane %v931, 1
    %v964 = vrot.slane %v932, 1
    %v965 = vrot.slane %v933, 1
    %v966 = vrot.slane %v934, 1
    %v967 = vrot.slane %v935, 1
    %v968 = vsel %vm619, %v966, %v967
    %v969 = vsel %vm619, %v965, %v966
    %v970 = vsel %vm619, %v964, %v965
    %v971 = vsel %vm619, %v963, %v964
    %v972 = vsel %vm619, %v962, %v963
    %v973 = vsel %vm619, %v961, %v962
    %v974 = vsel %vm619, %v960, %v961
    %v975 = vsel %vm619, %v967, %v960
    %v976 = vsel %vm463, %v974, 0.0
    %v977 = vsel %vm464, %v973, 0.0
    %v978 = vsel %vm465, %v972, 0.0
    %v979 = vsel %vm466, %v971, 0.0
    %v980 = vsel %vm467, %v970, 0.0
    %v981 = vsel %vm468, %v969, 0.0
    %v982 = vsel %vm469, %v968, 0.0
    %v983 = vsel %vm470, %v975, 0.0
    %v984 = vpack.c.bf16 %v953, %v952
    %v985 = vpack.c.bf16 %v929, %v928
    %v986 = vpack.c.bf16 %v977, %v976
    %v987 = vpack.c.bf16 %v955, %v954
    %v988 = vpack.c.bf16 %v931, %v930
    %v989 = vpack.c.bf16 %v979, %v978
    %v990 = vpack.c.bf16 %v957, %v956
    %v991 = vpack.c.bf16 %v933, %v932
    %v992 = vpack.c.bf16 %v981, %v980
    %v993 = vpack.c.bf16 %v959, %v958
    %v994 = vpack.c.bf16 %v935, %v934
    %v995 = vpack.c.bf16 %v983, %v982
    %v997 = vlaneseq
    %v998 = vshrl.u32 %v997, 7
    %v999 = vsub.s32 0, %v998
    %v1000 = vrot.slane %v568, %v999
    %v1050 = vunpack.c.l.b16 %v520
    %v1051 = vunpack.c.l.b16 %v521
    %v1052 = vunpack.c.l.b16 %v522
    %v1053 = vunpack.c.l.b16 %v523
    %v1054 = vunpack.c.l.b16 %v524
    %v1055 = vunpack.c.l.b16 %v525
    %v1056 = vunpack.c.l.b16 %v526
    %v1057 = vunpack.c.l.b16 %v527
    %v1058 = vunpack.c.l.b16 %v528
    %v1059 = vunpack.c.l.b16 %v529
    %v1060 = vunpack.c.l.b16 %v530
    %v1061 = vunpack.c.l.b16 %v531
    %v1062 = vunpack.c.l.b16 %v532
    %v1063 = vunpack.c.l.b16 %v533
    %v1064 = vunpack.c.l.b16 %v534
    %v1065 = vunpack.c.l.b16 %v535
    %v1066 = vunpack.c.l.b16 %v536
    %v1067 = vunpack.c.l.b16 %v537
    %v1068 = vunpack.c.l.b16 %v538
    %v1069 = vunpack.c.l.b16 %v539
    %v1070 = vunpack.c.l.b16 %v540
    %v1071 = vunpack.c.l.b16 %v541
    %v1072 = vunpack.c.l.b16 %v542
    %v1073 = vunpack.c.l.b16 %v543
    %v1074 = vunpack.c.l.b16 %v544
    %v1075 = vunpack.c.l.b16 %v545
    %v1076 = vunpack.c.l.b16 %v546
    %v1077 = vunpack.c.l.b16 %v547
    %v1078 = vunpack.c.l.b16 %v548
    %v1079 = vunpack.c.l.b16 %v549
    %v1080 = vunpack.c.l.b16 %v550
    %v1081 = vunpack.c.l.b16 %v551
    %v1082 = vunpack.c.l.b16 %v552
    %v1083 = vunpack.c.l.b16 %v553
    %v1084 = vunpack.c.l.b16 %v554
    %v1085 = vunpack.c.l.b16 %v555
    %v1086 = vunpack.c.l.b16 %v556
    %v1087 = vunpack.c.l.b16 %v557
    %v1088 = vunpack.c.l.b16 %v558
    %v1089 = vunpack.c.l.b16 %v559
    %v1090 = vunpack.c.l.b16 %v560
    %v1091 = vunpack.c.l.b16 %v561
    %v1092 = vunpack.c.l.b16 %v562
    %v1093 = vunpack.c.l.b16 %v563
    %v1094 = vunpack.c.l.b16 %v564
    %v1095 = vunpack.c.l.b16 %v565
    %v1096 = vunpack.c.l.b16 %v566
    %v1097 = vunpack.c.l.b16 %v567
    %v1098 = vpack.c.b16 %v1051, %v1050
    %v1099 = vpack.c.b16 %v1053, %v1052
    %v1100 = vpack.c.b16 %v1055, %v1054
    %v1101 = vpack.c.b16 %v1057, %v1056
    %v1102 = vpack.c.b16 %v1059, %v1058
    %v1103 = vpack.c.b16 %v1061, %v1060
    %v1104 = vpack.c.b16 %v1063, %v1062
    %v1105 = vpack.c.b16 %v1065, %v1064
    %v1106 = vpack.c.b16 %v1067, %v1066
    %v1107 = vpack.c.b16 %v1069, %v1068
    %v1108 = vpack.c.b16 %v1071, %v1070
    %v1109 = vpack.c.b16 %v1073, %v1072
    %v1110 = vpack.c.b16 %v1075, %v1074
    %v1111 = vpack.c.b16 %v1077, %v1076
    %v1112 = vpack.c.b16 %v1079, %v1078
    %v1113 = vpack.c.b16 %v1081, %v1080
    %v1114 = vpack.c.b16 %v1083, %v1082
    %v1115 = vpack.c.b16 %v1085, %v1084
    %v1116 = vpack.c.b16 %v1087, %v1086
    %v1117 = vpack.c.b16 %v1089, %v1088
    %v1118 = vpack.c.b16 %v1091, %v1090
    %v1119 = vpack.c.b16 %v1093, %v1092
    %v1120 = vpack.c.b16 %v1095, %v1094
    %v1121 = vpack.c.b16 %v1097, %v1096
    %1146 = vmatprep.subr.bf16.mxu0 0
    %1147 = vmatpush1.bf16.msra.mxu0 %v1098
    %1148 = vmatprep.subr.bf16.mxu0 0
    %1149 = vmatpush1.bf16.msra.mxu0 %v1099
    %1150 = vmatprep.subr.bf16.mxu0 0
    %1151 = vmatpush1.bf16.msra.mxu0 %v1100
    %1152 = vmatprep.subr.bf16.mxu0 0
    %1153 = vmatpush1.bf16.msra.mxu0 %v1101
    %1154 = vmatprep.subr.bf16.mxu0 0
    %1155 = vmatpush1.bf16.msra.mxu0 %v1102
    %1156 = vmatprep.subr.bf16.mxu0 0
    %1157 = vmatpush1.bf16.msra.mxu0 %v1103
    %1158 = vmatprep.subr.bf16.mxu0 0
    %1159 = vmatpush1.bf16.msra.mxu0 %v1104
    %1160 = vmatprep.subr.bf16.mxu0 0
    %1161 = vmatpush1.bf16.msra.mxu0 %v1105
    %1162 = vmatprep.subr.bf16.mxu0 0
    %1163 = vmatpush1.bf16.msra.mxu0 %v1106
    %1164 = vmatprep.subr.bf16.mxu0 0
    %1165 = vmatpush1.bf16.msra.mxu0 %v1107
    %1166 = vmatprep.subr.bf16.mxu0 0
    %1167 = vmatpush1.bf16.msra.mxu0 %v1108
    %1168 = vmatprep.subr.bf16.mxu0 0
    %1169 = vmatpush1.bf16.msra.mxu0 %v1109
    %1170 = vmatprep.subr.bf16.mxu0 0
    %1171 = vmatpush1.bf16.msra.mxu0 %v1110
    %1172 = vmatprep.subr.bf16.mxu0 0
    %1173 = vmatpush1.bf16.msra.mxu0 %v1111
    %1174 = vmatprep.subr.bf16.mxu0 0
    %1175 = vmatpush1.bf16.msra.mxu0 %v1112
    %1176 = vmatprep.subr.bf16.mxu0 0
    %1177 = vmatpush1.bf16.msra.mxu0 %v1113
    %1178 = vmatprep.mubr.bf16.mxu0 %v985
    %1179 = vmatmul.mubr.bf16.gmra.mrb[0].mxu0 %v984
    %v1180 = vpop.f32.mrb[0].mxu0
    %v1181 = vadd.f32 %v1000, %v1180
    %v1182 = vpop.f32.mrb[0].mxu0
    %v1183 = vpop.f32.mrb[0].mxu0
    %v1184 = vadd.f32 %v1000, %v1183
    %v1185 = vpop.f32.mrb[0].mxu0
    %1186 = vmatprep.mubr.bf16.mxu0 %v988
    %1187 = vmatmul.mubr.bf16.gmra.mrb[0].mxu0 %v987
    %v1188 = vpop.f32.mrb[0].mxu0
    %v1189 = vadd.f32 %v1000, %v1188
    %v1190 = vpop.f32.mrb[0].mxu0
    %v1191 = vpop.f32.mrb[0].mxu0
    %v1192 = vadd.f32 %v1000, %v1191
    %v1193 = vpop.f32.mrb[0].mxu0
    %1194 = vmatprep.mubr.bf16.mxu0 %v991
    %1195 = vmatmul.mubr.bf16.gmra.mrb[0].mxu0 %v990
    %v1196 = vpop.f32.mrb[0].mxu0
    %v1197 = vadd.f32 %v1000, %v1196
    %v1198 = vpop.f32.mrb[0].mxu0
    %v1199 = vpop.f32.mrb[0].mxu0
    %v1200 = vadd.f32 %v1000, %v1199
    %v1201 = vpop.f32.mrb[0].mxu0
    %1202 = vmatprep.mubr.bf16.mxu0 %v994
    %1203 = vmatmul.mubr.bf16.gmra.mrb[0].mxu0 %v993
    %v1204 = vpop.f32.mrb[0].mxu0
    %v1205 = vadd.f32 %v1000, %v1204
    %v1206 = vpop.f32.mrb[0].mxu0
    %v1207 = vpop.f32.mrb[0].mxu0
    %v1208 = vadd.f32 %v1000, %v1207
    %v1209 = vpop.f32.mrb[0].mxu0
    %1210 = vdwg.mxu0
    %1211 = vmatprep.subr.bf16.mxu0 0
    %1212 = vmatpush1.bf16.msra.mxu0 %v1114
    %1213 = vmatprep.subr.bf16.mxu0 0
    %1214 = vmatpush1.bf16.msra.mxu0 %v1115
    %1215 = vmatprep.subr.bf16.mxu0 0
    %1216 = vmatpush1.bf16.msra.mxu0 %v1116
    %1217 = vmatprep.subr.bf16.mxu0 0
    %1218 = vmatpush1.bf16.msra.mxu0 %v1117
    %1219 = vmatprep.subr.bf16.mxu0 0
    %1220 = vmatpush1.bf16.msra.mxu0 %v1118
    %1221 = vmatprep.subr.bf16.mxu0 0
    %1222 = vmatpush1.bf16.msra.mxu0 %v1119
    %1223 = vmatprep.subr.bf16.mxu0 0
    %1224 = vmatpush1.bf16.msra.mxu0 %v1120
    %1225 = vmatprep.subr.bf16.mxu0 0
    %1226 = vmatpush1.bf16.msra.mxu0 %v1121
    %1227 = vmatprep.subr.bf16.mxu0 0
    %1228 = vmatpush1.bf16.msra.mxu0 0
    %1229 = vmatprep.subr.bf16.mxu0 0
    %1230 = vmatpush1.bf16.msra.mxu0 0
    %1231 = vmatprep.subr.bf16.mxu0 0
    %1232 = vmatpush1.bf16.msra.mxu0 0
    %1233 = vmatprep.subr.bf16.mxu0 0
    %1234 = vmatpush1.bf16.msra.mxu0 0
    %1235 = vmatprep.subr.bf16.mxu0 0
    %1236 = vmatpush1.bf16.msra.mxu0 0
    %1237 = vmatprep.subr.bf16.mxu0 0
    %1238 = vmatpush1.bf16.msra.mxu0 0
    %1239 = vmatprep.subr.bf16.mxu0 0
    %1240 = vmatpush1.bf16.msra.mxu0 0
    %1241 = vmatprep.subr.bf16.mxu0 0
    %1242 = vmatpush1.bf16.msra.mxu0 0
    %1243 = vmatprep.mubr.bf16.mxu0 0
    %1244 = vmatmul.mubr.bf16.gmra.mrb[0].mxu0 %v986
    %v1245 = vpop.f32.mrb[0].mxu0
    %v1246 = vadd.f32 %v1181, %v1245
    %v1247 = vpop.f32.mrb[0].mxu0
    %v1248 = vpop.f32.mrb[0].mxu0
    %v1249 = vadd.f32 %v1184, %v1248
    %v1250 = vpop.f32.mrb[0].mxu0
    %1251 = vmatprep.mubr.bf16.mxu0 0
    %1252 = vmatmul.mubr.bf16.gmra.mrb[0].mxu0 %v989
    %v1253 = vpop.f32.mrb[0].mxu0
    %v1254 = vadd.f32 %v1189, %v1253
    %v1255 = vpop.f32.mrb[0].mxu0
    %v1256 = vpop.f32.mrb[0].mxu0
    %v1257 = vadd.f32 %v1192, %v1256
    %v1258 = vpop.f32.mrb[0].mxu0
    %1259 = vmatprep.mubr.bf16.mxu0 0
    %1260 = vmatmul.mubr.bf16.gmra.mrb[0].mxu0 %v992
    %v1261 = vpop.f32.mrb[0].mxu0
    %v1262 = vadd.f32 %v1197, %v1261
    %v1263 = vpop.f32.mrb[0].mxu0
    %v1264 = vpop.f32.mrb[0].mxu0
    %v1265 = vadd.f32 %v1200, %v1264
    %v1266 = vpop.f32.mrb[0].mxu0
    %1267 = vmatprep.mubr.bf16.mxu0 0
    %1268 = vmatmul.mubr.bf16.gmra.mrb[0].mxu0 %v995
    %v1269 = vpop.f32.mrb[0].mxu0
    %v1270 = vadd.f32 %v1205, %v1269
    %v1271 = vpop.f32.mrb[0].mxu0
    %v1272 = vpop.f32.mrb[0].mxu0
    %v1273 = vadd.f32 %v1208, %v1272
    %v1274 = vpop.f32.mrb[0].mxu0
    %1275 = vdwg.mxu0
    %v1276 = vmax.f32 %v1246, 0.0
    %v1277 = vmax.f32 %v1249, 0.0
    %v1278 = vmax.f32 %v1254, 0.0
    %v1279 = vmax.f32 %v1257, 0.0
    %v1280 = vmax.f32 %v1262, 0.0
    %v1281 = vmax.f32 %v1265, 0.0
    %v1282 = vmax.f32 %v1270, 0.0
    %v1283 = vmax.f32 %v1273, 0.0
    %v1284 = vpack.c.bf16 %v1277, %v1276
    %v1285 = vpack.c.bf16 %v1279, %v1278
    %v1286 = vpack.c.bf16 %v1281, %v1280
    %v1287 = vpack.c.bf16 %v1283, %v1282
    %v1289 = vlaneseq
    %v1290 = vshrl.u32 %v1289, 7
    %v1291 = vsub.s32 0, %v1290
    %v1292 = vrot.slane %v585, %v1291
    %v1310 = vunpack.c.l.b16 %v569
    %v1311 = vunpack.c.l.b16 %v570
    %v1312 = vunpack.c.l.b16 %v571
    %v1313 = vunpack.c.l.b16 %v572
    %v1314 = vunpack.c.l.b16 %v573
    %v1315 = vunpack.c.l.b16 %v574
    %v1316 = vunpack.c.l.b16 %v575
    %v1317 = vunpack.c.l.b16 %v576
    %v1318 = vunpack.c.l.b16 %v577
    %v1319 = vunpack.c.l.b16 %v578
    %v1320 = vunpack.c.l.b16 %v579
    %v1321 = vunpack.c.l.b16 %v580
    %v1322 = vunpack.c.l.b16 %v581
    %v1323 = vunpack.c.l.b16 %v582
    %v1324 = vunpack.c.l.b16 %v583
    %v1325 = vunpack.c.l.b16 %v584
    %v1326 = vpack.c.b16 %v1311, %v1310
    %v1327 = vpack.c.b16 %v1313, %v1312
    %v1328 = vpack.c.b16 %v1315, %v1314
    %v1329 = vpack.c.b16 %v1317, %v1316
    %v1330 = vpack.c.b16 %v1319, %v1318
    %v1331 = vpack.c.b16 %v1321, %v1320
    %v1332 = vpack.c.b16 %v1323, %v1322
    %v1333 = vpack.c.b16 %v1325, %v1324
    %1342 = vmatprep.subr.bf16.mxu0 0
    %1343 = vmatpush1.bf16.msra.mxu0 %v1326
    %1344 = vmatprep.subr.bf16.mxu0 0
    %1345 = vmatpush1.bf16.msra.mxu0 %v1327
    %1346 = vmatprep.subr.bf16.mxu0 0
    %1347 = vmatpush1.bf16.msra.mxu0 %v1328
    %1348 = vmatprep.subr.bf16.mxu0 0
    %1349 = vmatpush1.bf16.msra.mxu0 %v1329
    %1350 = vmatprep.subr.bf16.mxu0 0
    %1351 = vmatpush1.bf16.msra.mxu0 %v1330
    %1352 = vmatprep.subr.bf16.mxu0 0
    %1353 = vmatpush1.bf16.msra.mxu0 %v1331
    %1354 = vmatprep.subr.bf16.mxu0 0
    %1355 = vmatpush1.bf16.msra.mxu0 %v1332
    %1356 = vmatprep.subr.bf16.mxu0 0
    %1357 = vmatpush1.bf16.msra.mxu0 %v1333
    %1358 = vmatprep.subr.bf16.mxu0 0
    %1359 = vmatpush1.bf16.msra.mxu0 0
    %1360 = vmatprep.subr.bf16.mxu0 0
    %1361 = vmatpush1.bf16.msra.mxu0 0
    %1362 = vmatprep.subr.bf16.mxu0 0
    %1363 = vmatpush1.bf16.msra.mxu0 0
    %1364 = vmatprep.subr.bf16.mxu0 0
    %1365 = vmatpush1.bf16.msra.mxu0 0
    %1366 = vmatprep.subr.bf16.mxu0 0
    %1367 = vmatpush1.bf16.msra.mxu0 0
    %1368 = vmatprep.subr.bf16.mxu0 0
    %1369 = vmatpush1.bf16.msra.mxu0 0
    %1370 = vmatprep.subr.bf16.mxu0 0
    %1371 = vmatpush1.bf16.msra.mxu0 0
    %1372 = vmatprep.subr.bf16.mxu0 0
    %1373 = vmatpush1.bf16.msra.mxu0 0
    %1374 = vmatprep.mubr.bf16.mxu0 0
    %1375 = vmatmul.mubr.bf16.gmra.mrb[0].mxu0 %v1284
    %v1376 = vpop.f32.mrb[0].mxu0
    %v1377 = vadd.f32 %v1292, %v1376
    %v1378 = vpop.f32.mrb[0].mxu0
    %v1379 = vpop.f32.mrb[0].mxu0
    %v1380 = vadd.f32 %v1292, %v1379
    %v1381 = vpop.f32.mrb[0].mxu0
    %1382 = vmatprep.mubr.bf16.mxu0 0
    %1383 = vmatmul.mubr.bf16.gmra.mrb[0].mxu0 %v1285
    %v1384 = vpop.f32.mrb[0].mxu0
    %v1385 = vadd.f32 %v1292, %v1384
    %v1386 = vpop.f32.mrb[0].mxu0
    %v1387 = vpop.f32.mrb[0].mxu0
    %v1388 = vadd.f32 %v1292, %v1387
    %v1389 = vpop.f32.mrb[0].mxu0
    %1390 = vmatprep.mubr.bf16.mxu0 0
    %1391 = vmatmul.mubr.bf16.gmra.mrb[0].mxu0 %v1286
    %v1392 = vpop.f32.mrb[0].mxu0
    %v1393 = vadd.f32 %v1292, %v1392
    %v1394 = vpop.f32.mrb[0].mxu0
    %v1395 = vpop.f32.mrb[0].mxu0
    %v1396 = vadd.f32 %v1292, %v1395
    %v1397 = vpop.f32.mrb[0].mxu0
    %1398 = vmatprep.mubr.bf16.mxu0 0
    %1399 = vmatmul.mubr.bf16.gmra.mrb[0].mxu0 %v1287
    %v1400 = vpop.f32.mrb[0].mxu0
    %v1401 = vadd.f32 %v1292, %v1400
    %v1402 = vpop.f32.mrb[0].mxu0
    %v1403 = vpop.f32.mrb[0].mxu0
    %v1404 = vadd.f32 %v1292, %v1403
    %v1405 = vpop.f32.mrb[0].mxu0
    %1406 = vdwg.mxu0
    %v1407 = vadd.f32 %v342, %v1377
    %v1408 = vadd.f32 %v343, %v1380
    %v1409 = vadd.f32 %v344, %v1385
    %v1410 = vadd.f32 %v345, %v1388
    %v1411 = vadd.f32 %v346, %v1393
    %v1412 = vadd.f32 %v347, %v1396
    %v1413 = vadd.f32 %v348, %v1401
    %v1414 = vadd.f32 %v349, %v1404
    %v1415 = vld [vmem:[%s9] sm:$0xf]
    %v1416 = vld [vmem:[%s9 + $0x4] sm:$0xf]
    %v1417 = vld [vmem:[%s9 + $0x8] sm:$0xf]
    %v1418 = vld [vmem:[%s9 + $0xc] sm:$0xf]
    %v1419 = vld [vmem:[%s9 + $0x10] sm:$0xf]
    %v1420 = vld [vmem:[%s9 + $0x14] sm:$0xf]
    %v1421 = vld [vmem:[%s9 + $0x18] sm:$0xf]
    %v1422 = vld [vmem:[%s9 + $0x1c] sm:$0xf]
    %v1423 = vld [vmem:[%s9 + $0x20] sm:$0xf]
    %v1424 = vld [vmem:[%s9 + $0x24] sm:$0xf]
    %v1425 = vld [vmem:[%s9 + $0x28] sm:$0xf]
    %v1426 = vld [vmem:[%s9 + $0x2c] sm:$0xf]
    %v1427 = vld [vmem:[%s9 + $0x30] sm:$0xf]
    %v1428 = vld [vmem:[%s9 + $0x34] sm:$0xf]
    %v1429 = vld [vmem:[%s9 + $0x38] sm:$0xf]
    %v1430 = vld [vmem:[%s9 + $0x3c] sm:$0xf]
    %v1431 = vld [vmem:[%s9 + $0x40] sm:$0xf]
    %v1432 = vld [vmem:[%s9 + $0x44] sm:$0xf]
    %v1433 = vld [vmem:[%s9 + $0x48] sm:$0xf]
    %v1434 = vld [vmem:[%s9 + $0x4c] sm:$0xf]
    %v1435 = vld [vmem:[%s9 + $0x50] sm:$0xf]
    %v1436 = vld [vmem:[%s9 + $0x54] sm:$0xf]
    %v1437 = vld [vmem:[%s9 + $0x58] sm:$0xf]
    %v1438 = vld [vmem:[%s9 + $0x5c] sm:$0xf]
    %v1439 = vld [vmem:[%s9 + $0x60] sm:$0xf]
    %v1440 = vld [vmem:[%s9 + $0x64] sm:$0xf]
    %v1441 = vld [vmem:[%s9 + $0x68] sm:$0xf]
    %v1442 = vld [vmem:[%s9 + $0x6c] sm:$0xf]
    %v1443 = vld [vmem:[%s9 + $0x70] sm:$0xf]
    %v1444 = vld [vmem:[%s9 + $0x74] sm:$0xf]
    %v1445 = vld [vmem:[%s9 + $0x78] sm:$0xf]
    %v1446 = vld [vmem:[%s9 + $0x7c] sm:$0xf]
    %v1447 = vld [vmem:[%s9 + $0x80] sm:$0xf]
    %v1448 = vld [vmem:[%s9 + $0x84] sm:$0xf]
    %v1449 = vld [vmem:[%s9 + $0x88] sm:$0xf]
    %v1450 = vld [vmem:[%s9 + $0x8c] sm:$0xf]
    %v1451 = vld [vmem:[%s9 + $0x90] sm:$0xf]
    %v1452 = vld [vmem:[%s9 + $0x94] sm:$0xf]
    %v1453 = vld [vmem:[%s9 + $0x98] sm:$0xf]
    %v1454 = vld [vmem:[%s9 + $0x9c] sm:$0xf]
    %v1455 = vld [vmem:[%s9 + $0xa0] sm:$0xf]
    %v1456 = vld [vmem:[%s9 + $0xa4] sm:$0xf]
    %v1457 = vld [vmem:[%s9 + $0xa8] sm:$0xf]
    %v1458 = vld [vmem:[%s9 + $0xac] sm:$0xf]
    %v1459 = vld [vmem:[%s9 + $0xb0] sm:$0xf]
    %v1460 = vld [vmem:[%s9 + $0xb4] sm:$0xf]
    %v1461 = vld [vmem:[%s9 + $0xb8] sm:$0xf]
    %v1462 = vld [vmem:[%s9 + $0xbc] sm:$0xf]
    %v1463 = vld [vmem:[#allocation11] sm:$0x1]
    %v1464 = vld [vmem:[%s11] sm:$0xf]
    %v1465 = vld [vmem:[%s11 + $0x4] sm:$0xf]
    %v1466 = vld [vmem:[%s11 + $0x8] sm:$0xf]
    %v1467 = vld [vmem:[%s11 + $0xc] sm:$0xf]
    %v1468 = vld [vmem:[%s11 + $0x10] sm:$0xf]
    %v1469 = vld [vmem:[%s11 + $0x14] sm:$0xf]
    %v1470 = vld [vmem:[%s11 + $0x18] sm:$0xf]
    %v1471 = vld [vmem:[%s11 + $0x1c] sm:$0xf]
    %v1472 = vld [vmem:[%s11 + $0x20] sm:$0xf]
    %v1473 = vld [vmem:[%s11 + $0x24] sm:$0xf]
    %v1474 = vld [vmem:[%s11 + $0x28] sm:$0xf]
    %v1475 = vld [vmem:[%s11 + $0x2c] sm:$0xf]
    %v1476 = vld [vmem:[%s11 + $0x30] sm:$0xf]
    %v1477 = vld [vmem:[%s11 + $0x34] sm:$0xf]
    %v1478 = vld [vmem:[%s11 + $0x38] sm:$0xf]
    %v1479 = vld [vmem:[%s11 + $0x3c] sm:$0xf]
    %v1480 = vld [vmem:[%s11 + $0x40] sm:$0xf]
    %v1481 = vld [vmem:[%s11 + $0x44] sm:$0xf]
    %v1482 = vld [vmem:[%s11 + $0x48] sm:$0xf]
    %v1483 = vld [vmem:[%s11 + $0x4c] sm:$0xf]
    %v1484 = vld [vmem:[%s11 + $0x50] sm:$0xf]
    %v1485 = vld [vmem:[%s11 + $0x54] sm:$0xf]
    %v1486 = vld [vmem:[%s11 + $0x58] sm:$0xf]
    %v1487 = vld [vmem:[%s11 + $0x5c] sm:$0xf]
    %v1488 = vld [vmem:[%s11 + $0x60] sm:$0xf]
    %v1489 = vld [vmem:[%s11 + $0x64] sm:$0xf]
    %v1490 = vld [vmem:[%s11 + $0x68] sm:$0xf]
    %v1491 = vld [vmem:[%s11 + $0x6c] sm:$0xf]
    %v1492 = vld [vmem:[%s11 + $0x70] sm:$0xf]
    %v1493 = vld [vmem:[%s11 + $0x74] sm:$0xf]
    %v1494 = vld [vmem:[%s11 + $0x78] sm:$0xf]
    %v1495 = vld [vmem:[%s11 + $0x7c] sm:$0xf]
    %v1496 = vld [vmem:[%s11 + $0x80] sm:$0xf]
    %v1497 = vld [vmem:[%s11 + $0x84] sm:$0xf]
    %v1498 = vld [vmem:[%s11 + $0x88] sm:$0xf]
    %v1499 = vld [vmem:[%s11 + $0x8c] sm:$0xf]
    %v1500 = vld [vmem:[%s11 + $0x90] sm:$0xf]
    %v1501 = vld [vmem:[%s11 + $0x94] sm:$0xf]
    %v1502 = vld [vmem:[%s11 + $0x98] sm:$0xf]
    %v1503 = vld [vmem:[%s11 + $0x9c] sm:$0xf]
    %v1504 = vld [vmem:[%s11 + $0xa0] sm:$0xf]
    %v1505 = vld [vmem:[%s11 + $0xa4] sm:$0xf]
    %v1506 = vld [vmem:[%s11 + $0xa8] sm:$0xf]
    %v1507 = vld [vmem:[%s11 + $0xac] sm:$0xf]
    %v1508 = vld [vmem:[%s11 + $0xb0] sm:$0xf]
    %v1509 = vld [vmem:[%s11 + $0xb4] sm:$0xf]
    %v1510 = vld [vmem:[%s11 + $0xb8] sm:$0xf]
    %v1511 = vld [vmem:[%s11 + $0xbc] sm:$0xf]
    %v1512 = vld [vmem:[%s12] sm:$0x1]
    %v1513 = vld [vmem:[#allocation12] sm:$0xf]
    %v1514 = vld [vmem:[#allocation12 + $0x4] sm:$0xf]
    %v1515 = vld [vmem:[#allocation12 + $0x8] sm:$0xf]
    %v1516 = vld [vmem:[#allocation12 + $0xc] sm:$0xf]
    %v1517 = vld [vmem:[#allocation12 + $0x10] sm:$0xf]
    %v1518 = vld [vmem:[#allocation12 + $0x14] sm:$0xf]
    %v1519 = vld [vmem:[#allocation12 + $0x18] sm:$0xf]
    %v1520 = vld [vmem:[#allocation12 + $0x1c] sm:$0xf]
    %v1521 = vld [vmem:[#allocation12 + $0x20] sm:$0xf]
    %v1522 = vld [vmem:[#allocation12 + $0x24] sm:$0xf]
    %v1523 = vld [vmem:[#allocation12 + $0x28] sm:$0xf]
    %v1524 = vld [vmem:[#allocation12 + $0x2c] sm:$0xf]
    %v1525 = vld [vmem:[#allocation12 + $0x30] sm:$0xf]
    %v1526 = vld [vmem:[#allocation12 + $0x34] sm:$0xf]
    %v1527 = vld [vmem:[#allocation12 + $0x38] sm:$0xf]
    %v1528 = vld [vmem:[#allocation12 + $0x3c] sm:$0xf]
    %v1529 = vld [vmem:[%s14] sm:$0x1]
    %v1530 = vrot.slane %v1407, 7
    %v1531 = vrot.slane %v1408, 7
    %v1532 = vrot.slane %v1409, 7
    %v1533 = vrot.slane %v1410, 7
    %v1534 = vrot.slane %v1411, 7
    %v1535 = vrot.slane %v1412, 7
    %v1536 = vrot.slane %v1413, 7
    %v1537 = vrot.slane %v1414, 7
    %v1538 = vsel %vm594, %v1536, %v1537
    %v1539 = vsel %vm594, %v1535, %v1536
    %v1540 = vsel %vm594, %v1534, %v1535
    %v1541 = vsel %vm594, %v1533, %v1534
    %v1542 = vsel %vm594, %v1532, %v1533
    %v1543 = vsel %vm594, %v1531, %v1532
    %v1544 = vsel %vm594, %v1530, %v1531
    %v1545 = vsel %vm594, %v1537, %v1530
    %v1546 = vsel %vm455, %v1545, 0.0
    %v1547 = vsel %vm456, %v1544, 0.0
    %v1548 = vsel %vm457, %v1543, 0.0
    %v1549 = vsel %vm458, %v1542, 0.0
    %v1550 = vsel %vm459, %v1541, 0.0
    %v1551 = vsel %vm460, %v1540, 0.0
    %v1552 = vsel %vm461, %v1539, 0.0
    %v1553 = vsel %vm462, %v1538, 0.0
    %v1554 = vrot.slane %v1407, 1
    %v1555 = vrot.slane %v1408, 1
    %v1556 = vrot.slane %v1409, 1
    %v1557 = vrot.slane %v1410, 1
    %v1558 = vrot.slane %v1411, 1
    %v1559 = vrot.slane %v1412, 1
    %v1560 = vrot.slane %v1413, 1
    %v1561 = vrot.slane %v1414, 1
    %v1562 = vsel %vm619, %v1560, %v1561
    %v1563 = vsel %vm619, %v1559, %v1560
    %v1564 = vsel %vm619, %v1558, %v1559
    %v1565 = vsel %vm619, %v1557, %v1558
    %v1566 = vsel %vm619, %v1556, %v1557
    %v1567 = vsel %vm619, %v1555, %v1556
    %v1568 = vsel %vm619, %v1554, %v1555
    %v1569 = vsel %vm619, %v1561, %v1554
    %v1570 = vsel %vm463, %v1568, 0.0
    %v1571 = vsel %vm464, %v1567, 0.0
    %v1572 = vsel %vm465, %v1566, 0.0
    %v1573 = vsel %vm466, %v1565, 0.0
    %v1574 = vsel %vm467, %v1564, 0.0
    %v1575 = vsel %vm468, %v1563, 0.0
    %v1576 = vsel %vm469, %v1562, 0.0
    %v1577 = vsel %vm470, %v1569, 0.0
    %v1578 = vpack.c.bf16 %v1547, %v1546
    %v1579 = vpack.c.bf16 %v1408, %v1407
    %v1580 = vpack.c.bf16 %v1571, %v1570
    %v1581 = vpack.c.bf16 %v1549, %v1548
    %v1582 = vpack.c.bf16 %v1410, %v1409
    %v1583 = vpack.c.bf16 %v1573, %v1572
    %v1584 = vpack.c.bf16 %v1551, %v1550
    %v1585 = vpack.c.bf16 %v1412, %v1411
    %v1586 = vpack.c.bf16 %v1575, %v1574
    %v1587 = vpack.c.bf16 %v1553, %v1552
    %v1588 = vpack.c.bf16 %v1414, %v1413
    %v1589 = vpack.c.bf16 %v1577, %v1576
    %v1591 = vlaneseq
    %v1592 = vshrl.u32 %v1591, 7
    %v1593 = vsub.s32 0, %v1592
    %v1594 = vrot.slane %v1463, %v1593
    %v1644 = vunpack.c.l.b16 %v1415
    %v1645 = vunpack.c.l.b16 %v1416
    %v1646 = vunpack.c.l.b16 %v1417
    %v1647 = vunpack.c.l.b16 %v1418
    %v1648 = vunpack.c.l.b16 %v1419
    %v1649 = vunpack.c.l.b16 %v1420
    %v1650 = vunpack.c.l.b16 %v1421
    %v1651 = vunpack.c.l.b16 %v1422
    %v1652 = vunpack.c.l.b16 %v1423
    %v1653 = vunpack.c.l.b16 %v1424
    %v1654 = vunpack.c.l.b16 %v1425
    %v1655 = vunpack.c.l.b16 %v1426
    %v1656 = vunpack.c.l.b16 %v1427
    %v1657 = vunpack.c.l.b16 %v1428
    %v1658 = vunpack.c.l.b16 %v1429
    %v1659 = vunpack.c.l.b16 %v1430
    %v1660 = vunpack.c.l.b16 %v1431
    %v1661 = vunpack.c.l.b16 %v1432
    %v1662 = vunpack.c.l.b16 %v1433
    %v1663 = vunpack.c.l.b16 %v1434
    %v1664 = vunpack.c.l.b16 %v1435
    %v1665 = vunpack.c.l.b16 %v1436
    %v1666 = vunpack.c.l.b16 %v1437
    %v1667 = vunpack.c.l.b16 %v1438
    %v1668 = vunpack.c.l.b16 %v1439
    %v1669 = vunpack.c.l.b16 %v1440
    %v1670 = vunpack.c.l.b16 %v1441
    %v1671 = vunpack.c.l.b16 %v1442
    %v1672 = vunpack.c.l.b16 %v1443
    %v1673 = vunpack.c.l.b16 %v1444
    %v1674 = vunpack.c.l.b16 %v1445
    %v1675 = vunpack.c.l.b16 %v1446
    %v1676 = vunpack.c.l.b16 %v1447
    %v1677 = vunpack.c.l.b16 %v1448
    %v1678 = vunpack.c.l.b16 %v1449
    %v1679 = vunpack.c.l.b16 %v1450
    %v1680 = vunpack.c.l.b16 %v1451
    %v1681 = vunpack.c.l.b16 %v1452
    %v1682 = vunpack.c.l.b16 %v1453
    %v1683 = vunpack.c.l.b16 %v1454
    %v1684 = vunpack.c.l.b16 %v1455
    %v1685 = vunpack.c.l.b16 %v1456
    %v1686 = vunpack.c.l.b16 %v1457
    %v1687 = vunpack.c.l.b16 %v1458
    %v1688 = vunpack.c.l.b16 %v1459
    %v1689 = vunpack.c.l.b16 %v1460
    %v1690 = vunpack.c.l.b16 %v1461
    %v1691 = vunpack.c.l.b16 %v1462
    %v1692 = vpack.c.b16 %v1645, %v1644
    %v1693 = vpack.c.b16 %v1647, %v1646
    %v1694 = vpack.c.b16 %v1649, %v1648
    %v1695 = vpack.c.b16 %v1651, %v1650
    %v1696 = vpack.c.b16 %v1653, %v1652
    %v1697 = vpack.c.b16 %v1655, %v1654
    %v1698 = vpack.c.b16 %v1657, %v1656
    %v1699 = vpack.c.b16 %v1659, %v1658
    %v1700 = vpack.c.b16 %v1661, %v1660
    %v1701 = vpack.c.b16 %v1663, %v1662
    %v1702 = vpack.c.b16 %v1665, %v1664
    %v1703 = vpack.c.b16 %v1667, %v1666
    %v1704 = vpack.c.b16 %v1669, %v1668
    %v1705 = vpack.c.b16 %v1671, %v1670
    %v1706 = vpack.c.b16 %v1673, %v1672
    %v1707 = vpack.c.b16 %v1675, %v1674
    %v1708 = vpack.c.b16 %v1677, %v1676
    %v1709 = vpack.c.b16 %v1679, %v1678
    %v1710 = vpack.c.b16 %v1681, %v1680
    %v1711 = vpack.c.b16 %v1683, %v1682
    %v1712 = vpack.c.b16 %v1685, %v1684
    %v1713 = vpack.c.b16 %v1687, %v1686
    %v1714 = vpack.c.b16 %v1689, %v1688
    %v1715 = vpack.c.b16 %v1691, %v1690
    %1740 = vmatprep.subr.bf16.mxu0 0
    %1741 = vmatpush1.bf16.msra.mxu0 %v1692
    %1742 = vmatprep.subr.bf16.mxu0 0
    %1743 = vmatpush1.bf16.msra.mxu0 %v1693
    %1744 = vmatprep.subr.bf16.mxu0 0
    %1745 = vmatpush1.bf16.msra.mxu0 %v1694
    %1746 = vmatprep.subr.bf16.mxu0 0
    %1747 = vmatpush1.bf16.msra.mxu0 %v1695
    %1748 = vmatprep.subr.bf16.mxu0 0
    %1749 = vmatpush1.bf16.msra.mxu0 %v1696
    %1750 = vmatprep.subr.bf16.mxu0 0
    %1751 = vmatpush1.bf16.msra.mxu0 %v1697
    %1752 = vmatprep.subr.bf16.mxu0 0
    %1753 = vmatpush1.bf16.msra.mxu0 %v1698
    %1754 = vmatprep.subr.bf16.mxu0 0
    %1755 = vmatpush1.bf16.msra.mxu0 %v1699
    %1756 = vmatprep.subr.bf16.mxu0 0
    %1757 = vmatpush1.bf16.msra.mxu0 %v1700
    %1758 = vmatprep.subr.bf16.mxu0 0
    %1759 = vmatpush1.bf16.msra.mxu0 %v1701
    %1760 = vmatprep.subr.bf16.mxu0 0
    %1761 = vmatpush1.bf16.msra.mxu0 %v1702
    %1762 = vmatprep.subr.bf16.mxu0 0
    %1763 = vmatpush1.bf16.msra.mxu0 %v1703
    %1764 = vmatprep.subr.bf16.mxu0 0
    %1765 = vmatpush1.bf16.msra.mxu0 %v1704
    %1766 = vmatprep.subr.bf16.mxu0 0
    %1767 = vmatpush1.bf16.msra.mxu0 %v1705
    %1768 = vmatprep.subr.bf16.mxu0 0
    %1769 = vmatpush1.bf16.msra.mxu0 %v1706
    %1770 = vmatprep.subr.bf16.mxu0 0
    %1771 = vmatpush1.bf16.msra.mxu0 %v1707
    %1772 = vmatprep.mubr.bf16.mxu0 %v1579
    %1773 = vmatmul.mubr.bf16.gmra.mrb[0].mxu0 %v1578
    %v1774 = vpop.f32.mrb[0].mxu0
    %v1775 = vadd.f32 %v1594, %v1774
    %v1776 = vpop.f32.mrb[0].mxu0
    %v1777 = vpop.f32.mrb[0].mxu0
    %v1778 = vadd.f32 %v1594, %v1777
    %v1779 = vpop.f32.mrb[0].mxu0
    %1780 = vmatprep.mubr.bf16.mxu0 %v1582
    %1781 = vmatmul.mubr.bf16.gmra.mrb[0].mxu0 %v1581
    %v1782 = vpop.f32.mrb[0].mxu0
    %v1783 = vadd.f32 %v1594, %v1782
    %v1784 = vpop.f32.mrb[0].mxu0
    %v1785 = vpop.f32.mrb[0].mxu0
    %v1786 = vadd.f32 %v1594, %v1785
    %v1787 = vpop.f32.mrb[0].mxu0
    %1788 = vmatprep.mubr.bf16.mxu0 %v1585
    %1789 = vmatmul.mubr.bf16.gmra.mrb[0].mxu0 %v1584
    %v1790 = vpop.f32.mrb[0].mxu0
    %v1791 = vadd.f32 %v1594, %v1790
    %v1792 = vpop.f32.mrb[0].mxu0
    %v1793 = vpop.f32.mrb[0].mxu0
    %v1794 = vadd.f32 %v1594, %v1793
    %v1795 = vpop.f32.mrb[0].mxu0
    %1796 = vmatprep.mubr.bf16.mxu0 %v1588
    %1797 = vmatmul.mubr.bf16.gmra.mrb[0].mxu0 %v1587
    %v1798 = vpop.f32.mrb[0].mxu0
    %v1799 = vadd.f32 %v1594, %v1798
    %v1800 = vpop.f32.mrb[0].mxu0
    %v1801 = vpop.f32.mrb[0].mxu0
    %v1802 = vadd.f32 %v1594, %v1801
    %v1803 = vpop.f32.mrb[0].mxu0
    %1804 = vdwg.mxu0
    %1805 = vmatprep.subr.bf16.mxu0 0
    %1806 = vmatpush1.bf16.msra.mxu0 %v1708
    %1807 = vmatprep.subr.bf16.mxu0 0
    %1808 = vmatpush1.bf16.msra.mxu0 %v1709
    %1809 = vmatprep.subr.bf16.mxu0 0
    %1810 = vmatpush1.bf16.msra.mxu0 %v1710
    %1811 = vmatprep.subr.bf16.mxu0 0
    %1812 = vmatpush1.bf16.msra.mxu0 %v1711
    %1813 = vmatprep.subr.bf16.mxu0 0
    %1814 = vmatpush1.bf16.msra.mxu0 %v1712
    %1815 = vmatprep.subr.bf16.mxu0 0
    %1816 = vmatpush1.bf16.msra.mxu0 %v1713
    %1817 = vmatprep.subr.bf16.mxu0 0
    %1818 = vmatpush1.bf16.msra.mxu0 %v1714
    %1819 = vmatprep.subr.bf16.mxu0 0
    %1820 = vmatpush1.bf16.msra.mxu0 %v1715
    %1821 = vmatprep.subr.bf16.mxu0 0
    %1822 = vmatpush1.bf16.msra.mxu0 0
    %1823 = vmatprep.subr.bf16.mxu0 0
    %1824 = vmatpush1.bf16.msra.mxu0 0
    %1825 = vmatprep.subr.bf16.mxu0 0
    %1826 = vmatpush1.bf16.msra.mxu0 0
    %1827 = vmatprep.subr.bf16.mxu0 0
    %1828 = vmatpush1.bf16.msra.mxu0 0
    %1829 = vmatprep.subr.bf16.mxu0 0
    %1830 = vmatpush1.bf16.msra.mxu0 0
    %1831 = vmatprep.subr.bf16.mxu0 0
    %1832 = vmatpush1.bf16.msra.mxu0 0
    %1833 = vmatprep.subr.bf16.mxu0 0
    %1834 = vmatpush1.bf16.msra.mxu0 0
    %1835 = vmatprep.subr.bf16.mxu0 0
    %1836 = vmatpush1.bf16.msra.mxu0 0
    %1837 = vmatprep.mubr.bf16.mxu0 0
    %1838 = vmatmul.mubr.bf16.gmra.mrb[0].mxu0 %v1580
    %v1839 = vpop.f32.mrb[0].mxu0
    %v1840 = vadd.f32 %v1775, %v1839
    %v1841 = vpop.f32.mrb[0].mxu0
    %v1842 = vpop.f32.mrb[0].mxu0
    %v1843 = vadd.f32 %v1778, %v1842
    %v1844 = vpop.f32.mrb[0].mxu0
    %1845 = vmatprep.mubr.bf16.mxu0 0
    %1846 = vmatmul.mubr.bf16.gmra.mrb[0].mxu0 %v1583
    %v1847 = vpop.f32.mrb[0].mxu0
    %v1848 = vadd.f32 %v1783, %v1847
    %v1849 = vpop.f32.mrb[0].mxu0
    %v1850 = vpop.f32.mrb[0].mxu0
    %v1851 = vadd.f32 %v1786, %v1850
    %v1852 = vpop.f32.mrb[0].mxu0
    %1853 = vmatprep.mubr.bf16.mxu0 0
    %1854 = vmatmul.mubr.bf16.gmra.mrb[0].mxu0 %v1586
    %v1855 = vpop.f32.mrb[0].mxu0
    %v1856 = vadd.f32 %v1791, %v1855
    %v1857 = vpop.f32.mrb[0].mxu0
    %v1858 = vpop.f32.mrb[0].mxu0
    %v1859 = vadd.f32 %v1794, %v1858
    %v1860 = vpop.f32.mrb[0].mxu0
    %1861 = vmatprep.mubr.bf16.mxu0 0
    %1862 = vmatmul.mubr.bf16.gmra.mrb[0].mxu0 %v1589
    %v1863 = vpop.f32.mrb[0].mxu0
    %v1864 = vadd.f32 %v1799, %v1863
    %v1865 = vpop.f32.mrb[0].mxu0
    %v1866 = vpop.f32.mrb[0].mxu0
    %v1867 = vadd.f32 %v1802, %v1866
    %v1868 = vpop.f32.mrb[0].mxu0
    %1869 = vdwg.mxu0
    %v1870 = vmax.f32 %v1840, 0.0
    %v1871 = vmax.f32 %v1843, 0.0
    %v1872 = vmax.f32 %v1848, 0.0
    %v1873 = vmax.f32 %v1851, 0.0
    %v1874 = vmax.f32 %v1856, 0.0
    %v1875 = vmax.f32 %v1859, 0.0
    %v1876 = vmax.f32 %v1864, 0.0
    %v1877 = vmax.f32 %v1867, 0.0
    %v1878 = vrot.slane %v1870, 7
    %v1879 = vrot.slane %v1871, 7
    %v1880 = vrot.slane %v1872, 7
    %v1881 = vrot.slane %v1873, 7
    %v1882 = vrot.slane %v1874, 7
    %v1883 = vrot.slane %v1875, 7
    %v1884 = vrot.slane %v1876, 7
    %v1885 = vrot.slane %v1877, 7
    %v1886 = vsel %vm594, %v1884, %v1885
    %v1887 = vsel %vm594, %v1883, %v1884
    %v1888 = vsel %vm594, %v1882, %v1883
    %v1889 = vsel %vm594, %v1881, %v1882
    %v1890 = vsel %vm594, %v1880, %v1881
    %v1891 = vsel %vm594, %v1879, %v1880
    %v1892 = vsel %vm594, %v1878, %v1879
    %v1893 = vsel %vm594, %v1885, %v1878
    %v1894 = vsel %vm455, %v1893, 0.0
    %v1895 = vsel %vm456, %v1892, 0.0
    %v1896 = vsel %vm457, %v1891, 0.0
    %v1897 = vsel %vm458, %v1890, 0.0
    %v1898 = vsel %vm459, %v1889, 0.0
    %v1899 = vsel %vm460, %v1888, 0.0
    %v1900 = vsel %vm461, %v1887, 0.0
    %v1901 = vsel %vm462, %v1886, 0.0
    %v1902 = vrot.slane %v1870, 1
    %v1903 = vrot.slane %v1871, 1
    %v1904 = vrot.slane %v1872, 1
    %v1905 = vrot.slane %v1873, 1
    %v1906 = vrot.slane %v1874, 1
    %v1907 = vrot.slane %v1875, 1
    %v1908 = vrot.slane %v1876, 1
    %v1909 = vrot.slane %v1877, 1
    %v1910 = vsel %vm619, %v1908, %v1909
    %v1911 = vsel %vm619, %v1907, %v1908
    %v1912 = vsel %vm619, %v1906, %v1907
    %v1913 = vsel %vm619, %v1905, %v1906
    %v1914 = vsel %vm619, %v1904, %v1905
    %v1915 = vsel %vm619, %v1903, %v1904
    %v1916 = vsel %vm619, %v1902, %v1903
    %v1917 = vsel %vm619, %v1909, %v1902
    %v1918 = vsel %vm463, %v1916, 0.0
    %v1919 = vsel %vm464, %v1915, 0.0
    %v1920 = vsel %vm465, %v1914, 0.0
    %v1921 = vsel %vm466, %v1913, 0.0
    %v1922 = vsel %vm467, %v1912, 0.0
    %v1923 = vsel %vm468, %v1911, 0.0
    %v1924 = vsel %vm469, %v1910, 0.0
    %v1925 = vsel %vm470, %v1917, 0.0
    %v1926 = vpack.c.bf16 %v1895, %v1894
    %v1927 = vpack.c.bf16 %v1871, %v1870
    %v1928 = vpack.c.bf16 %v1919, %v1918
    %v1929 = vpack.c.bf16 %v1897, %v1896
    %v1930 = vpack.c.bf16 %v1873, %v1872
    %v1931 = vpack.c.bf16 %v1921, %v1920
    %v1932 = vpack.c.bf16 %v1899, %v1898
    %v1933 = vpack.c.bf16 %v1875, %v1874
    %v1934 = vpack.c.bf16 %v1923, %v1922
    %v1935 = vpack.c.bf16 %v1901, %v1900
    %v1936 = vpack.c.bf16 %v1877, %v1876
    %v1937 = vpack.c.bf16 %v1925, %v1924
    %v1939 = vlaneseq
    %v1940 = vshrl.u32 %v1939, 7
    %v1941 = vsub.s32 0, %v1940
    %v1942 = vrot.slane %v1512, %v1941
    %v1992 = vunpack.c.l.b16 %v1464
    %v1993 = vunpack.c.l.b16 %v1465
    %v1994 = vunpack.c.l.b16 %v1466
    %v1995 = vunpack.c.l.b16 %v1467
    %v1996 = vunpack.c.l.b16 %v1468
    %v1997 = vunpack.c.l.b16 %v1469
    %v1998 = vunpack.c.l.b16 %v1470
    %v1999 = vunpack.c.l.b16 %v1471
    %v2000 = vunpack.c.l.b16 %v1472
    %v2001 = vunpack.c.l.b16 %v1473
    %v2002 = vunpack.c.l.b16 %v1474
    %v2003 = vunpack.c.l.b16 %v1475
    %v2004 = vunpack.c.l.b16 %v1476
    %v2005 = vunpack.c.l.b16 %v1477
    %v2006 = vunpack.c.l.b16 %v1478
    %v2007 = vunpack.c.l.b16 %v1479
    %v2008 = vunpack.c.l.b16 %v1480
    %v2009 = vunpack.c.l.b16 %v1481
    %v2010 = vunpack.c.l.b16 %v1482
    %v2011 = vunpack.c.l.b16 %v1483
    %v2012 = vunpack.c.l.b16 %v1484
    %v2013 = vunpack.c.l.b16 %v1485
    %v2014 = vunpack.c.l.b16 %v1486
    %v2015 = vunpack.c.l.b16 %v1487
    %v2016 = vunpack.c.l.b16 %v1488
    %v2017 = vunpack.c.l.b16 %v1489
    %v2018 = vunpack.c.l.b16 %v1490
    %v2019 = vunpack.c.l.b16 %v1491
    %v2020 = vunpack.c.l.b16 %v1492
    %v2021 = vunpack.c.l.b16 %v1493
    %v2022 = vunpack.c.l.b16 %v1494
    %v2023 = vunpack.c.l.b16 %v1495
    %v2024 = vunpack.c.l.b16 %v1496
    %v2025 = vunpack.c.l.b16 %v1497
    %v2026 = vunpack.c.l.b16 %v1498
    %v2027 = vunpack.c.l.b16 %v1499
    %v2028 = vunpack.c.l.b16 %v1500
    %v2029 = vunpack.c.l.b16 %v1501
    %v2030 = vunpack.c.l.b16 %v1502
    %v2031 = vunpack.c.l.b16 %v1503
    %v2032 = vunpack.c.l.b16 %v1504
    %v2033 = vunpack.c.l.b16 %v1505
    %v2034 = vunpack.c.l.b16 %v1506
    %v2035 = vunpack.c.l.b16 %v1507
    %v2036 = vunpack.c.l.b16 %v1508
    %v2037 = vunpack.c.l.b16 %v1509
    %v2038 = vunpack.c.l.b16 %v1510
    %v2039 = vunpack.c.l.b16 %v1511
    %v2040 = vpack.c.b16 %v1993, %v1992
    %v2041 = vpack.c.b16 %v1995, %v1994
    %v2042 = vpack.c.b16 %v1997, %v1996
    %v2043 = vpack.c.b16 %v1999, %v1998
    %v2044 = vpack.c.b16 %v2001, %v2000
    %v2045 = vpack.c.b16 %v2003, %v2002
    %v2046 = vpack.c.b16 %v2005, %v2004
    %v2047 = vpack.c.b16 %v2007, %v2006
    %v2048 = vpack.c.b16 %v2009, %v2008
    %v2049 = vpack.c.b16 %v2011, %v2010
    %v2050 = vpack.c.b16 %v2013, %v2012
    %v2051 = vpack.c.b16 %v2015, %v2014
    %v2052 = vpack.c.b16 %v2017, %v2016
    %v2053 = vpack.c.b16 %v2019, %v2018
    %v2054 = vpack.c.b16 %v2021, %v2020
    %v2055 = vpack.c.b16 %v2023, %v2022
    %v2056 = vpack.c.b16 %v2025, %v2024
    %v2057 = vpack.c.b16 %v2027, %v2026
    %v2058 = vpack.c.b16 %v2029, %v2028
    %v2059 = vpack.c.b16 %v2031, %v2030
    %v2060 = vpack.c.b16 %v2033, %v2032
    %v2061 = vpack.c.b16 %v2035, %v2034
    %v2062 = vpack.c.b16 %v2037, %v2036
    %v2063 = vpack.c.b16 %v2039, %v2038
    %2088 = vmatprep.subr.bf16.mxu0 0
    %2089 = vmatpush1.bf16.msra.mxu0 %v2040
    %2090 = vmatprep.subr.bf16.mxu0 0
    %2091 = vmatpush1.bf16.msra.mxu0 %v2041
    %2092 = vmatprep.subr.bf16.mxu0 0
    %2093 = vmatpush1.bf16.msra.mxu0 %v2042
    %2094 = vmatprep.subr.bf16.mxu0 0
    %2095 = vmatpush1.bf16.msra.mxu0 %v2043
    %2096 = vmatprep.subr.bf16.mxu0 0
    %2097 = vmatpush1.bf16.msra.mxu0 %v2044
    %2098 = vmatprep.subr.bf16.mxu0 0
    %2099 = vmatpush1.bf16.msra.mxu0 %v2045
    %2100 = vmatprep.subr.bf16.mxu0 0
    %2101 = vmatpush1.bf16.msra.mxu0 %v2046
    %2102 = vmatprep.subr.bf16.mxu0 0
    %2103 = vmatpush1.bf16.msra.mxu0 %v2047
    %2104 = vmatprep.subr.bf16.mxu0 0
    %2105 = vmatpush1.bf16.msra.mxu0 %v2048
    %2106 = vmatprep.subr.bf16.mxu0 0
    %2107 = vmatpush1.bf16.msra.mxu0 %v2049
    %2108 = vmatprep.subr.bf16.mxu0 0
    %2109 = vmatpush1.bf16.msra.mxu0 %v2050
    %2110 = vmatprep.subr.bf16.mxu0 0
    %2111 = vmatpush1.bf16.msra.mxu0 %v2051
    %2112 = vmatprep.subr.bf16.mxu0 0
    %2113 = vmatpush1.bf16.msra.mxu0 %v2052
    %2114 = vmatprep.subr.bf16.mxu0 0
    %2115 = vmatpush1.bf16.msra.mxu0 %v2053
    %2116 = vmatprep.subr.bf16.mxu0 0
    %2117 = vmatpush1.bf16.msra.mxu0 %v2054
    %2118 = vmatprep.subr.bf16.mxu0 0
    %2119 = vmatpush1.bf16.msra.mxu0 %v2055
    %2120 = vmatprep.mubr.bf16.mxu0 %v1927
    %2121 = vmatmul.mubr.bf16.gmra.mrb[0].mxu0 %v1926
    %v2122 = vpop.f32.mrb[0].mxu0
    %v2123 = vadd.f32 %v1942, %v2122
    %v2124 = vpop.f32.mrb[0].mxu0
    %v2125 = vpop.f32.mrb[0].mxu0
    %v2126 = vadd.f32 %v1942, %v2125
    %v2127 = vpop.f32.mrb[0].mxu0
    %2128 = vmatprep.mubr.bf16.mxu0 %v1930
    %2129 = vmatmul.mubr.bf16.gmra.mrb[0].mxu0 %v1929
    %v2130 = vpop.f32.mrb[0].mxu0
    %v2131 = vadd.f32 %v1942, %v2130
    %v2132 = vpop.f32.mrb[0].mxu0
    %v2133 = vpop.f32.mrb[0].mxu0
    %v2134 = vadd.f32 %v1942, %v2133
    %v2135 = vpop.f32.mrb[0].mxu0
    %2136 = vmatprep.mubr.bf16.mxu0 %v1933
    %2137 = vmatmul.mubr.bf16.gmra.mrb[0].mxu0 %v1932
    %v2138 = vpop.f32.mrb[0].mxu0
    %v2139 = vadd.f32 %v1942, %v2138
    %v2140 = vpop.f32.mrb[0].mxu0
    %v2141 = vpop.f32.mrb[0].mxu0
    %v2142 = vadd.f32 %v1942, %v2141
    %v2143 = vpop.f32.mrb[0].mxu0
    %2144 = vmatprep.mubr.bf16.mxu0 %v1936
    %2145 = vmatmul.mubr.bf16.gmra.mrb[0].mxu0 %v1935
    %v2146 = vpop.f32.mrb[0].mxu0
    %v2147 = vadd.f32 %v1942, %v2146
    %v2148 = vpop.f32.mrb[0].mxu0
    %v2149 = vpop.f32.mrb[0].mxu0
    %v2150 = vadd.f32 %v1942, %v2149
    %v2151 = vpop.f32.mrb[0].mxu0
    %2152 = vdwg.mxu0
    %2153 = vmatprep.subr.bf16.mxu0 0
    %2154 = vmatpush1.bf16.msra.mxu0 %v2056
    %2155 = vmatprep.subr.bf16.mxu0 0
    %2156 = vmatpush1.bf16.msra.mxu0 %v2057
    %2157 = vmatprep.subr.bf16.mxu0 0
    %2158 = vmatpush1.bf16.msra.mxu0 %v2058
    %2159 = vmatprep.subr.bf16.mxu0 0
    %2160 = vmatpush1.bf16.msra.mxu0 %v2059
    %2161 = vmatprep.subr.bf16.mxu0 0
    %2162 = vmatpush1.bf16.msra.mxu0 %v2060
    %2163 = vmatprep.subr.bf16.mxu0 0
    %2164 = vmatpush1.bf16.msra.mxu0 %v2061
    %2165 = vmatprep.subr.bf16.mxu0 0
    %2166 = vmatpush1.bf16.msra.mxu0 %v2062
    %2167 = vmatprep.subr.bf16.mxu0 0
    %2168 = vmatpush1.bf16.msra.mxu0 %v2063
    %2169 = vmatprep.subr.bf16.mxu0 0
    %2170 = vmatpush1.bf16.msra.mxu0 0
    %2171 = vmatprep.subr.bf16.mxu0 0
    %2172 = vmatpush1.bf16.msra.mxu0 0
    %2173 = vmatprep.subr.bf16.mxu0 0
    %2174 = vmatpush1.bf16.msra.mxu0 0
    %2175 = vmatprep.subr.bf16.mxu0 0
    %2176 = vmatpush1.bf16.msra.mxu0 0
    %2177 = vmatprep.subr.bf16.mxu0 0
    %2178 = vmatpush1.bf16.msra.mxu0 0
    %2179 = vmatprep.subr.bf16.mxu0 0
    %2180 = vmatpush1.bf16.msra.mxu0 0
    %2181 = vmatprep.subr.bf16.mxu0 0
    %2182 = vmatpush1.bf16.msra.mxu0 0
    %2183 = vmatprep.subr.bf16.mxu0 0
    %2184 = vmatpush1.bf16.msra.mxu0 0
    %2185 = vmatprep.mubr.bf16.mxu0 0
    %2186 = vmatmul.mubr.bf16.gmra.mrb[0].mxu0 %v1928
    %v2187 = vpop.f32.mrb[0].mxu0
    %v2188 = vadd.f32 %v2123, %v2187
    %v2189 = vpop.f32.mrb[0].mxu0
    %v2190 = vpop.f32.mrb[0].mxu0
    %v2191 = vadd.f32 %v2126, %v2190
    %v2192 = vpop.f32.mrb[0].mxu0
    %2193 = vmatprep.mubr.bf16.mxu0 0
    %2194 = vmatmul.mubr.bf16.gmra.mrb[0].mxu0 %v1931
    %v2195 = vpop.f32.mrb[0].mxu0
    %v2196 = vadd.f32 %v2131, %v2195
    %v2197 = vpop.f32.mrb[0].mxu0
    %v2198 = vpop.f32.mrb[0].mxu0
    %v2199 = vadd.f32 %v2134, %v2198
    %v2200 = vpop.f32.mrb[0].mxu0
    %2201 = vmatprep.mubr.bf16.mxu0 0
    %2202 = vmatmul.mubr.bf16.gmra.mrb[0].mxu0 %v1934
    %v2203 = vpop.f32.mrb[0].mxu0
    %v2204 = vadd.f32 %v2139, %v2203
    %v2205 = vpop.f32.mrb[0].mxu0
    %v2206 = vpop.f32.mrb[0].mxu0
    %v2207 = vadd.f32 %v2142, %v2206
    %v2208 = vpop.f32.mrb[0].mxu0
    %2209 = vmatprep.mubr.bf16.mxu0 0
    %2210 = vmatmul.mubr.bf16.gmra.mrb[0].mxu0 %v1937
    %v2211 = vpop.f32.mrb[0].mxu0
    %v2212 = vadd.f32 %v2147, %v2211
    %v2213 = vpop.f32.mrb[0].mxu0
    %v2214 = vpop.f32.mrb[0].mxu0
    %v2215 = vadd.f32 %v2150, %v2214
    %v2216 = vpop.f32.mrb[0].mxu0
    %2217 = vdwg.mxu0
    %v2218 = vmax.f32 %v2188, 0.0
    %v2219 = vmax.f32 %v2191, 0.0
    %v2220 = vmax.f32 %v2196, 0.0
    %v2221 = vmax.f32 %v2199, 0.0
    %v2222 = vmax.f32 %v2204, 0.0
    %v2223 = vmax.f32 %v2207, 0.0
    %v2224 = vmax.f32 %v2212, 0.0
    %v2225 = vmax.f32 %v2215, 0.0
    %v2226 = vpack.c.bf16 %v2219, %v2218
    %v2227 = vpack.c.bf16 %v2221, %v2220
    %v2228 = vpack.c.bf16 %v2223, %v2222
    %v2229 = vpack.c.bf16 %v2225, %v2224
    %v2231 = vlaneseq
    %v2232 = vshrl.u32 %v2231, 7
    %v2233 = vsub.s32 0, %v2232
    %v2234 = vrot.slane %v1529, %v2233
    %v2252 = vunpack.c.l.b16 %v1513
    %v2253 = vunpack.c.l.b16 %v1514
    %v2254 = vunpack.c.l.b16 %v1515
    %v2255 = vunpack.c.l.b16 %v1516
    %v2256 = vunpack.c.l.b16 %v1517
    %v2257 = vunpack.c.l.b16 %v1518
    %v2258 = vunpack.c.l.b16 %v1519
    %v2259 = vunpack.c.l.b16 %v1520
    %v2260 = vunpack.c.l.b16 %v1521
    %v2261 = vunpack.c.l.b16 %v1522
    %v2262 = vunpack.c.l.b16 %v1523
    %v2263 = vunpack.c.l.b16 %v1524
    %v2264 = vunpack.c.l.b16 %v1525
    %v2265 = vunpack.c.l.b16 %v1526
    %v2266 = vunpack.c.l.b16 %v1527
    %v2267 = vunpack.c.l.b16 %v1528
    %v2268 = vpack.c.b16 %v2253, %v2252
    %v2269 = vpack.c.b16 %v2255, %v2254
    %v2270 = vpack.c.b16 %v2257, %v2256
    %v2271 = vpack.c.b16 %v2259, %v2258
    %v2272 = vpack.c.b16 %v2261, %v2260
    %v2273 = vpack.c.b16 %v2263, %v2262
    %v2274 = vpack.c.b16 %v2265, %v2264
    %v2275 = vpack.c.b16 %v2267, %v2266
    %2284 = vmatprep.subr.bf16.mxu0 0
    %2285 = vmatpush1.bf16.msra.mxu0 %v2268
    %2286 = vmatprep.subr.bf16.mxu0 0
    %2287 = vmatpush1.bf16.msra.mxu0 %v2269
    %2288 = vmatprep.subr.bf16.mxu0 0
    %2289 = vmatpush1.bf16.msra.mxu0 %v2270
    %2290 = vmatprep.subr.bf16.mxu0 0
    %2291 = vmatpush1.bf16.msra.mxu0 %v2271
    %2292 = vmatprep.subr.bf16.mxu0 0
    %2293 = vmatpush1.bf16.msra.mxu0 %v2272
    %2294 = vmatprep.subr.bf16.mxu0 0
    %2295 = vmatpush1.bf16.msra.mxu0 %v2273
    %2296 = vmatprep.subr.bf16.mxu0 0
    %2297 = vmatpush1.bf16.msra.mxu0 %v2274
    %2298 = vmatprep.subr.bf16.mxu0 0
    %2299 = vmatpush1.bf16.msra.mxu0 %v2275
    %2300 = vmatprep.subr.bf16.mxu0 0
    %2301 = vmatpush1.bf16.msra.mxu0 0
    %2302 = vmatprep.subr.bf16.mxu0 0
    %2303 = vmatpush1.bf16.msra.mxu0 0
    %2304 = vmatprep.subr.bf16.mxu0 0
    %2305 = vmatpush1.bf16.msra.mxu0 0
    %2306 = vmatprep.subr.bf16.mxu0 0
    %2307 = vmatpush1.bf16.msra.mxu0 0
    %2308 = vmatprep.subr.bf16.mxu0 0
    %2309 = vmatpush1.bf16.msra.mxu0 0
    %2310 = vmatprep.subr.bf16.mxu0 0
    %2311 = vmatpush1.bf16.msra.mxu0 0
    %2312 = vmatprep.subr.bf16.mxu0 0
    %2313 = vmatpush1.bf16.msra.mxu0 0
    %2314 = vmatprep.subr.bf16.mxu0 0
    %2315 = vmatpush1.bf16.msra.mxu0 0
    %2316 = vmatprep.mubr.bf16.mxu0 0
    %2317 = vmatmul.mubr.bf16.gmra.mrb[0].mxu0 %v2226
    %v2318 = vpop.f32.mrb[0].mxu0
    %v2319 = vadd.f32 %v2234, %v2318
    %v2320 = vpop.f32.mrb[0].mxu0
    %v2321 = vpop.f32.mrb[0].mxu0
    %v2322 = vadd.f32 %v2234, %v2321
    %v2323 = vpop.f32.mrb[0].mxu0
    %2324 = vmatprep.mubr.bf16.mxu0 0
    %2325 = vmatmul.mubr.bf16.gmra.mrb[0].mxu0 %v2227
    %v2326 = vpop.f32.mrb[0].mxu0
    %v2327 = vadd.f32 %v2234, %v2326
    %v2328 = vpop.f32.mrb[0].mxu0
    %v2329 = vpop.f32.mrb[0].mxu0
    %v2330 = vadd.f32 %v2234, %v2329
    %v2331 = vpop.f32.mrb[0].mxu0
    %2332 = vmatprep.mubr.bf16.mxu0 0
    %2333 = vmatmul.mubr.bf16.gmra.mrb[0].mxu0 %v2228
    %v2334 = vpop.f32.mrb[0].mxu0
    %v2335 = vadd.f32 %v2234, %v2334
    %v2336 = vpop.f32.mrb[0].mxu0
    %v2337 = vpop.f32.mrb[0].mxu0
    %v2338 = vadd.f32 %v2234, %v2337
    %v2339 = vpop.f32.mrb[0].mxu0
    %2340 = vmatprep.mubr.bf16.mxu0 0
    %2341 = vmatmul.mubr.bf16.gmra.mrb[0].mxu0 %v2229
    %v2342 = vpop.f32.mrb[0].mxu0
    %v2343 = vadd.f32 %v2234, %v2342
    %v2344 = vpop.f32.mrb[0].mxu0
    %v2345 = vpop.f32.mrb[0].mxu0
    %v2346 = vadd.f32 %v2234, %v2345
    %v2347 = vpop.f32.mrb[0].mxu0
    %2348 = vdwg.mxu0
    %v2349 = vadd.f32 %v1407, %v2319
    %v2350 = vadd.f32 %v1408, %v2322
    %v2351 = vadd.f32 %v1409, %v2327
    %v2352 = vadd.f32 %v1410, %v2330
    %v2353 = vadd.f32 %v1411, %v2335
    %v2354 = vadd.f32 %v1412, %v2338
    %v2355 = vadd.f32 %v1413, %v2343
    %v2356 = vadd.f32 %v1414, %v2346
    %v2357 = vld [vmem:[#allocation14] sm:$0xf]
    %v2358 = vld [vmem:[#allocation14 + $0x4] sm:$0xf]
    %v2359 = vld [vmem:[#allocation14 + $0x8] sm:$0xf]
    %v2360 = vld [vmem:[#allocation14 + $0xc] sm:$0xf]
    %v2361 = vld [vmem:[#allocation14 + $0x10] sm:$0xf]
    %v2362 = vld [vmem:[#allocation14 + $0x14] sm:$0xf]
    %v2363 = vld [vmem:[#allocation14 + $0x18] sm:$0xf]
    %v2364 = vld [vmem:[#allocation14 + $0x1c] sm:$0xf]
    %v2365 = vld [vmem:[#allocation14 + $0x20] sm:$0xf]
    %v2366 = vld [vmem:[#allocation14 + $0x24] sm:$0xf]
    %v2367 = vld [vmem:[#allocation14 + $0x28] sm:$0xf]
    %v2368 = vld [vmem:[#allocation14 + $0x2c] sm:$0xf]
    %v2369 = vld [vmem:[#allocation14 + $0x30] sm:$0xf]
    %v2370 = vld [vmem:[#allocation14 + $0x34] sm:$0xf]
    %v2371 = vld [vmem:[#allocation14 + $0x38] sm:$0xf]
    %v2372 = vld [vmem:[#allocation14 + $0x3c] sm:$0xf]
    %v2373 = vld [vmem:[#allocation15] sm:$0x1]
    %v2374 = vpack.c.bf16 %v2350, %v2349
    %v2375 = vpack.c.bf16 %v2352, %v2351
    %v2376 = vpack.c.bf16 %v2354, %v2353
    %v2377 = vpack.c.bf16 %v2356, %v2355
    %v2379 = vlaneseq
    %v2380 = vshrl.u32 %v2379, 7
    %v2381 = vsub.s32 0, %v2380
    %v2382 = vrot.slane %v2373, %v2381
    %v2400 = vunpack.c.l.b16 %v2357
    %v2401 = vunpack.c.l.b16 %v2358
    %v2402 = vunpack.c.l.b16 %v2359
    %v2403 = vunpack.c.l.b16 %v2360
    %v2404 = vunpack.c.l.b16 %v2361
    %v2405 = vunpack.c.l.b16 %v2362
    %v2406 = vunpack.c.l.b16 %v2363
    %v2407 = vunpack.c.l.b16 %v2364
    %v2408 = vunpack.c.l.b16 %v2365
    %v2409 = vunpack.c.l.b16 %v2366
    %v2410 = vunpack.c.l.b16 %v2367
    %v2411 = vunpack.c.l.b16 %v2368
    %v2412 = vunpack.c.l.b16 %v2369
    %v2413 = vunpack.c.l.b16 %v2370
    %v2414 = vunpack.c.l.b16 %v2371
    %v2415 = vunpack.c.l.b16 %v2372
    %v2416 = vpack.c.b16 %v2401, %v2400
    %v2417 = vpack.c.b16 %v2403, %v2402
    %v2418 = vpack.c.b16 %v2405, %v2404
    %v2419 = vpack.c.b16 %v2407, %v2406
    %v2420 = vpack.c.b16 %v2409, %v2408
    %v2421 = vpack.c.b16 %v2411, %v2410
    %v2422 = vpack.c.b16 %v2413, %v2412
    %v2423 = vpack.c.b16 %v2415, %v2414
    %2432 = vmatprep.subr.bf16.mxu0 0
    %2433 = vmatpush1.bf16.msra.mxu0 %v2416
    %2434 = vmatprep.subr.bf16.mxu0 0
    %2435 = vmatpush1.bf16.msra.mxu0 %v2417
    %2436 = vmatprep.subr.bf16.mxu0 0
    %2437 = vmatpush1.bf16.msra.mxu0 %v2418
    %2438 = vmatprep.subr.bf16.mxu0 0
    %2439 = vmatpush1.bf16.msra.mxu0 %v2419
    %2440 = vmatprep.subr.bf16.mxu0 0
    %2441 = vmatpush1.bf16.msra.mxu0 %v2420
    %2442 = vmatprep.subr.bf16.mxu0 0
    %2443 = vmatpush1.bf16.msra.mxu0 %v2421
    %2444 = vmatprep.subr.bf16.mxu0 0
    %2445 = vmatpush1.bf16.msra.mxu0 %v2422
    %2446 = vmatprep.subr.bf16.mxu0 0
    %2447 = vmatpush1.bf16.msra.mxu0 %v2423
    %2448 = vmatprep.subr.bf16.mxu0 0
    %2449 = vmatpush1.bf16.msra.mxu0 0
    %2450 = vmatprep.subr.bf16.mxu0 0
    %2451 = vmatpush1.bf16.msra.mxu0 0
    %2452 = vmatprep.subr.bf16.mxu0 0
    %2453 = vmatpush1.bf16.msra.mxu0 0
    %2454 = vmatprep.subr.bf16.mxu0 0
    %2455 = vmatpush1.bf16.msra.mxu0 0
    %2456 = vmatprep.subr.bf16.mxu0 0
    %2457 = vmatpush1.bf16.msra.mxu0 0
    %2458 = vmatprep.subr.bf16.mxu0 0
    %2459 = vmatpush1.bf16.msra.mxu0 0
    %2460 = vmatprep.subr.bf16.mxu0 0
    %2461 = vmatpush1.bf16.msra.mxu0 0
    %2462 = vmatprep.subr.bf16.mxu0 0
    %2463 = vmatpush1.bf16.msra.mxu0 0
    %2464 = vmatprep.mubr.bf16.mxu0 0
    %2465 = vmatmul.mubr.bf16.gmra.mrb[0].mxu0 %v2374
    %v2466 = vpop.f32.mrb[0].mxu0
    %v2467 = vadd.f32 %v2382, %v2466
    %v2468 = vpop.f32.mrb[0].mxu0
    %v2469 = vpop.f32.mrb[0].mxu0
    %v2470 = vadd.f32 %v2382, %v2469
    %v2471 = vpop.f32.mrb[0].mxu0
    %2472 = vmatprep.mubr.bf16.mxu0 0
    %2473 = vmatmul.mubr.bf16.gmra.mrb[0].mxu0 %v2375
    %v2474 = vpop.f32.mrb[0].mxu0
    %v2475 = vadd.f32 %v2382, %v2474
    %v2476 = vpop.f32.mrb[0].mxu0
    %v2477 = vpop.f32.mrb[0].mxu0
    %v2478 = vadd.f32 %v2382, %v2477
    %v2479 = vpop.f32.mrb[0].mxu0
    %2480 = vmatprep.mubr.bf16.mxu0 0
    %2481 = vmatmul.mubr.bf16.gmra.mrb[0].mxu0 %v2376
    %v2482 = vpop.f32.mrb[0].mxu0
    %v2483 = vadd.f32 %v2382, %v2482
    %v2484 = vpop.f32.mrb[0].mxu0
    %v2485 = vpop.f32.mrb[0].mxu0
    %v2486 = vadd.f32 %v2382, %v2485
    %v2487 = vpop.f32.mrb[0].mxu0
    %2488 = vmatprep.mubr.bf16.mxu0 0
    %2489 = vmatmul.mubr.bf16.gmra.mrb[0].mxu0 %v2377
    %v2490 = vpop.f32.mrb[0].mxu0
    %v2491 = vadd.f32 %v2382, %v2490
    %v2492 = vpop.f32.mrb[0].mxu0
    %v2493 = vpop.f32.mrb[0].mxu0
    %v2494 = vadd.f32 %v2382, %v2493
    %v2495 = vpop.f32.mrb[0].mxu0
    %2496 = vdwg.mxu0
    %v2497 = vmax.f32 %v2467, 0.0
    %v2498 = vmax.f32 %v2470, 0.0
    %v2499 = vmax.f32 %v2475, 0.0
    %v2500 = vmax.f32 %v2478, 0.0
    %v2501 = vmax.f32 %v2483, 0.0
    %v2502 = vmax.f32 %v2486, 0.0
    %v2503 = vmax.f32 %v2491, 0.0
    %v2504 = vmax.f32 %v2494, 0.0
    %v2505 = vld [vmem:[#allocation17] sm:$0xf]
    %v2506 = vld [vmem:[#allocation17 + $0x4] sm:$0xf]
    %v2507 = vld [vmem:[#allocation17 + $0x8] sm:$0xf]
    %v2508 = vld [vmem:[#allocation17 + $0xc] sm:$0xf]
    %v2509 = vld [vmem:[%s18] sm:$0xff]
    %v2510 = vld [vmem:[%s18 + $0x8] sm:$0xff]
    %v2511 = vld [vmem:[%s18 + $0x10] sm:$0xff]
    %v2512 = vld [vmem:[%s18 + $0x18] sm:$0xff]
    %v2513 = vld [vmem:[#allocation18] sm:$0x1]
    %v2514 = vld [vmem:[#allocation2] sm:$0x1]
    %v2515 = vpack.c.bf16 %v2498, %v2497
    %v2516 = vpack.c.bf16 %v2500, %v2499
    %2518 = vset.pattern.permute.xlu0 0
    %2519 = vperm.xlu0 %2518, %v2509
    %v2520 = vpop.permute.xlu0 %2519
    %2523 = vset.pattern.permute.xlu0 0
    %2524 = vperm.xlu0 %2523, %v2510
    %v2525 = vpop.permute.xlu0 %2524
    %2528 = vset.pattern.permute.xlu0 0
    %2529 = vperm.xlu0 %2528, %v2511
    %v2530 = vpop.permute.xlu0 %2529
    %2533 = vset.pattern.permute.xlu0 0
    %2534 = vperm.xlu0 %2533, %v2512
    %v2535 = vpop.permute.xlu0 %2534
    %v2541 = vunpack.c.l.b16 %v2505
    %v2542 = vunpack.c.l.b16 %v2506
    %v2543 = vunpack.c.l.b16 %v2507
    %v2544 = vunpack.c.l.b16 %v2508
    %v2545 = vpack.c.b16 %v2542, %v2541
    %v2546 = vpack.c.b16 %v2544, %v2543
    %vm2547 = vcmask 261120
    %v2549 = vsel %vm2547, %v2545, 0
    %v2552 = vsel %vm2547, %v2546, 0
    %2554 = vmatprep.subr.bf16.mxu0 0
    %2555 = vmatpush1.bf16.msra.mxu0 %v2515
    %2556 = vmatprep.subr.bf16.mxu0 0
    %2557 = vmatpush1.bf16.msra.mxu0 %v2516
    %2558 = vmatprep.subr.bf16.mxu0 0
    %2559 = vmatpush1.bf16.msra.mxu0 0
    %2560 = vmatprep.subr.bf16.mxu0 0
    %2561 = vmatpush1.bf16.msra.mxu0 0
    %2562 = vmatprep.subr.bf16.mxu0 0
    %2563 = vmatpush1.bf16.msra.mxu0 0
    %2564 = vmatprep.subr.bf16.mxu0 0
    %2565 = vmatpush1.bf16.msra.mxu0 0
    %2566 = vmatprep.subr.bf16.mxu0 0
    %2567 = vmatpush1.bf16.msra.mxu0 0
    %2568 = vmatprep.subr.bf16.mxu0 0
    %2569 = vmatpush1.bf16.msra.mxu0 0
    %2570 = vmatprep.subr.bf16.mxu0 0
    %2571 = vmatpush1.bf16.msra.mxu0 0
    %2572 = vmatprep.subr.bf16.mxu0 0
    %2573 = vmatpush1.bf16.msra.mxu0 0
    %2574 = vmatprep.subr.bf16.mxu0 0
    %2575 = vmatpush1.bf16.msra.mxu0 0
    %2576 = vmatprep.subr.bf16.mxu0 0
    %2577 = vmatpush1.bf16.msra.mxu0 0
    %2578 = vmatprep.subr.bf16.mxu0 0
    %2579 = vmatpush1.bf16.msra.mxu0 0
    %2580 = vmatprep.subr.bf16.mxu0 0
    %2581 = vmatpush1.bf16.msra.mxu0 0
    %2582 = vmatprep.subr.bf16.mxu0 0
    %2583 = vmatpush1.bf16.msra.mxu0 0
    %2584 = vmatprep.subr.bf16.mxu0 0
    %2585 = vmatpush1.bf16.msra.mxu0 0
    %2586 = vmatprep.mubr.bf16.mxu0 0
    %2587 = vmatmul.mubr.bf16.gmra.mrb[0].mxu0 %v2549
    %v2588 = vpop.f32.mrb[0].mxu0
    %v2589 = vadd.f32 %v2520, %v2588
    %v2590 = vpop.f32.mrb[0].mxu0
    %v2591 = vpop.f32.mrb[0].mxu0
    %v2592 = vadd.f32 %v2525, %v2591
    %v2593 = vpop.f32.mrb[0].mxu0
    %2594 = vmatprep.mubr.bf16.mxu0 0
    %2595 = vmatmul.mubr.bf16.gmra.mrb[0].mxu0 %v2552
    %v2596 = vpop.f32.mrb[0].mxu0
    %v2597 = vadd.f32 %v2530, %v2596
    %v2598 = vpop.f32.mrb[0].mxu0
    %v2599 = vpop.f32.mrb[0].mxu0
    %v2600 = vadd.f32 %v2535, %v2599
    %v2601 = vpop.f32.mrb[0].mxu0
    %2602 = vdwg.mxu0
    %v2603 = vmax.f32 %v2589, 0.0
    %v2604 = vmax.f32 %v2592, 0.0
    %v2605 = vmax.f32 %v2597, 0.0
    %v2606 = vmax.f32 %v2600, 0.0
    %v2607 = vpack.c.bf16 %v2604, %v2603
    %v2608 = vpack.c.bf16 %v2606, %v2605
    %2610 = vset.pattern.permute.xlu0 0
    %2611 = vperm.xlu0 %2610, %v2514
    %v2612 = vpop.permute.xlu0 %2611
    %v2614 = vlaneseq
    %v2615 = vshrl.u32 %v2614, 7
    %v2616 = vsub.s32 0, %v2615
    %v2617 = vrot.slane %v2612, %v2616
    %v2619 = vsel %vm2547, %v2513, 0
    %2621 = vmatprep.subr.bf16.mxu0 0
    %2622 = vmatpush1.bf16.msra.mxu0 %v2607
    %2623 = vmatprep.subr.bf16.mxu0 0
    %2624 = vmatpush1.bf16.msra.mxu0 %v2608
    %2625 = vmatprep.subr.bf16.mxu0 0
    %2626 = vmatpush1.bf16.msra.mxu0 0
    %2627 = vmatprep.subr.bf16.mxu0 0
    %2628 = vmatpush1.bf16.msra.mxu0 0
    %2629 = vmatprep.subr.bf16.mxu0 0
    %2630 = vmatpush1.bf16.msra.mxu0 0
    %2631 = vmatprep.subr.bf16.mxu0 0
    %2632 = vmatpush1.bf16.msra.mxu0 0
    %2633 = vmatprep.subr.bf16.mxu0 0
    %2634 = vmatpush1.bf16.msra.mxu0 0
    %2635 = vmatprep.subr.bf16.mxu0 0
    %2636 = vmatpush1.bf16.msra.mxu0 0
    %2637 = vmatprep.subr.bf16.mxu0 0
    %2638 = vmatpush1.bf16.msra.mxu0 0
    %2639 = vmatprep.subr.bf16.mxu0 0
    %2640 = vmatpush1.bf16.msra.mxu0 0
    %2641 = vmatprep.subr.bf16.mxu0 0
    %2642 = vmatpush1.bf16.msra.mxu0 0
    %2643 = vmatprep.subr.bf16.mxu0 0
    %2644 = vmatpush1.bf16.msra.mxu0 0
    %2645 = vmatprep.subr.bf16.mxu0 0
    %2646 = vmatpush1.bf16.msra.mxu0 0
    %2647 = vmatprep.subr.bf16.mxu0 0
    %2648 = vmatpush1.bf16.msra.mxu0 0
    %2649 = vmatprep.subr.bf16.mxu0 0
    %2650 = vmatpush1.bf16.msra.mxu0 0
    %2651 = vmatprep.subr.bf16.mxu0 0
    %2652 = vmatpush1.bf16.msra.mxu0 0
    %2653 = vmatprep.mubr.bf16.mxu0 0
    %2654 = vmatmul.mubr.bf16.gmra.mrb[0].mxu0 %v2619
    %v2655 = vpop.f32.mrb[0].mxu0
    %v2656 = vadd.f32 %v2617, %v2655
    %v2657 = vpop.f32.mrb[0].mxu0
    %v2658 = vpop.f32.mrb[0].mxu0
    %v2659 = vpop.f32.mrb[0].mxu0
    %2660 = vdwg.mxu0
    %v2661 = vpack.c.bf16 %v2502, %v2501
    %v2662 = vpack.c.bf16 %v2504, %v2503
    %2663 = vmatprep.subr.bf16.mxu0 0
    %2664 = vmatpush1.bf16.msra.mxu0 %v2661
    %2665 = vmatprep.subr.bf16.mxu0 0
    %2666 = vmatpush1.bf16.msra.mxu0 %v2662
    %2667 = vmatprep.subr.bf16.mxu0 0
    %2668 = vmatpush1.bf16.msra.mxu0 0
    %2669 = vmatprep.subr.bf16.mxu0 0
    %2670 = vmatpush1.bf16.msra.mxu0 0
    %2671 = vmatprep.subr.bf16.mxu0 0
    %2672 = vmatpush1.bf16.msra.mxu0 0
    %2673 = vmatprep.subr.bf16.mxu0 0
    %2674 = vmatpush1.bf16.msra.mxu0 0
    %2675 = vmatprep.subr.bf16.mxu0 0
    %2676 = vmatpush1.bf16.msra.mxu0 0
    %2677 = vmatprep.subr.bf16.mxu0 0
    %2678 = vmatpush1.bf16.msra.mxu0 0
    %2679 = vmatprep.subr.bf16.mxu0 0
    %2680 = vmatpush1.bf16.msra.mxu0 0
    %2681 = vmatprep.subr.bf16.mxu0 0
    %2682 = vmatpush1.bf16.msra.mxu0 0
    %2683 = vmatprep.subr.bf16.mxu0 0
    %2684 = vmatpush1.bf16.msra.mxu0 0
    %2685 = vmatprep.subr.bf16.mxu0 0
    %2686 = vmatpush1.bf16.msra.mxu0 0
    %2687 = vmatprep.subr.bf16.mxu0 0
    %2688 = vmatpush1.bf16.msra.mxu0 0
    %2689 = vmatprep.subr.bf16.mxu0 0
    %2690 = vmatpush1.bf16.msra.mxu0 0
    %2691 = vmatprep.subr.bf16.mxu0 0
    %2692 = vmatpush1.bf16.msra.mxu0 0
    %2693 = vmatprep.subr.bf16.mxu0 0
    %2694 = vmatpush1.bf16.msra.mxu0 0
    %2695 = vmatprep.mubr.bf16.mxu0 0
    %2696 = vmatmul.mubr.bf16.gmra.mrb[0].mxu0 %v2549
    %v2697 = vpop.f32.mrb[0].mxu0
    %v2698 = vadd.f32 %v2520, %v2697
    %v2699 = vpop.f32.mrb[0].mxu0
    %v2700 = vpop.f32.mrb[0].mxu0
    %v2701 = vadd.f32 %v2525, %v2700
    %v2702 = vpop.f32.mrb[0].mxu0
    %2703 = vmatprep.mubr.bf16.mxu0 0
    %2704 = vmatmul.mubr.bf16.gmra.mrb[0].mxu0 %v2552
    %v2705 = vpop.f32.mrb[0].mxu0
    %v2706 = vadd.f32 %v2530, %v2705
    %v2707 = vpop.f32.mrb[0].mxu0
    %v2708 = vpop.f32.mrb[0].mxu0
    %v2709 = vadd.f32 %v2535, %v2708
    %v2710 = vpop.f32.mrb[0].mxu0
    %2711 = vdwg.mxu0
    %v2712 = vmax.f32 %v2698, 0.0
    %v2713 = vmax.f32 %v2701, 0.0
    %v2714 = vmax.f32 %v2706, 0.0
    %v2715 = vmax.f32 %v2709, 0.0
    %v2716 = vpack.c.bf16 %v2713, %v2712
    %v2717 = vpack.c.bf16 %v2715, %v2714
    %2718 = vmatprep.subr.bf16.mxu0 0
    %2719 = vmatpush1.bf16.msra.mxu0 %v2716
    %2720 = vmatprep.subr.bf16.mxu0 0
    %2721 = vmatpush1.bf16.msra.mxu0 %v2717
    %2722 = vmatprep.subr.bf16.mxu0 0
    %2723 = vmatpush1.bf16.msra.mxu0 0
    %2724 = vmatprep.subr.bf16.mxu0 0
    %2725 = vmatpush1.bf16.msra.mxu0 0
    %2726 = vmatprep.subr.bf16.mxu0 0
    %2727 = vmatpush1.bf16.msra.mxu0 0
    %2728 = vmatprep.subr.bf16.mxu0 0
    %2729 = vmatpush1.bf16.msra.mxu0 0
    %2730 = vmatprep.subr.bf16.mxu0 0
    %2731 = vmatpush1.bf16.msra.mxu0 0
    %2732 = vmatprep.subr.bf16.mxu0 0
    %2733 = vmatpush1.bf16.msra.mxu0 0
    %2734 = vmatprep.subr.bf16.mxu0 0
    %2735 = vmatpush1.bf16.msra.mxu0 0
    %2736 = vmatprep.subr.bf16.mxu0 0
    %2737 = vmatpush1.bf16.msra.mxu0 0
    %2738 = vmatprep.subr.bf16.mxu0 0
    %2739 = vmatpush1.bf16.msra.mxu0 0
    %2740 = vmatprep.subr.bf16.mxu0 0
    %2741 = vmatpush1.bf16.msra.mxu0 0
    %2742 = vmatprep.subr.bf16.mxu0 0
    %2743 = vmatpush1.bf16.msra.mxu0 0
    %2744 = vmatprep.subr.bf16.mxu0 0
    %2745 = vmatpush1.bf16.msra.mxu0 0
    %2746 = vmatprep.subr.bf16.mxu0 0
    %2747 = vmatpush1.bf16.msra.mxu0 0
    %2748 = vmatprep.subr.bf16.mxu0 0
    %2749 = vmatpush1.bf16.msra.mxu0 0
    %2750 = vmatprep.mubr.bf16.mxu0 0
    %2751 = vmatmul.mubr.bf16.gmra.mrb[0].mxu0 %v2619
    %v2752 = vpop.f32.mrb[0].mxu0
    %v2753 = vadd.f32 %v2617, %v2752
    %v2754 = vpop.f32.mrb[0].mxu0
    %v2755 = vpop.f32.mrb[0].mxu0
    %v2756 = vpop.f32.mrb[0].mxu0
    %2757 = vdwg.mxu0
    %v2759 = vrot.slane %v2753, 7
    %vm2761 = vcmask 1040384
    %v2762 = vsel %vm2761, %v2656, %v2759
    %2763 = vst [vmem:[#allocation20] sm:$0x3] %v2762
    // Predicated region
    $region126: #{fmri_cat_forward.1} parent=1 // pred_check
      _
    $region127: #{fmri_cat_forward.1} parent=1 // pred_check_branch
      %2765 = sbr.rel (0) target = $region129
    $region128: #{fmri_cat_forward.1} parent=1 // pred_region
      %s2767 = ssub.s32 32, 32
      %2768 = vsyncadd [#allocation5], %s2767
      %s2770 = sshll.u32 [#allocation20], 4
      %s2771 = int_to_ptr.vmem [resolvable:$true] %s2770
      %2773 = dma.vmem_to_hbm [thread:$0]  %s2771, 32, %s21, [#allocation5]
    $region129: #{fmri_cat_forward.1} parent=1 // pred_fallthru
      _
    // Predicated region
    $region130: #{fmri_cat_forward.1} parent=1 // pred_check
      _
    $region131: #{fmri_cat_forward.1} parent=1 // pred_check_branch
      %2775 = sbr.rel (0) target = $region133
    $region132: #{fmri_cat_forward.1} parent=1 // pred_region
      %2776 = dma.done [#allocation5], 32
    $region133: #{fmri_cat_forward.1} parent=1 // pred_fallthru
      _
    %2777 = vsyncpa [#allocation4], 1
    %2778 = vsyncpa [#allocation7], 1
    %2779 = vsyncpa [#allocation10], 1
    %2780 = vsyncpa [#allocation13], 1
    %2781 = vsyncpa [#allocation16], 1
    %2782 = vsyncpa [#allocation19], 1
    %2783 = vsyncpa [#allocation5], 1

</llo_original>
